<compile_context>
chip_gen: v7x
topology: tpu7x:2x2x1
jax: 0.10.0
libtpu: 0.0.40
codegen_flags: <defaults>
</compile_context>

<pallas_src>
import numpy as np
import jax
import jax.numpy as jnp
from jax.experimental import pallas as pl
from jax.experimental.pallas import tpu as pltpu


_VMEM_LIMIT = 48 * 1024 * 1024  # headroom below v7x's 64 MiB physical VMEM


def _params(n_axes):
    return pltpu.CompilerParams(
        dimension_semantics=("parallel",) * n_axes,
        vmem_limit_bytes=_VMEM_LIMIT)


def _pick_tile(total, limit, mult=8):
    """Largest divisor of `total` that is <= limit and a multiple of `mult`."""
    if total <= limit:
        return total
    for d in range(limit, 0, -1):
        if total % d == 0 and d % mult == 0:
            return d
    return total


# --------------------------- Pallas kernels ---------------------------------

def _conv3x3_relu_kernel(xp_ref, w_ref, b_ref, o_ref):
    # xp_ref: (Hp, Wp, Cin) bf16 zero-padded full image (conv pad=1 + align pad)
    # w_ref : (9, Cin, Cout) bf16 taps ordered (dy, dx)
    # b_ref : (1, Cout) f32
    # o_ref : (TH, W, Cout) bf16 -- rows [r*TH, r*TH+TH) of the conv output
    TH, W, Cout = o_ref.shape
    Cin = xp_ref.shape[-1]
    r = pl.program_id(1)
    row0 = pl.multiple_of(r * TH, TH)
    acc = jnp.zeros((TH * W, Cout), jnp.float32)
    for tap in range(9):
        dy, dx = tap // 3, tap % 3
        patch = xp_ref[pl.ds(row0 + dy, TH), dx:dx + W, :].reshape(TH * W, Cin)
        acc = acc + jnp.dot(patch, w_ref[tap], preferred_element_type=jnp.float32)
    acc = jnp.maximum(acc + b_ref[...], 0.0)          # bias + ReLU in f32
    o_ref[...] = acc.reshape(TH, W, Cout).astype(o_ref.dtype)


def _upsample2x_kernel(y_ref, ah_ref, awk_ref, o_ref):
    # Fused separable x2 bilinear upsample (rows then columns) in one kernel.
    # y_ref  : (H, W*C) bf16   conv output in row-major layout (lane dim W*C)
    # ah_ref : (TH2, H) bf16   row block of the H-direction interp matrix
    # awk_ref: (W*C, Wo*C) bf16  kron(Aw^T, I_C): column-direction interp
    # o_ref  : (TH2, Wo*C) bf16  lane-dense output block
    t = jnp.dot(ah_ref[...], y_ref[...], preferred_element_type=jnp.float32)
    u = jnp.dot(t.astype(awk_ref.dtype), awk_ref[...],
                preferred_element_type=jnp.float32)
    o_ref[...] = u.astype(o_ref.dtype)


def _conv1x1_kernel(x_ref, w_ref, b_ref, o_ref):
    # x_ref: (TP, Cin) bf16; w_ref: (Cin, ncls) bf16; b_ref: (1, ncls) f32
    o_ref[...] = (jnp.dot(x_ref[...], w_ref[...],
                          preferred_element_type=jnp.float32)
                  + b_ref[...]).astype(o_ref.dtype)


def _upsample_cm_kernel(z_ref, ah_ref, awt_ref, o_ref):
    # Final bilinear upsample, channel-major (one class plane per grid step).
    # z_ref: (H2, W2) f32; ah_ref: (T4, H2) f32; awt_ref: (W2, Wo) f32
    # o_ref: (T4, Wo) f32   -- lane-dense, already in NCHW orientation
    t = jnp.dot(ah_ref[...], z_ref[...], preferred_element_type=jnp.float32)
    o_ref[...] = jnp.dot(t, awt_ref[...], preferred_element_type=jnp.float32)


# --------------------------- wrappers (glue) ---------------------------------

def conv3x3_relu(x, w, b):
    """x: (N,H,W,Cin) bf16; w: (Cout,Cin,3,3) f32 torch layout; b: (Cout,) f32.

    Returns (N,H,W,Cout) bf16."""
    N, H, W, Cin = x.shape
    Cout = w.shape[0]
    w9 = jnp.transpose(w, (2, 3, 1, 0)).reshape(9, Cin, Cout).astype(jnp.bfloat16)
    # pad=1 for the conv, then up to multiples of 8 so in-kernel slices/reshapes
    # stay sublane friendly; padding is zero and never contributes.
    Hp = -(-(H + 2) // 8) * 8
    Wp = -(-(W + 2) // 8) * 8
    xp = jnp.pad(x, ((0, 0), (1, Hp - H - 1), (1, Wp - W - 1), (0, 0)))
    TH = _pick_tile(H, max(1, 4096 // W), mult=1)     # bound rows per step
    grid = (N, H // TH)
    return pl.pallas_call(
        _conv3x3_relu_kernel,
        out_shape=jax.ShapeDtypeStruct((N, H, W, Cout), jnp.bfloat16),
        grid=grid,
        in_specs=[
            pl.BlockSpec((None, Hp, Wp, Cin), lambda n, r: (n, 0, 0, 0)),
            pl.BlockSpec((9, Cin, Cout), lambda n, r: (0, 0, 0)),
            pl.BlockSpec((1, Cout), lambda n, r: (0, 0)),
        ],
        out_specs=pl.BlockSpec((None, TH, W, Cout), lambda n, r: (n, r, 0, 0)),
        compiler_params=_params(2),
    )(xp, w9, b.reshape(1, Cout).astype(jnp.float32))


def _bilinear_matrix(in_size, scale):
    """Dense (out,in) interpolation matrix matching PyTorch align_corners=False."""
    out_size = in_size * scale
    s = in_size / out_size
    A = np.zeros((out_size, in_size), np.float32)
    for i in range(out_size):
        src = max((i + 0.5) * s - 0.5, 0.0)
        i0 = min(int(np.floor(src)), in_size - 1)
        frac = src - i0
        i1 = min(i0 + 1, in_size - 1)
        A[i, i0] += 1.0 - frac
        A[i, i1] += frac
    return A


def upsample_x2_rowmajor(y2, C):
    """Fused x2 bilinear upsample. y2: (N, H, W*C) bf16 -> (N, 2H, 2W*C) bf16."""
    N, H, WC = y2.shape
    W = WC // C
    Ho, Wo = 2 * H, 2 * W
    Ah = _bilinear_matrix(H, 2)                                   # (Ho, H)
    Aw = _bilinear_matrix(W, 2)                                   # (Wo, W)
    Awk = np.kron(Aw.T, np.eye(C, dtype=np.float32))              # (W*C, Wo*C)
    TH2 = _pick_tile(Ho, 256, 8)
    grid = (N, Ho // TH2)
    return pl.pallas_call(
        _upsample2x_kernel,
        out_shape=jax.ShapeDtypeStruct((N, Ho, Wo * C), jnp.bfloat16),
        grid=grid,
        in_specs=[
            pl.BlockSpec((None, H, WC), lambda n, r: (n, 0, 0)),
            pl.BlockSpec((TH2, H), lambda n, r: (r, 0)),
            pl.BlockSpec((WC, Wo * C), lambda n, r: (0, 0)),
        ],
        out_specs=pl.BlockSpec((None, TH2, Wo * C), lambda n, r: (n, r, 0)),
        compiler_params=_params(2),
    )(y2, jnp.asarray(Ah, jnp.bfloat16), jnp.asarray(Awk, jnp.bfloat16))


def conv1x1(x, w, b):
    """x: (N, P, Cin) bf16; w: (ncls, Cin, 1, 1) f32; b: (ncls,). -> (N, P, ncls) f32."""
    N, P, Cin = x.shape
    ncls = w.shape[0]
    w2 = w.reshape(ncls, Cin).T.astype(jnp.bfloat16)
    TP = _pick_tile(P, 4096, 8)
    grid = (N, P // TP)
    return pl.pallas_call(
        _conv1x1_kernel,
        out_shape=jax.ShapeDtypeStruct((N, P, ncls), jnp.float32),
        grid=grid,
        in_specs=[
            pl.BlockSpec((None, TP, Cin), lambda n, p: (n, p, 0)),
            pl.BlockSpec((Cin, ncls), lambda n, p: (0, 0)),
            pl.BlockSpec((1, ncls), lambda n, p: (0, 0)),
        ],
        out_specs=pl.BlockSpec((None, TP, ncls), lambda n, p: (n, p, 0)),
        compiler_params=_params(2),
    )(x, w2, b.reshape(1, ncls).astype(jnp.float32))


def upsample_final_cm(z_cm, scale):
    """z_cm: (N, ncls, H2, W2) f32 channel-major -> (N, ncls, H2*s, W2*s) f32 (NCHW)."""
    N, ncls, H2, W2 = z_cm.shape
    Ho, Wo = H2 * scale, W2 * scale
    Ah = jnp.asarray(_bilinear_matrix(H2, scale), jnp.float32)       # (Ho, H2)
    AwT = jnp.asarray(_bilinear_matrix(W2, scale).T, jnp.float32)    # (W2, Wo)
    T4 = _pick_tile(Ho, 256, 8)
    grid = (N, ncls, Ho // T4)
    return pl.pallas_call(
        _upsample_cm_kernel,
        out_shape=jax.ShapeDtypeStruct((N, ncls, Ho, Wo), jnp.float32),
        grid=grid,
        in_specs=[
            pl.BlockSpec((None, None, H2, W2), lambda n, c, r: (n, c, 0, 0)),
            pl.BlockSpec((T4, H2), lambda n, c, r: (r, 0)),
            pl.BlockSpec((W2, Wo), lambda n, c, r: (0, 0)),
        ],
        out_specs=pl.BlockSpec((None, None, T4, Wo), lambda n, c, r: (n, c, r, 0)),
        compiler_params=_params(3),
    )(z_cm, Ah, AwT)


# --------------------------- module ------------------------------------------

class SemanticSegmentationBranch:
    """JAX/Pallas port of the eval-mode forward pass (returns (logits, {}))."""

    def __init__(self, feature_channels, feature_stride, *, num_classes,
                 last_conv_dims, common_stride, key):
        self.common_stride = common_stride
        self.scale_factor = 2
        head_length = max(1, int(np.log2(feature_stride) - np.log2(common_stride)))
        self.head = []
        in_ch = feature_channels
        for k in range(head_length):
            out_ch = max(last_conv_dims,
                         feature_channels // (self.scale_factor * (k + 1)))
            key, wk = jax.random.split(key)
            std = float(np.sqrt(2.0 / (out_ch * 3 * 3)))   # c2_msra_fill (fan_out, relu)
            w = jax.random.normal(wk, (out_ch, in_ch, 3, 3), jnp.float32) * std
            b = jnp.zeros((out_ch,), jnp.float32)          # bias=True since norm=None
            self.head.append((w, b))
            in_ch = out_ch
        key, pk = jax.random.split(key)
        std = float(np.sqrt(2.0 / (num_classes * 1 * 1)))
        self.pred_w = jax.random.normal(pk, (num_classes, in_ch, 1, 1), jnp.float32) * std
        self.pred_b = jnp.zeros((num_classes,), jnp.float32)

    def __call__(self, features_nchw):
        # NCHW -> NHWC (small input tensor), bf16 activations for the MXU path.
        x = jnp.transpose(features_nchw, (0, 2, 3, 1)).astype(jnp.bfloat16)
        N = x.shape[0]
        for (w, b) in self.head:
            y = conv3x3_relu(x, w, b)                     # (N,H,W,Cout) bf16
            _, H, W, C = y.shape
            u = upsample_x2_rowmajor(y.reshape(N, H, W * C), C)   # (N,2H,2W*C)
            x = u.reshape(N, 2 * H, 2 * W, C)             # free view, NHWC
        _, H2, W2, C = x.shape
        z = conv1x1(x.reshape(N, H2 * W2, C), self.pred_w, self.pred_b)  # (N,P,ncls) f32
        ncls = z.shape[-1]
        # tiny transpose of the low-res logits to channel-major (negligible HBM)
        z_cm = jnp.transpose(z, (0, 2, 1)).reshape(N, ncls, H2, W2)
        logits = upsample_final_cm(z_cm, self.common_stride)   # (N,ncls,Ho,Wo) NCHW
        # TODO(synk): training-mode losses() (F.cross_entropy w/ ignore_index) not ported.
        return logits, {}


# --------------------------- demo --------------------------------------------

if __name__ == "__main__":
    key = jax.random.PRNGKey(0)
    key, xk = jax.random.split(key)

    N, C, H, W = 2, 16, 16, 16          # features at stride 16
    feature_stride, common_stride = 16, 4
    num_classes, last_conv_dims = 4, 8

    feats = jax.random.normal(xk, (N, C, H, W), jnp.float32)  # NCHW input

    branch = SemanticSegmentationBranch(
        C, feature_stride,
        num_classes=num_classes, last_conv_dims=last_conv_dims,
        common_stride=common_stride, key=key)

    logits, _ = branch(feats)
    logits = jax.block_until_ready(logits)

    # head_length=2 -> 16 -> 32 -> 64 spatial, then x common_stride=4 -> 256
    assert logits.shape == (N, num_classes, 256, 256), logits.shape
    assert logits.dtype == jnp.float32
    assert bool(jnp.all(jnp.isfinite(logits)))
    print("KERNEL_OK")
</pallas_src>

<mosaic_0001>
module attributes {stable_mosaic.version = 11 : i64} {
  func.func @_conv3x3_relu_kernel(%arg0: i32, %arg1: i32, %arg2: memref<1x24x24x16xbf16, #tpu.memory_space<vmem>>, %arg3: memref<9x16x8xbf16, #tpu.memory_space<vmem>>, %arg4: memref<1x8xf32, #tpu.memory_space<vmem>>, %arg5: memref<1x16x16x8xbf16, #tpu.memory_space<vmem>>) attributes {dimension_semantics = [#tpu.dimension_semantics<parallel>, #tpu.dimension_semantics<parallel>], iteration_bounds = array<i64: 2, 1>, scalar_prefetch = 0 : i64, scratch_operands = 0 : i64, tpu.core_type = #tpu.core_type<tc>, window_params = [{transform_indices = @transform_0, window_bounds = array<i64: 1, 24, 24, 16>}, {pipeline_mode = #tpu.pipeline_mode<synchronous>, transform_indices = @transform_1, window_bounds = array<i64: 9, 16, 8>}, {pipeline_mode = #tpu.pipeline_mode<synchronous>, transform_indices = @transform_2, window_bounds = array<i64: 1, 8>}, {transform_indices = @transform_3, window_bounds = array<i64: 1, 16, 16, 8>}]} {
    %c16_i32 = arith.constant 16 : i32
    %0 = arith.muli %arg1, %c16_i32 : i32
    %1 = tpu.assume_multiple %0, 16 : i32
    %cst = arith.constant 0.000000e+00 : f32
    %2 = vector.broadcast %cst : f32 to vector<256x8xf32>
    %c0_i32 = arith.constant 0 : i32
    %3 = arith.addi %1, %c0_i32 : i32
    %c0 = arith.constant 0 : index
    %4 = arith.index_cast %3 : i32 to index
    %c0_0 = arith.constant 0 : index
    %c0_1 = arith.constant 0 : index
    %5 = vector.load %arg2[%c0, %4, %c0_0, %c0_1] : memref<1x24x24x16xbf16, #tpu.memory_space<vmem>>, vector<1x16x16x16xbf16>
    %6 = vector.shape_cast %5 : vector<1x16x16x16xbf16> to vector<16x16x16xbf16>
    %7 = vector.shape_cast %6 : vector<16x16x16xbf16> to vector<256x16xbf16>
    %c0_2 = arith.constant 0 : index
    %c0_3 = arith.constant 0 : index
    %c0_4 = arith.constant 0 : index
    %8 = vector.load %arg3[%c0_2, %c0_3, %c0_4] : memref<9x16x8xbf16, #tpu.memory_space<vmem>>, vector<1x16x8xbf16>
    %9 = vector.shape_cast %8 : vector<1x16x8xbf16> to vector<16x8xbf16>
    %cst_5 = arith.constant dense<0.000000e+00> : vector<256x8xf32>
    %10 = tpu.matmul %7, %9, %cst_5 {dimension_numbers = #tpu.dot_dimension_numbers<[1], [0], [0], [1], [0, 0, 1, 1], [], []>} : vector<256x16xbf16>, vector<16x8xbf16>, vector<256x8xf32> -> vector<256x8xf32>
    %11 = arith.addf %2, %10 : vector<256x8xf32>
    %c0_i32_6 = arith.constant 0 : i32
    %12 = arith.addi %1, %c0_i32_6 : i32
    %c0_7 = arith.constant 0 : index
    %13 = arith.index_cast %12 : i32 to index
    %c1 = arith.constant 1 : index
    %c0_8 = arith.constant 0 : index
    %14 = vector.load %arg2[%c0_7, %13, %c1, %c0_8] : memref<1x24x24x16xbf16, #tpu.memory_space<vmem>>, vector<1x16x16x16xbf16>
    %15 = vector.shape_cast %14 : vector<1x16x16x16xbf16> to vector<16x16x16xbf16>
    %16 = vector.shape_cast %15 : vector<16x16x16xbf16> to vector<256x16xbf16>
    %c1_9 = arith.constant 1 : index
    %c0_10 = arith.constant 0 : index
    %c0_11 = arith.constant 0 : index
    %17 = vector.load %arg3[%c1_9, %c0_10, %c0_11] : memref<9x16x8xbf16, #tpu.memory_space<vmem>>, vector<1x16x8xbf16>
    %18 = vector.shape_cast %17 : vector<1x16x8xbf16> to vector<16x8xbf16>
    %cst_12 = arith.constant dense<0.000000e+00> : vector<256x8xf32>
    %19 = tpu.matmul %16, %18, %cst_12 {dimension_numbers = #tpu.dot_dimension_numbers<[1], [0], [0], [1], [0, 0, 1, 1], [], []>} : vector<256x16xbf16>, vector<16x8xbf16>, vector<256x8xf32> -> vector<256x8xf32>
    %20 = arith.addf %11, %19 : vector<256x8xf32>
    %c0_i32_13 = arith.constant 0 : i32
    %21 = arith.addi %1, %c0_i32_13 : i32
    %c0_14 = arith.constant 0 : index
    %22 = arith.index_cast %21 : i32 to index
    %c2 = arith.constant 2 : index
    %c0_15 = arith.constant 0 : index
    %23 = vector.load %arg2[%c0_14, %22, %c2, %c0_15] : memref<1x24x24x16xbf16, #tpu.memory_space<vmem>>, vector<1x16x16x16xbf16>
    %24 = vector.shape_cast %23 : vector<1x16x16x16xbf16> to vector<16x16x16xbf16>
    %25 = vector.shape_cast %24 : vector<16x16x16xbf16> to vector<256x16xbf16>
    %c2_16 = arith.constant 2 : index
    %c0_17 = arith.constant 0 : index
    %c0_18 = arith.constant 0 : index
    %26 = vector.load %arg3[%c2_16, %c0_17, %c0_18] : memref<9x16x8xbf16, #tpu.memory_space<vmem>>, vector<1x16x8xbf16>
    %27 = vector.shape_cast %26 : vector<1x16x8xbf16> to vector<16x8xbf16>
    %cst_19 = arith.constant dense<0.000000e+00> : vector<256x8xf32>
    %28 = tpu.matmul %25, %27, %cst_19 {dimension_numbers = #tpu.dot_dimension_numbers<[1], [0], [0], [1], [0, 0, 1, 1], [], []>} : vector<256x16xbf16>, vector<16x8xbf16>, vector<256x8xf32> -> vector<256x8xf32>
    %29 = arith.addf %20, %28 : vector<256x8xf32>
    %c1_i32 = arith.constant 1 : i32
    %30 = arith.addi %1, %c1_i32 : i32
    %c0_20 = arith.constant 0 : index
    %31 = arith.index_cast %30 : i32 to index
    %c0_21 = arith.constant 0 : index
    %c0_22 = arith.constant 0 : index
    %32 = vector.load %arg2[%c0_20, %31, %c0_21, %c0_22] : memref<1x24x24x16xbf16, #tpu.memory_space<vmem>>, vector<1x16x16x16xbf16>
    %33 = vector.shape_cast %32 : vector<1x16x16x16xbf16> to vector<16x16x16xbf16>
    %34 = vector.shape_cast %33 : vector<16x16x16xbf16> to vector<256x16xbf16>
    %c3 = arith.constant 3 : index
    %c0_23 = arith.constant 0 : index
    %c0_24 = arith.constant 0 : index
    %35 = vector.load %arg3[%c3, %c0_23, %c0_24] : memref<9x16x8xbf16, #tpu.memory_space<vmem>>, vector<1x16x8xbf16>
    %36 = vector.shape_cast %35 : vector<1x16x8xbf16> to vector<16x8xbf16>
    %cst_25 = arith.constant dense<0.000000e+00> : vector<256x8xf32>
    %37 = tpu.matmul %34, %36, %cst_25 {dimension_numbers = #tpu.dot_dimension_numbers<[1], [0], [0], [1], [0, 0, 1, 1], [], []>} : vector<256x16xbf16>, vector<16x8xbf16>, vector<256x8xf32> -> vector<256x8xf32>
    %38 = arith.addf %29, %37 : vector<256x8xf32>
    %c1_i32_26 = arith.constant 1 : i32
    %39 = arith.addi %1, %c1_i32_26 : i32
    %c0_27 = arith.constant 0 : index
    %40 = arith.index_cast %39 : i32 to index
    %c1_28 = arith.constant 1 : index
    %c0_29 = arith.constant 0 : index
    %41 = vector.load %arg2[%c0_27, %40, %c1_28, %c0_29] : memref<1x24x24x16xbf16, #tpu.memory_space<vmem>>, vector<1x16x16x16xbf16>
    %42 = vector.shape_cast %41 : vector<1x16x16x16xbf16> to vector<16x16x16xbf16>
    %43 = vector.shape_cast %42 : vector<16x16x16xbf16> to vector<256x16xbf16>
    %c4 = arith.constant 4 : index
    %c0_30 = arith.constant 0 : index
    %c0_31 = arith.constant 0 : index
    %44 = vector.load %arg3[%c4, %c0_30, %c0_31] : memref<9x16x8xbf16, #tpu.memory_space<vmem>>, vector<1x16x8xbf16>
    %45 = vector.shape_cast %44 : vector<1x16x8xbf16> to vector<16x8xbf16>
    %cst_32 = arith.constant dense<0.000000e+00> : vector<256x8xf32>
    %46 = tpu.matmul %43, %45, %cst_32 {dimension_numbers = #tpu.dot_dimension_numbers<[1], [0], [0], [1], [0, 0, 1, 1], [], []>} : vector<256x16xbf16>, vector<16x8xbf16>, vector<256x8xf32> -> vector<256x8xf32>
    %47 = arith.addf %38, %46 : vector<256x8xf32>
    %c1_i32_33 = arith.constant 1 : i32
    %48 = arith.addi %1, %c1_i32_33 : i32
    %c0_34 = arith.constant 0 : index
    %49 = arith.index_cast %48 : i32 to index
    %c2_35 = arith.constant 2 : index
    %c0_36 = arith.constant 0 : index
    %50 = vector.load %arg2[%c0_34, %49, %c2_35, %c0_36] : memref<1x24x24x16xbf16, #tpu.memory_space<vmem>>, vector<1x16x16x16xbf16>
    %51 = vector.shape_cast %50 : vector<1x16x16x16xbf16> to vector<16x16x16xbf16>
    %52 = vector.shape_cast %51 : vector<16x16x16xbf16> to vector<256x16xbf16>
    %c5 = arith.constant 5 : index
    %c0_37 = arith.constant 0 : index
    %c0_38 = arith.constant 0 : index
    %53 = vector.load %arg3[%c5, %c0_37, %c0_38] : memref<9x16x8xbf16, #tpu.memory_space<vmem>>, vector<1x16x8xbf16>
    %54 = vector.shape_cast %53 : vector<1x16x8xbf16> to vector<16x8xbf16>
    %cst_39 = arith.constant dense<0.000000e+00> : vector<256x8xf32>
    %55 = tpu.matmul %52, %54, %cst_39 {dimension_numbers = #tpu.dot_dimension_numbers<[1], [0], [0], [1], [0, 0, 1, 1], [], []>} : vector<256x16xbf16>, vector<16x8xbf16>, vector<256x8xf32> -> vector<256x8xf32>
    %56 = arith.addf %47, %55 : vector<256x8xf32>
    %c2_i32 = arith.constant 2 : i32
    %57 = arith.addi %1, %c2_i32 : i32
    %c0_40 = arith.constant 0 : index
    %58 = arith.index_cast %57 : i32 to index
    %c0_41 = arith.constant 0 : index
    %c0_42 = arith.constant 0 : index
    %59 = vector.load %arg2[%c0_40, %58, %c0_41, %c0_42] : memref<1x24x24x16xbf16, #tpu.memory_space<vmem>>, vector<1x16x16x16xbf16>
    %60 = vector.shape_cast %59 : vector<1x16x16x16xbf16> to vector<16x16x16xbf16>
    %61 = vector.shape_cast %60 : vector<16x16x16xbf16> to vector<256x16xbf16>
    %c6 = arith.constant 6 : index
    %c0_43 = arith.constant 0 : index
    %c0_44 = arith.constant 0 : index
    %62 = vector.load %arg3[%c6, %c0_43, %c0_44] : memref<9x16x8xbf16, #tpu.memory_space<vmem>>, vector<1x16x8xbf16>
    %63 = vector.shape_cast %62 : vector<1x16x8xbf16> to vector<16x8xbf16>
    %cst_45 = arith.constant dense<0.000000e+00> : vector<256x8xf32>
    %64 = tpu.matmul %61, %63, %cst_45 {dimension_numbers = #tpu.dot_dimension_numbers<[1], [0], [0], [1], [0, 0, 1, 1], [], []>} : vector<256x16xbf16>, vector<16x8xbf16>, vector<256x8xf32> -> vector<256x8xf32>
    %65 = arith.addf %56, %64 : vector<256x8xf32>
    %c2_i32_46 = arith.constant 2 : i32
    %66 = arith.addi %1, %c2_i32_46 : i32
    %c0_47 = arith.constant 0 : index
    %67 = arith.index_cast %66 : i32 to index
    %c1_48 = arith.constant 1 : index
    %c0_49 = arith.constant 0 : index
    %68 = vector.load %arg2[%c0_47, %67, %c1_48, %c0_49] : memref<1x24x24x16xbf16, #tpu.memory_space<vmem>>, vector<1x16x16x16xbf16>
    %69 = vector.shape_cast %68 : vector<1x16x16x16xbf16> to vector<16x16x16xbf16>
    %70 = vector.shape_cast %69 : vector<16x16x16xbf16> to vector<256x16xbf16>
    %c7 = arith.constant 7 : index
    %c0_50 = arith.constant 0 : index
    %c0_51 = arith.constant 0 : index
    %71 = vector.load %arg3[%c7, %c0_50, %c0_51] : memref<9x16x8xbf16, #tpu.memory_space<vmem>>, vector<1x16x8xbf16>
    %72 = vector.shape_cast %71 : vector<1x16x8xbf16> to vector<16x8xbf16>
    %cst_52 = arith.constant dense<0.000000e+00> : vector<256x8xf32>
    %73 = tpu.matmul %70, %72, %cst_52 {dimension_numbers = #tpu.dot_dimension_numbers<[1], [0], [0], [1], [0, 0, 1, 1], [], []>} : vector<256x16xbf16>, vector<16x8xbf16>, vector<256x8xf32> -> vector<256x8xf32>
    %74 = arith.addf %65, %73 : vector<256x8xf32>
    %c2_i32_53 = arith.constant 2 : i32
    %75 = arith.addi %1, %c2_i32_53 : i32
    %c0_54 = arith.constant 0 : index
    %76 = arith.index_cast %75 : i32 to index
    %c2_55 = arith.constant 2 : index
    %c0_56 = arith.constant 0 : index
    %77 = vector.load %arg2[%c0_54, %76, %c2_55, %c0_56] : memref<1x24x24x16xbf16, #tpu.memory_space<vmem>>, vector<1x16x16x16xbf16>
    %78 = vector.shape_cast %77 : vector<1x16x16x16xbf16> to vector<16x16x16xbf16>
    %79 = vector.shape_cast %78 : vector<16x16x16xbf16> to vector<256x16xbf16>
    %c8 = arith.constant 8 : index
    %c0_57 = arith.constant 0 : index
    %c0_58 = arith.constant 0 : index
    %80 = vector.load %arg3[%c8, %c0_57, %c0_58] : memref<9x16x8xbf16, #tpu.memory_space<vmem>>, vector<1x16x8xbf16>
    %81 = vector.shape_cast %80 : vector<1x16x8xbf16> to vector<16x8xbf16>
    %cst_59 = arith.constant dense<0.000000e+00> : vector<256x8xf32>
    %82 = tpu.matmul %79, %81, %cst_59 {dimension_numbers = #tpu.dot_dimension_numbers<[1], [0], [0], [1], [0, 0, 1, 1], [], []>} : vector<256x16xbf16>, vector<16x8xbf16>, vector<256x8xf32> -> vector<256x8xf32>
    %83 = arith.addf %74, %82 : vector<256x8xf32>
    %c0_60 = arith.constant 0 : index
    %c0_61 = arith.constant 0 : index
    %84 = vector.load %arg4[%c0_60, %c0_61] : memref<1x8xf32, #tpu.memory_space<vmem>>, vector<1x8xf32>
    %85 = vector.broadcast %84 : vector<1x8xf32> to vector<256x8xf32>
    %86 = arith.addf %83, %85 : vector<256x8xf32>
    %cst_62 = arith.constant 0.000000e+00 : f32
    %87 = vector.broadcast %cst_62 : f32 to vector<256x8xf32>
    %88 = arith.maximumf %86, %87 : vector<256x8xf32>
    %89 = vector.shape_cast %88 : vector<256x8xf32> to vector<16x16x8xf32>
    %90 = arith.truncf %89 : vector<16x16x8xf32> to vector<16x16x8xbf16>
    %c0_63 = arith.constant 0 : index
    %c0_64 = arith.constant 0 : index
    %c0_65 = arith.constant 0 : index
    %c0_66 = arith.constant 0 : index
    %91 = vector.load %arg5[%c0_63, %c0_64, %c0_65, %c0_66] : memref<1x16x16x8xbf16, #tpu.memory_space<vmem>>, vector<1x16x16x8xbf16>
    %92 = vector.shape_cast %91 : vector<1x16x16x8xbf16> to vector<16x16x8xbf16>
    %93 = vector.shape_cast %90 : vector<16x16x8xbf16> to vector<1x16x16x8xbf16>
    tpu.vector_store %arg5[%c0_63, %c0_64, %c0_65, %c0_66], %93 {strides = array<i32>} : memref<1x16x16x8xbf16, #tpu.memory_space<vmem>>, vector<1x16x16x8xbf16>,
    return
  }
  func.func @transform_0(%arg0: i32, %arg1: i32) -> (i32, i32, i32, i32) {
    %c0_i32 = arith.constant 0 : i32
    %c0_i32_0 = arith.constant 0 : i32
    %c0_i32_1 = arith.constant 0 : i32
    %c0_i32_2 = arith.constant 0 : i32
    return %arg0, %c0_i32, %c0_i32_0, %c0_i32_1 : i32, i32, i32, i32
  }
  func.func @transform_1(%arg0: i32, %arg1: i32) -> (i32, i32, i32) {
    %c0_i32 = arith.constant 0 : i32
    %c0_i32_0 = arith.constant 0 : i32
    %c0_i32_1 = arith.constant 0 : i32
    %c0_i32_2 = arith.constant 0 : i32
    return %c0_i32, %c0_i32_0, %c0_i32_1 : i32, i32, i32
  }
  func.func @transform_2(%arg0: i32, %arg1: i32) -> (i32, i32) {
    %c0_i32 = arith.constant 0 : i32
    %c0_i32_0 = arith.constant 0 : i32
    %c0_i32_1 = arith.constant 0 : i32
    return %c0_i32, %c0_i32_0 : i32, i32
  }
  func.func @transform_3(%arg0: i32, %arg1: i32) -> (i32, i32, i32, i32) {
    %c0_i32 = arith.constant 0 : i32
    %c0_i32_0 = arith.constant 0 : i32
    %c0_i32_1 = arith.constant 0 : i32
    return %arg0, %arg1, %c0_i32, %c0_i32_0 : i32, i32, i32, i32
  }
}

</mosaic_0001>

<llo_original>
// kernel: tpu_custom_call.1
$region0: #{tpu_custom_call.1}
  #allocation0 [shape = 'u32[]', space=smem, size = 0x4, offset = 0x4, fixed_abs, tag = 'smem constant byte address 0x4 - core index']
  #allocation1 [shape = 'u32[144,128]{1,0:T(1,128)}', space=vmem, size = 0x12000, scoped, tag = 'internal scratch']
  %s0 = inlined_call_operand.vmem [shape: bf16[2,24,24,16], index: 0, kind: input, shape index: {}]
  %s1 = inlined_call_operand.vmem [shape: bf16[9,16,8], index: 1, kind: input, shape index: {}]
  %s2 = inlined_call_operand.vmem [shape: f32[1,8], index: 2, kind: input, shape index: {}]
  %s3 = inlined_call_operand.vmem [shape: bf16[2,16,16,8], index: 3, kind: output, shape index: {}]
  %s4 = sld [smem:[#allocation0]]
  $region45: #{tpu_custom_call.1} parent=0
    _
  %s6 = ssub.s32 1, %s4
  %s7 = scalar_select 0, %s6, %s4
  loop: start=0, step=1, limit=4
  $region2: #{tpu_custom_call.1} parent=0 // loop_pre_header
    _
  $region3: #{tpu_custom_call.1} parent=0 // loop_header
    %s9 = sphi 0, %s13
    %p10 = scmp.ge.s32.totalorder %s9, 4
    %s16 = sphi 0, %s28
    %s17 = sphi 0, %s24
    %s18 = sphi 0, %s16
    %s19 = sphi 0, %s17
    %s20 = sphi 0, %s18
    %s21 = sphi 0, %s19
    %s31 = sphi 0, %s33
    %s34 = sphi 0, %s31
    %s35 = sphi 0, %s34
    %s51 = sphi 0, %s35
    %s55 = sphi 0, %s55
    %s57 = sphi 0, %s55
    %s58 = sphi 0, %s57
    %s72 = sphi 0, %s58
    %s76 = sphi 0, %s76
    %s78 = sphi 0, %s76
    %s79 = sphi 0, %s78
    %s93 = sphi 0, %s79
    %s101 = sphi 0, %s103
    %s104 = sphi 0, %s101
    %s105 = sphi 0, %s104
    %s121 = sphi 0, %s105
  $region4: #{tpu_custom_call.1} parent=0 // loop_header_branch
    %12 = sbr.rel (%p10) target = $region8
  $region5: #{tpu_custom_call.1} parent=0 // loop_body
    %s14 = ssub.s32 %s9, 1
    %s15 = ssub.s32 %s9, 2
    %s22 = sadd.s32 1, %s17
    %p23 = scmp.ge.s32.totalorder %s22, 1
    %s24 = scalar_select %p23, 0, %s22
    %s25 = sadd.s32 1, %s16
    %s26 = scalar_select %p23, %s25, %s16
    %p27 = scmp.ge.s32.totalorder %s26, 2
    %s28 = scalar_select %p27, 0, %s26
    %s29 = ssub.s32 %s16, %s28
    %p30 = scmp.eq.s32.totalorder %s29, 0
    %s32 = sadd.s32 %s31, 1
    %s33 = scalar_select %p30, %s31, %s32
    %p36 = pneg %p30
    %p37 = scmp.eq.s32.totalorder %s9, 1
    %p38 = por %p36, %p37
    %p39 = scmp.ne.s32.totalorder %s31, %s34
    %p40 = scmp.eq.s32.totalorder %s9, 0
    %p41 = por %p39, %p40
    %p42 = scmp.ne.s32.totalorder %s31, %s34
    %p43 = scmp.eq.s32.totalorder %s14, 1
    %p44 = por %p42, %p43
    %p45 = scmp.ne.s32.totalorder %s34, %s35
    %p46 = scmp.eq.s32.totalorder %s14, 0
    %p47 = por %p45, %p46
    %p48 = scmp.ne.s32.totalorder %s34, %s35
    %p49 = scmp.eq.s32.totalorder %s15, 1
    %p50 = por %p48, %p49
    %p52 = scmp.ne.s32.totalorder %s35, %s51
    %p53 = scmp.eq.s32.totalorder %s15, 0
    %p54 = por %p52, %p53
    %s56 = sadd.s32 %s55, 1
    %p59 = scmp.eq.s32.totalorder %s9, 1
    %p60 = scmp.ne.s32.totalorder %s55, %s57
    %p61 = scmp.eq.s32.totalorder %s9, 0
    %p62 = por %p60, %p61
    %p63 = scmp.ne.s32.totalorder %s55, %s57
    %p64 = scmp.eq.s32.totalorder %s14, 1
    %p65 = por %p63, %p64
    %p66 = scmp.ne.s32.totalorder %s57, %s58
    %p67 = scmp.eq.s32.totalorder %s14, 0
    %p68 = por %p66, %p67
    %p69 = scmp.ne.s32.totalorder %s57, %s58
    %p70 = scmp.eq.s32.totalorder %s15, 1
    %p71 = por %p69, %p70
    %p73 = scmp.ne.s32.totalorder %s58, %s72
    %p74 = scmp.eq.s32.totalorder %s15, 0
    %p75 = por %p73, %p74
    %s77 = sadd.s32 %s76, 1
    %p80 = scmp.eq.s32.totalorder %s9, 1
    %p81 = scmp.ne.s32.totalorder %s76, %s78
    %p82 = scmp.eq.s32.totalorder %s9, 0
    %p83 = por %p81, %p82
    %p84 = scmp.ne.s32.totalorder %s76, %s78
    %p85 = scmp.eq.s32.totalorder %s14, 1
    %p86 = por %p84, %p85
    %p87 = scmp.ne.s32.totalorder %s78, %s79
    %p88 = scmp.eq.s32.totalorder %s14, 0
    %p89 = por %p87, %p88
    %p90 = scmp.ne.s32.totalorder %s78, %s79
    %p91 = scmp.eq.s32.totalorder %s15, 1
    %p92 = por %p90, %p91
    %p94 = scmp.ne.s32.totalorder %s79, %s93
    %p95 = scmp.eq.s32.totalorder %s15, 0
    %p96 = por %p94, %p95
    %s97 = ssub.s32 %s16, %s28
    %s98 = ssub.s32 %s17, %s24
    %s99 = sor.u32 %s97, %s98
    %p100 = scmp.eq.s32.totalorder %s99, 0
    %s102 = sadd.s32 %s101, 1
    %s103 = scalar_select %p100, %s101, %s102
    %p106 = pneg %p100
    %p107 = scmp.eq.s32.totalorder %s9, 1
    %p108 = por %p106, %p107
    %p109 = scmp.ne.s32.totalorder %s101, %s104
    %p110 = scmp.eq.s32.totalorder %s9, 0
    %p111 = por %p109, %p110
    %p112 = scmp.ne.s32.totalorder %s101, %s104
    %p113 = scmp.eq.s32.totalorder %s14, 1
    %p114 = por %p112, %p113
    %p115 = scmp.ne.s32.totalorder %s104, %s105
    %p116 = scmp.eq.s32.totalorder %s14, 0
    %p117 = por %p115, %p116
    %p118 = scmp.ne.s32.totalorder %s104, %s105
    %p119 = scmp.eq.s32.totalorder %s15, 1
    %p120 = por %p118, %p119
    %p122 = scmp.ne.s32.totalorder %s105, %s121
    %p123 = scmp.eq.s32.totalorder %s15, 0
    %p124 = por %p122, %p123
    %p125 = scmp.le.s32.totalorder 1, %s9
    %p126 = scmp.lt.s32.totalorder %s9, 3
    %p127 = pnand %p125, %p126
    %p128 = pneg %p127
    // Predicated region
    $region9: #{tpu_custom_call.1} parent=5 // pred_check
      _
    $region10: #{tpu_custom_call.1} parent=5 // pred_check_branch
      %130 = sbr.rel (%p127) target = $region12
    $region11: #{tpu_custom_call.1} parent=5 // pred_region
      %s131 = ssub.s32 %s9, 1
      // Predicated region
      $region13: #{tpu_custom_call.1} parent=11 // pred_check
        %p132 = pneg %p68
      $region14: #{tpu_custom_call.1} parent=11 // pred_check_branch
        %134 = sbr.rel (%p132) target = $region16
      $region15: #{tpu_custom_call.1} parent=11 // pred_region
        _
      $region16: #{tpu_custom_call.1} parent=11 // pred_fallthru
        _
      // Predicated region
      $region17: #{tpu_custom_call.1} parent=11 // pred_check
        %p135 = pneg %p89
      $region18: #{tpu_custom_call.1} parent=11 // pred_check_branch
        %137 = sbr.rel (%p135) target = $region20
      $region19: #{tpu_custom_call.1} parent=11 // pred_region
        _
      $region20: #{tpu_custom_call.1} parent=11 // pred_fallthru
        _
    $region12: #{tpu_custom_call.1} parent=5 // pred_fallthru
      _
    %p138 = scmp.lt.s32.totalorder %s9, 2
    // Predicated region
    $region21: #{tpu_custom_call.1} parent=5 // pred_check
      %p139 = pneg %p138
    $region22: #{tpu_custom_call.1} parent=5 // pred_check_branch
      %141 = sbr.rel (%p139) target = $region24
    $region23: #{tpu_custom_call.1} parent=5 // pred_region
      // Predicated region
      $region25: #{tpu_custom_call.1} parent=23 // pred_check
        %p142 = pneg %p41
      $region26: #{tpu_custom_call.1} parent=23 // pred_check_branch
        %144 = sbr.rel (%p142) target = $region28
      $region27: #{tpu_custom_call.1} parent=23 // pred_region
        %p145 = scmp.lt.s32.totalorder %s16, 1
        %s146 = scalar_select %p145, %s16, 1
        %s147 = smul.addr %s146, 72
        %s148 = smul.addr %s147, 4
        %s149 = scalar_lea.vmem %s0, %s148
      $region28: #{tpu_custom_call.1} parent=23 // pred_fallthru
        _
    $region24: #{tpu_custom_call.1} parent=5 // pred_fallthru
      _
    %p150 = scmp.le.s32.totalorder 1, %s9
    %p151 = scmp.lt.s32.totalorder %s9, 3
    %p152 = pnand %p150, %p151
    %p153 = pneg %p152
    // Predicated region
    $region29: #{tpu_custom_call.1} parent=5 // pred_check
      _
    $region30: #{tpu_custom_call.1} parent=5 // pred_check_branch
      %155 = sbr.rel (%p152) target = $region32
    $region31: #{tpu_custom_call.1} parent=5 // pred_region
      %s156 = ssub.s32 %s9, 1
      %p157 = scmp.lt.s32.totalorder %s18, 1
      %s158 = scalar_select %p157, %s18, 1
      %s159 = smul.addr %s158, 72
      %s160 = smul.addr %s159, 4
      %s161 = scalar_lea.vmem %s0, %s160
      %p162 = pneg %p47
      %p163 = pneg %p44
      %p164 = pneg %p68
      %p165 = pneg %p65
      %p166 = pneg %p89
      %p167 = pneg %p86
      %p168 = pneg %p117
      %p169 = pneg %p114
      %s170 = smul.u32 16, %s19
      %p171 = scmp.lt.s32.totalorder %s18, 1
      %s172 = scalar_select %p171, %s18, 1
      %p173 = scmp.lt.s32.totalorder %s170, 15
      %s174 = scalar_select %p173, %s170, 15
      %s175 = smul.addr %s174, 2
      %s176 = smul.addr %s172, 32
      %s177 = sadd.s32 %s175, %s176
      %s178 = smul.addr %s177, 4
      %s179 = scalar_lea.vmem %s3, %s178
      %p180 = scmp.lt.s32.totalorder %s18, 1
      %s181 = scalar_select %p180, %s18, 1
      %s182 = smul.addr %s181, 72
      %s183 = smul.addr %s182, 4
      %s184 = scalar_lea.vmem %s0, %s183
      %s185 = smul.u32 16, %s19
      %p186 = scmp.lt.s32.totalorder %s18, 1
      %s187 = scalar_select %p186, %s18, 1
      %p188 = scmp.lt.s32.totalorder %s185, 15
      %s189 = scalar_select %p188, %s185, 15
      %s190 = smul.addr %s189, 2
      %s191 = smul.addr %s187, 32
      %s192 = sadd.s32 %s190, %s191
      %s193 = smul.addr %s192, 4
      %s194 = scalar_lea.vmem %s3, %s193
      %s195 = smul.u32 16, %s19
      %s197 = smul.u32 %s19, 16
      %s198 = smul.u32 %s197, 3
      %s199 = smul.addr %s198, 4
      %s200 = scalar_lea.vmem %s184, %s199
      %v201 = vld [vmem:[%s200] sm:$0xf]
      %v202 = vld [vmem:[%s200 + $0x4] sm:$0xf]
      %v203 = vld [vmem:[%s200 + $0xc] sm:$0xf]
      %v204 = vld [vmem:[%s200 + $0x10] sm:$0xf]
      %v205 = vld [vmem:[%s200 + $0x18] sm:$0xf]
      %v206 = vld [vmem:[%s200 + $0x1c] sm:$0xf]
      %v207 = vld [vmem:[%s200 + $0x24] sm:$0xf]
      %v208 = vld [vmem:[%s200 + $0x28] sm:$0xf]
      %v209 = vld [vmem:[%s200 + $0x30] sm:$0xf]
      %v210 = vld [vmem:[%s200 + $0x34] sm:$0xf]
      %v211 = vld [vmem:[%s200 + $0x3c] sm:$0xf]
      %v212 = vld [vmem:[%s200 + $0x40] sm:$0xf]
      %v213 = vld [vmem:[%s200 + $0x48] sm:$0xf]
      %v214 = vld [vmem:[%s200 + $0x4c] sm:$0xf]
      %v215 = vld [vmem:[%s200 + $0x54] sm:$0xf]
      %v216 = vld [vmem:[%s200 + $0x58] sm:$0xf]
      %v217 = vld [vmem:[%s200 + $0x60] sm:$0xf]
      %v218 = vld [vmem:[%s200 + $0x64] sm:$0xf]
      %v219 = vld [vmem:[%s200 + $0x6c] sm:$0xf]
      %v220 = vld [vmem:[%s200 + $0x70] sm:$0xf]
      %v221 = vld [vmem:[%s200 + $0x78] sm:$0xf]
      %v222 = vld [vmem:[%s200 + $0x7c] sm:$0xf]
      %v223 = vld [vmem:[%s200 + $0x84] sm:$0xf]
      %v224 = vld [vmem:[%s200 + $0x88] sm:$0xf]
      %v225 = vld [vmem:[%s200 + $0x90] sm:$0xf]
      %v226 = vld [vmem:[%s200 + $0x94] sm:$0xf]
      %v227 = vld [vmem:[%s200 + $0x9c] sm:$0xf]
      %v228 = vld [vmem:[%s200 + $0xa0] sm:$0xf]
      %v229 = vld [vmem:[%s200 + $0xa8] sm:$0xf]
      %v230 = vld [vmem:[%s200 + $0xac] sm:$0xf]
      %v231 = vld [vmem:[%s200 + $0xb4] sm:$0xf]
      %v232 = vld [vmem:[%s200 + $0xb8] sm:$0xf]
      %v233 = vld [vmem:[%s1] sm:$0xf]
      %v234 = vld [vmem:[%s1 + $0x4] sm:$0xf]
      %v235 = vld [vmem:[%s200 + $0x8] sm:$0x1]
      %v236 = vld [vmem:[%s200 + $0x14] sm:$0x1]
      %v237 = vld [vmem:[%s200 + $0x20] sm:$0x1]
      %v238 = vld [vmem:[%s200 + $0x2c] sm:$0x1]
      %v239 = vld [vmem:[%s200 + $0x38] sm:$0x1]
      %v240 = vld [vmem:[%s200 + $0x44] sm:$0x1]
      %v241 = vld [vmem:[%s200 + $0x50] sm:$0x1]
      %v242 = vld [vmem:[%s200 + $0x5c] sm:$0x1]
      %v243 = vld [vmem:[%s200 + $0x68] sm:$0x1]
      %v244 = vld [vmem:[%s200 + $0x74] sm:$0x1]
      %v245 = vld [vmem:[%s200 + $0x80] sm:$0x1]
      %v246 = vld [vmem:[%s200 + $0x8c] sm:$0x1]
      %v247 = vld [vmem:[%s200 + $0x98] sm:$0x1]
      %v248 = vld [vmem:[%s200 + $0xa4] sm:$0x1]
      %v249 = vld [vmem:[%s200 + $0xb0] sm:$0x1]
      %v250 = vld [vmem:[%s200 + $0xbc] sm:$0x1]
      %vm251 = vsmask.f32 3328
      %vm252 = vsmask.f32 7440
      %vm253 = vmor %vm251, %vm252
      %v255 = vshrl.u32 %v201, 16
      %v257 = vrot.slane %v255, 4
      %v258 = vshll.u32 %v201, 16
      %v260 = vrot.slane %v258, 5
      %v261 = vor.u32 %v257, %v260
      %v262 = vrot.slane %v261, 4
      %v264 = vshll.u32 %v202, 16
      %v266 = vrot.slane %v264, 5
      %v267 = vsel %vm253, %v262, %v266
      %v268 = vshrl.u32 %v202, 16
      %v270 = vrot.slane %v268, 4
      %v271 = vor.u32 %v270, %v266
      %v272 = vrot.slane %v271, 4
      %v274 = vshll.u32 %v235, 16
      %v276 = vrot.slane %v274, 5
      %v277 = vsel %vm253, %v272, %v276
      %v279 = vshrl.u32 %v203, 16
      %v281 = vrot.slane %v279, 4
      %v282 = vshll.u32 %v203, 16
      %v284 = vrot.slane %v282, 5
      %v285 = vor.u32 %v281, %v284
      %v286 = vrot.slane %v285, 4
      %v288 = vshll.u32 %v204, 16
      %v290 = vrot.slane %v288, 5
      %v291 = vsel %vm253, %v286, %v290
      %v292 = vshrl.u32 %v204, 16
      %v294 = vrot.slane %v292, 4
      %v295 = vor.u32 %v294, %v290
      %v296 = vrot.slane %v295, 4
      %v298 = vshll.u32 %v236, 16
      %v300 = vrot.slane %v298, 5
      %v301 = vsel %vm253, %v296, %v300
      %v303 = vshrl.u32 %v205, 16
      %v305 = vrot.slane %v303, 4
      %v306 = vshll.u32 %v205, 16
      %v308 = vrot.slane %v306, 5
      %v309 = vor.u32 %v305, %v308
      %v310 = vrot.slane %v309, 4
      %v312 = vshll.u32 %v206, 16
      %v314 = vrot.slane %v312, 5
      %v315 = vsel %vm253, %v310, %v314
      %v316 = vshrl.u32 %v206, 16
      %v318 = vrot.slane %v316, 4
      %v319 = vor.u32 %v318, %v314
      %v320 = vrot.slane %v319, 4
      %v322 = vshll.u32 %v237, 16
      %v324 = vrot.slane %v322, 5
      %v325 = vsel %vm253, %v320, %v324
      %v327 = vshrl.u32 %v207, 16
      %v329 = vrot.slane %v327, 4
      %v330 = vshll.u32 %v207, 16
      %v332 = vrot.slane %v330, 5
      %v333 = vor.u32 %v329, %v332
      %v334 = vrot.slane %v333, 4
      %v336 = vshll.u32 %v208, 16
      %v338 = vrot.slane %v336, 5
      %v339 = vsel %vm253, %v334, %v338
      %v340 = vshrl.u32 %v208, 16
      %v342 = vrot.slane %v340, 4
      %v343 = vor.u32 %v342, %v338
      %v344 = vrot.slane %v343, 4
      %v346 = vshll.u32 %v238, 16
      %v348 = vrot.slane %v346, 5
      %v349 = vsel %vm253, %v344, %v348
      %v351 = vshrl.u32 %v209, 16
      %v353 = vrot.slane %v351, 4
      %v354 = vshll.u32 %v209, 16
      %v356 = vrot.slane %v354, 5
      %v357 = vor.u32 %v353, %v356
      %v358 = vrot.slane %v357, 4
      %v360 = vshll.u32 %v210, 16
      %v362 = vrot.slane %v360, 5
      %v363 = vsel %vm253, %v358, %v362
      %v364 = vshrl.u32 %v210, 16
      %v366 = vrot.slane %v364, 4
      %v367 = vor.u32 %v366, %v362
      %v368 = vrot.slane %v367, 4
      %v370 = vshll.u32 %v239, 16
      %v372 = vrot.slane %v370, 5
      %v373 = vsel %vm253, %v368, %v372
      %v375 = vshrl.u32 %v211, 16
      %v377 = vrot.slane %v375, 4
      %v378 = vshll.u32 %v211, 16
      %v380 = vrot.slane %v378, 5
      %v381 = vor.u32 %v377, %v380
      %v382 = vrot.slane %v381, 4
      %v384 = vshll.u32 %v212, 16
      %v386 = vrot.slane %v384, 5
      %v387 = vsel %vm253, %v382, %v386
      %v388 = vshrl.u32 %v212, 16
      %v390 = vrot.slane %v388, 4
      %v391 = vor.u32 %v390, %v386
      %v392 = vrot.slane %v391, 4
      %v394 = vshll.u32 %v240, 16
      %v396 = vrot.slane %v394, 5
      %v397 = vsel %vm253, %v392, %v396
      %v399 = vshrl.u32 %v213, 16
      %v401 = vrot.slane %v399, 4
      %v402 = vshll.u32 %v213, 16
      %v404 = vrot.slane %v402, 5
      %v405 = vor.u32 %v401, %v404
      %v406 = vrot.slane %v405, 4
      %v408 = vshll.u32 %v214, 16
      %v410 = vrot.slane %v408, 5
      %v411 = vsel %vm253, %v406, %v410
      %v412 = vshrl.u32 %v214, 16
      %v414 = vrot.slane %v412, 4
      %v415 = vor.u32 %v414, %v410
      %v416 = vrot.slane %v415, 4
      %v418 = vshll.u32 %v241, 16
      %v420 = vrot.slane %v418, 5
      %v421 = vsel %vm253, %v416, %v420
      %v423 = vshrl.u32 %v215, 16
      %v425 = vrot.slane %v423, 4
      %v426 = vshll.u32 %v215, 16
      %v428 = vrot.slane %v426, 5
      %v429 = vor.u32 %v425, %v428
      %v430 = vrot.slane %v429, 4
      %v432 = vshll.u32 %v216, 16
      %v434 = vrot.slane %v432, 5
      %v435 = vsel %vm253, %v430, %v434
      %v436 = vshrl.u32 %v216, 16
      %v438 = vrot.slane %v436, 4
      %v439 = vor.u32 %v438, %v434
      %v440 = vrot.slane %v439, 4
      %v442 = vshll.u32 %v242, 16
      %v444 = vrot.slane %v442, 5
      %v445 = vsel %vm253, %v440, %v444
      %v447 = vshrl.u32 %v217, 16
      %v449 = vrot.slane %v447, 4
      %v450 = vshll.u32 %v217, 16
      %v452 = vrot.slane %v450, 5
      %v453 = vor.u32 %v449, %v452
      %v454 = vrot.slane %v453, 4
      %v456 = vshll.u32 %v218, 16
      %v458 = vrot.slane %v456, 5
      %v459 = vsel %vm253, %v454, %v458
      %v460 = vshrl.u32 %v218, 16
      %v462 = vrot.slane %v460, 4
      %v463 = vor.u32 %v462, %v458
      %v464 = vrot.slane %v463, 4
      %v466 = vshll.u32 %v243, 16
      %v468 = vrot.slane %v466, 5
      %v469 = vsel %vm253, %v464, %v468
      %v471 = vshrl.u32 %v219, 16
      %v473 = vrot.slane %v471, 4
      %v474 = vshll.u32 %v219, 16
      %v476 = vrot.slane %v474, 5
      %v477 = vor.u32 %v473, %v476
      %v478 = vrot.slane %v477, 4
      %v480 = vshll.u32 %v220, 16
      %v482 = vrot.slane %v480, 5
      %v483 = vsel %vm253, %v478, %v482
      %v484 = vshrl.u32 %v220, 16
      %v486 = vrot.slane %v484, 4
      %v487 = vor.u32 %v486, %v482
      %v488 = vrot.slane %v487, 4
      %v490 = vshll.u32 %v244, 16
      %v492 = vrot.slane %v490, 5
      %v493 = vsel %vm253, %v488, %v492
      %v495 = vshrl.u32 %v221, 16
      %v497 = vrot.slane %v495, 4
      %v498 = vshll.u32 %v221, 16
      %v500 = vrot.slane %v498, 5
      %v501 = vor.u32 %v497, %v500
      %v502 = vrot.slane %v501, 4
      %v504 = vshll.u32 %v222, 16
      %v506 = vrot.slane %v504, 5
      %v507 = vsel %vm253, %v502, %v506
      %v508 = vshrl.u32 %v222, 16
      %v510 = vrot.slane %v508, 4
      %v511 = vor.u32 %v510, %v506
      %v512 = vrot.slane %v511, 4
      %v514 = vshll.u32 %v245, 16
      %v516 = vrot.slane %v514, 5
      %v517 = vsel %vm253, %v512, %v516
      %v519 = vshrl.u32 %v223, 16
      %v521 = vrot.slane %v519, 4
      %v522 = vshll.u32 %v223, 16
      %v524 = vrot.slane %v522, 5
      %v525 = vor.u32 %v521, %v524
      %v526 = vrot.slane %v525, 4
      %v528 = vshll.u32 %v224, 16
      %v530 = vrot.slane %v528, 5
      %v531 = vsel %vm253, %v526, %v530
      %v532 = vshrl.u32 %v224, 16
      %v534 = vrot.slane %v532, 4
      %v535 = vor.u32 %v534, %v530
      %v536 = vrot.slane %v535, 4
      %v538 = vshll.u32 %v246, 16
      %v540 = vrot.slane %v538, 5
      %v541 = vsel %vm253, %v536, %v540
      %v543 = vshrl.u32 %v225, 16
      %v545 = vrot.slane %v543, 4
      %v546 = vshll.u32 %v225, 16
      %v548 = vrot.slane %v546, 5
      %v549 = vor.u32 %v545, %v548
      %v550 = vrot.slane %v549, 4
      %v552 = vshll.u32 %v226, 16
      %v554 = vrot.slane %v552, 5
      %v555 = vsel %vm253, %v550, %v554
      %v556 = vshrl.u32 %v226, 16
      %v558 = vrot.slane %v556, 4
      %v559 = vor.u32 %v558, %v554
      %v560 = vrot.slane %v559, 4
      %v562 = vshll.u32 %v247, 16
      %v564 = vrot.slane %v562, 5
      %v565 = vsel %vm253, %v560, %v564
      %v567 = vshrl.u32 %v227, 16
      %v569 = vrot.slane %v567, 4
      %v570 = vshll.u32 %v227, 16
      %v572 = vrot.slane %v570, 5
      %v573 = vor.u32 %v569, %v572
      %v574 = vrot.slane %v573, 4
      %v576 = vshll.u32 %v228, 16
      %v578 = vrot.slane %v576, 5
      %v579 = vsel %vm253, %v574, %v578
      %v580 = vshrl.u32 %v228, 16
      %v582 = vrot.slane %v580, 4
      %v583 = vor.u32 %v582, %v578
      %v584 = vrot.slane %v583, 4
      %v586 = vshll.u32 %v248, 16
      %v588 = vrot.slane %v586, 5
      %v589 = vsel %vm253, %v584, %v588
      %v591 = vshrl.u32 %v229, 16
      %v593 = vrot.slane %v591, 4
      %v594 = vshll.u32 %v229, 16
      %v596 = vrot.slane %v594, 5
      %v597 = vor.u32 %v593, %v596
      %v598 = vrot.slane %v597, 4
      %v600 = vshll.u32 %v230, 16
      %v602 = vrot.slane %v600, 5
      %v603 = vsel %vm253, %v598, %v602
      %v604 = vshrl.u32 %v230, 16
      %v606 = vrot.slane %v604, 4
      %v607 = vor.u32 %v606, %v602
      %v608 = vrot.slane %v607, 4
      %v610 = vshll.u32 %v249, 16
      %v612 = vrot.slane %v610, 5
      %v613 = vsel %vm253, %v608, %v612
      %v615 = vshrl.u32 %v231, 16
      %v617 = vrot.slane %v615, 4
      %v618 = vshll.u32 %v231, 16
      %v620 = vrot.slane %v618, 5
      %v621 = vor.u32 %v617, %v620
      %v622 = vrot.slane %v621, 4
      %v624 = vshll.u32 %v232, 16
      %v626 = vrot.slane %v624, 5
      %v627 = vsel %vm253, %v622, %v626
      %v628 = vshrl.u32 %v232, 16
      %v630 = vrot.slane %v628, 4
      %v631 = vor.u32 %v630, %v626
      %v632 = vrot.slane %v631, 4
      %v634 = vshll.u32 %v250, 16
      %v636 = vrot.slane %v634, 5
      %v637 = vsel %vm253, %v632, %v636
      %s638 = scalar_lea.vmem %s1, 8
      %v639 = vld [vmem:[%s638] sm:$0xf]
      %v640 = vld [vmem:[%s638 + $0x4] sm:$0xf]
      %v641 = vunpack.c.l.b16 %v267
      %v642 = vunpack.c.l.b16 %v277
      %v643 = vunpack.c.l.b16 %v291
      %v644 = vunpack.c.l.b16 %v301
      %v645 = vunpack.c.l.b16 %v315
      %v646 = vunpack.c.l.b16 %v325
      %v647 = vunpack.c.l.b16 %v339
      %v648 = vunpack.c.l.b16 %v349
      %v649 = vunpack.c.l.b16 %v363
      %v650 = vunpack.c.l.b16 %v373
      %v651 = vunpack.c.l.b16 %v387
      %v652 = vunpack.c.l.b16 %v397
      %v653 = vunpack.c.l.b16 %v411
      %v654 = vunpack.c.l.b16 %v421
      %v655 = vunpack.c.l.b16 %v435
      %v656 = vunpack.c.l.b16 %v445
      %v657 = vunpack.c.l.b16 %v459
      %v658 = vunpack.c.l.b16 %v469
      %v659 = vunpack.c.l.b16 %v483
      %v660 = vunpack.c.l.b16 %v493
      %v661 = vunpack.c.l.b16 %v507
      %v662 = vunpack.c.l.b16 %v517
      %v663 = vunpack.c.l.b16 %v531
      %v664 = vunpack.c.l.b16 %v541
      %v665 = vunpack.c.l.b16 %v555
      %v666 = vunpack.c.l.b16 %v565
      %v667 = vunpack.c.l.b16 %v579
      %v668 = vunpack.c.l.b16 %v589
      %v669 = vunpack.c.l.b16 %v603
      %v670 = vunpack.c.l.b16 %v613
      %v671 = vunpack.c.l.b16 %v627
      %v672 = vunpack.c.l.b16 %v637
      %v673 = vpack.c.b16 %v642, %v641
      %v674 = vpack.c.b16 %v644, %v643
      %v675 = vpack.c.b16 %v646, %v645
      %v676 = vpack.c.b16 %v648, %v647
      %v677 = vpack.c.b16 %v650, %v649
      %v678 = vpack.c.b16 %v652, %v651
      %v679 = vpack.c.b16 %v654, %v653
      %v680 = vpack.c.b16 %v656, %v655
      %v681 = vpack.c.b16 %v658, %v657
      %v682 = vpack.c.b16 %v660, %v659
      %v683 = vpack.c.b16 %v662, %v661
      %v684 = vpack.c.b16 %v664, %v663
      %v685 = vpack.c.b16 %v666, %v665
      %v686 = vpack.c.b16 %v668, %v667
      %v687 = vpack.c.b16 %v670, %v669
      %v688 = vpack.c.b16 %v672, %v671
      %v691 = vunpack.c.l.b16 %v639
      %v692 = vunpack.c.l.b16 %v640
      %v693 = vpack.c.b16 %v692, %v691
      %vm695 = vcmask 130048
      %v697 = vsel %vm695, %v673, 0
      %v700 = vsel %vm695, %v674, 0
      %v703 = vsel %vm695, %v675, 0
      %v706 = vsel %vm695, %v676, 0
      %v709 = vsel %vm695, %v677, 0
      %v712 = vsel %vm695, %v678, 0
      %v715 = vsel %vm695, %v679, 0
      %v718 = vsel %vm695, %v680, 0
      %v721 = vsel %vm695, %v681, 0
      %v724 = vsel %vm695, %v682, 0
      %v727 = vsel %vm695, %v683, 0
      %v730 = vsel %vm695, %v684, 0
      %v733 = vsel %vm695, %v685, 0
      %v736 = vsel %vm695, %v686, 0
      %v739 = vsel %vm695, %v687, 0
      %v742 = vsel %vm695, %v688, 0
      %744 = vmatprep.subr.bf16.mxu0 0
      %745 = vmatpush1.bf16.msra.mxu0 %v693
      %746 = vmatprep.subr.bf16.mxu0 0
      %747 = vmatpush1.bf16.msra.mxu0 0
      %748 = vmatprep.subr.bf16.mxu0 0
      %749 = vmatpush1.bf16.msra.mxu0 0
      %750 = vmatprep.subr.bf16.mxu0 0
      %751 = vmatpush1.bf16.msra.mxu0 0
      %752 = vmatprep.subr.bf16.mxu0 0
      %753 = vmatpush1.bf16.msra.mxu0 0
      %754 = vmatprep.subr.bf16.mxu0 0
      %755 = vmatpush1.bf16.msra.mxu0 0
      %756 = vmatprep.subr.bf16.mxu0 0
      %757 = vmatpush1.bf16.msra.mxu0 0
      %758 = vmatprep.subr.bf16.mxu0 0
      %759 = vmatpush1.bf16.msra.mxu0 0
      %760 = vmatprep.subr.bf16.mxu0 0
      %761 = vmatpush1.bf16.msra.mxu0 0
      %762 = vmatprep.subr.bf16.mxu0 0
      %763 = vmatpush1.bf16.msra.mxu0 0
      %764 = vmatprep.subr.bf16.mxu0 0
      %765 = vmatpush1.bf16.msra.mxu0 0
      %766 = vmatprep.subr.bf16.mxu0 0
      %767 = vmatpush1.bf16.msra.mxu0 0
      %768 = vmatprep.subr.bf16.mxu0 0
      %769 = vmatpush1.bf16.msra.mxu0 0
      %770 = vmatprep.subr.bf16.mxu0 0
      %771 = vmatpush1.bf16.msra.mxu0 0
      %772 = vmatprep.subr.bf16.mxu0 0
      %773 = vmatpush1.bf16.msra.mxu0 0
      %774 = vmatprep.subr.bf16.mxu0 0
      %775 = vmatpush1.bf16.msra.mxu0 0
      %776 = vmatprep.mubr.bf16.mxu0 0
      %777 = vmatmul.mubr.bf16.gmra.mrb[0].mxu0 %v697
      %v778 = vpop.f32.mrb[0].mxu0
      %v779 = vadd.f32 0.0, %v778
      %v780 = vpop.f32.mrb[0].mxu0
      %v781 = vpop.f32.mrb[0].mxu0
      %v782 = vadd.f32 0.0, %v781
      %v783 = vpop.f32.mrb[0].mxu0
      %784 = vmatprep.mubr.bf16.mxu0 0
      %785 = vmatmul.mubr.bf16.gmra.mrb[0].mxu0 %v700
      %v786 = vpop.f32.mrb[0].mxu0
      %v787 = vadd.f32 0.0, %v786
      %v788 = vpop.f32.mrb[0].mxu0
      %v789 = vpop.f32.mrb[0].mxu0
      %v790 = vadd.f32 0.0, %v789
      %v791 = vpop.f32.mrb[0].mxu0
      %792 = vmatprep.mubr.bf16.mxu0 0
      %793 = vmatmul.mubr.bf16.gmra.mrb[0].mxu0 %v703
      %v794 = vpop.f32.mrb[0].mxu0
      %v795 = vadd.f32 0.0, %v794
      %v796 = vpop.f32.mrb[0].mxu0
      %v797 = vpop.f32.mrb[0].mxu0
      %v798 = vadd.f32 0.0, %v797
      %v799 = vpop.f32.mrb[0].mxu0
      %800 = vmatprep.mubr.bf16.mxu0 0
      %801 = vmatmul.mubr.bf16.gmra.mrb[0].mxu0 %v706
      %v802 = vpop.f32.mrb[0].mxu0
      %v803 = vadd.f32 0.0, %v802
      %v804 = vpop.f32.mrb[0].mxu0
      %v805 = vpop.f32.mrb[0].mxu0
      %v806 = vadd.f32 0.0, %v805
      %v807 = vpop.f32.mrb[0].mxu0
      %808 = vmatprep.mubr.bf16.mxu0 0
      %809 = vmatmul.mubr.bf16.gmra.mrb[0].mxu0 %v709
      %v810 = vpop.f32.mrb[0].mxu0
      %v811 = vadd.f32 0.0, %v810
      %v812 = vpop.f32.mrb[0].mxu0
      %v813 = vpop.f32.mrb[0].mxu0
      %v814 = vadd.f32 0.0, %v813
      %v815 = vpop.f32.mrb[0].mxu0
      %816 = vmatprep.mubr.bf16.mxu0 0
      %817 = vmatmul.mubr.bf16.gmra.mrb[0].mxu0 %v712
      %v818 = vpop.f32.mrb[0].mxu0
      %v819 = vadd.f32 0.0, %v818
      %v820 = vpop.f32.mrb[0].mxu0
      %v821 = vpop.f32.mrb[0].mxu0
      %v822 = vadd.f32 0.0, %v821
      %v823 = vpop.f32.mrb[0].mxu0
      %824 = vmatprep.mubr.bf16.mxu0 0
      %825 = vmatmul.mubr.bf16.gmra.mrb[0].mxu0 %v715
      %v826 = vpop.f32.mrb[0].mxu0
      %v827 = vadd.f32 0.0, %v826
      %v828 = vpop.f32.mrb[0].mxu0
      %v829 = vpop.f32.mrb[0].mxu0
      %v830 = vadd.f32 0.0, %v829
      %v831 = vpop.f32.mrb[0].mxu0
      %832 = vmatprep.mubr.bf16.mxu0 0
      %833 = vmatmul.mubr.bf16.gmra.mrb[0].mxu0 %v718
      %v834 = vpop.f32.mrb[0].mxu0
      %v835 = vadd.f32 0.0, %v834
      %v836 = vpop.f32.mrb[0].mxu0
      %v837 = vpop.f32.mrb[0].mxu0
      %v838 = vadd.f32 0.0, %v837
      %v839 = vpop.f32.mrb[0].mxu0
      %840 = vmatprep.mubr.bf16.mxu0 0
      %841 = vmatmul.mubr.bf16.gmra.mrb[0].mxu0 %v721
      %v842 = vpop.f32.mrb[0].mxu0
      %v843 = vadd.f32 0.0, %v842
      %v844 = vpop.f32.mrb[0].mxu0
      %v845 = vpop.f32.mrb[0].mxu0
      %v846 = vadd.f32 0.0, %v845
      %v847 = vpop.f32.mrb[0].mxu0
      %848 = vmatprep.mubr.bf16.mxu0 0
      %849 = vmatmul.mubr.bf16.gmra.mrb[0].mxu0 %v724
      %v850 = vpop.f32.mrb[0].mxu0
      %v851 = vadd.f32 0.0, %v850
      %v852 = vpop.f32.mrb[0].mxu0
      %v853 = vpop.f32.mrb[0].mxu0
      %v854 = vadd.f32 0.0, %v853
      %v855 = vpop.f32.mrb[0].mxu0
      %856 = vmatprep.mubr.bf16.mxu0 0
      %857 = vmatmul.mubr.bf16.gmra.mrb[0].mxu0 %v727
      %v858 = vpop.f32.mrb[0].mxu0
      %v859 = vadd.f32 0.0, %v858
      %v860 = vpop.f32.mrb[0].mxu0
      %v861 = vpop.f32.mrb[0].mxu0
      %v862 = vadd.f32 0.0, %v861
      %v863 = vpop.f32.mrb[0].mxu0
      %864 = vmatprep.mubr.bf16.mxu0 0
      %865 = vmatmul.mubr.bf16.gmra.mrb[0].mxu0 %v730
      %v866 = vpop.f32.mrb[0].mxu0
      %v867 = vadd.f32 0.0, %v866
      %v868 = vpop.f32.mrb[0].mxu0
      %v869 = vpop.f32.mrb[0].mxu0
      %v870 = vadd.f32 0.0, %v869
      %v871 = vpop.f32.mrb[0].mxu0
      %872 = vmatprep.mubr.bf16.mxu0 0
      %873 = vmatmul.mubr.bf16.gmra.mrb[0].mxu0 %v733
      %v874 = vpop.f32.mrb[0].mxu0
      %v875 = vadd.f32 0.0, %v874
      %v876 = vpop.f32.mrb[0].mxu0
      %v877 = vpop.f32.mrb[0].mxu0
      %v878 = vadd.f32 0.0, %v877
      %v879 = vpop.f32.mrb[0].mxu0
      %880 = vmatprep.mubr.bf16.mxu0 0
      %881 = vmatmul.mubr.bf16.gmra.mrb[0].mxu0 %v736
      %v882 = vpop.f32.mrb[0].mxu0
      %v883 = vadd.f32 0.0, %v882
      %v884 = vpop.f32.mrb[0].mxu0
      %v885 = vpop.f32.mrb[0].mxu0
      %v886 = vadd.f32 0.0, %v885
      %v887 = vpop.f32.mrb[0].mxu0
      %888 = vmatprep.mubr.bf16.mxu0 0
      %889 = vmatmul.mubr.bf16.gmra.mrb[0].mxu0 %v739
      %v890 = vpop.f32.mrb[0].mxu0
      %v891 = vadd.f32 0.0, %v890
      %v892 = vpop.f32.mrb[0].mxu0
      %v893 = vpop.f32.mrb[0].mxu0
      %v894 = vadd.f32 0.0, %v893
      %v895 = vpop.f32.mrb[0].mxu0
      %896 = vmatprep.mubr.bf16.mxu0 0
      %897 = vmatmul.mubr.bf16.gmra.mrb[0].mxu0 %v742
      %v898 = vpop.f32.mrb[0].mxu0
      %v899 = vadd.f32 0.0, %v898
      %v900 = vpop.f32.mrb[0].mxu0
      %v901 = vpop.f32.mrb[0].mxu0
      %v902 = vadd.f32 0.0, %v901
      %v903 = vpop.f32.mrb[0].mxu0
      %904 = vdwg.mxu0
      %v937 = vunpack.c.l.b16 %v201
      %v938 = vunpack.c.l.b16 %v202
      %v939 = vunpack.c.l.b16 %v203
      %v940 = vunpack.c.l.b16 %v204
      %v941 = vunpack.c.l.b16 %v205
      %v942 = vunpack.c.l.b16 %v206
      %v943 = vunpack.c.l.b16 %v207
      %v944 = vunpack.c.l.b16 %v208
      %v945 = vunpack.c.l.b16 %v209
      %v946 = vunpack.c.l.b16 %v210
      %v947 = vunpack.c.l.b16 %v211
      %v948 = vunpack.c.l.b16 %v212
      %v949 = vunpack.c.l.b16 %v213
      %v950 = vunpack.c.l.b16 %v214
      %v951 = vunpack.c.l.b16 %v215
      %v952 = vunpack.c.l.b16 %v216
      %v953 = vunpack.c.l.b16 %v217
      %v954 = vunpack.c.l.b16 %v218
      %v955 = vunpack.c.l.b16 %v219
      %v956 = vunpack.c.l.b16 %v220
      %v957 = vunpack.c.l.b16 %v221
      %v958 = vunpack.c.l.b16 %v222
      %v959 = vunpack.c.l.b16 %v223
      %v960 = vunpack.c.l.b16 %v224
      %v961 = vunpack.c.l.b16 %v225
      %v962 = vunpack.c.l.b16 %v226
      %v963 = vunpack.c.l.b16 %v227
      %v964 = vunpack.c.l.b16 %v228
      %v965 = vunpack.c.l.b16 %v229
      %v966 = vunpack.c.l.b16 %v230
      %v967 = vunpack.c.l.b16 %v231
      %v968 = vunpack.c.l.b16 %v232
      %v969 = vpack.c.b16 %v938, %v937
      %v970 = vpack.c.b16 %v940, %v939
      %v971 = vpack.c.b16 %v942, %v941
      %v972 = vpack.c.b16 %v944, %v943
      %v973 = vpack.c.b16 %v946, %v945
      %v974 = vpack.c.b16 %v948, %v947
      %v975 = vpack.c.b16 %v950, %v949
      %v976 = vpack.c.b16 %v952, %v951
      %v977 = vpack.c.b16 %v954, %v953
      %v978 = vpack.c.b16 %v956, %v955
      %v979 = vpack.c.b16 %v958, %v957
      %v980 = vpack.c.b16 %v960, %v959
      %v981 = vpack.c.b16 %v962, %v961
      %v982 = vpack.c.b16 %v964, %v963
      %v983 = vpack.c.b16 %v966, %v965
      %v984 = vpack.c.b16 %v968, %v967
      %v987 = vunpack.c.l.b16 %v233
      %v988 = vunpack.c.l.b16 %v234
      %v989 = vpack.c.b16 %v988, %v987
      %v992 = vsel %vm695, %v969, 0
      %v995 = vsel %vm695, %v970, 0
      %v998 = vsel %vm695, %v971, 0
      %v1001 = vsel %vm695, %v972, 0
      %v1004 = vsel %vm695, %v973, 0
      %v1007 = vsel %vm695, %v974, 0
      %v1010 = vsel %vm695, %v975, 0
      %v1013 = vsel %vm695, %v976, 0
      %v1016 = vsel %vm695, %v977, 0
      %v1019 = vsel %vm695, %v978, 0
      %v1022 = vsel %vm695, %v979, 0
      %v1025 = vsel %vm695, %v980, 0
      %v1028 = vsel %vm695, %v981, 0
      %v1031 = vsel %vm695, %v982, 0
      %v1034 = vsel %vm695, %v983, 0
      %v1037 = vsel %vm695, %v984, 0
      %1039 = vmatprep.subr.bf16.mxu0 0
      %1040 = vmatpush1.bf16.msra.mxu0 %v989
      %1041 = vmatprep.subr.bf16.mxu0 0
      %1042 = vmatpush1.bf16.msra.mxu0 0
      %1043 = vmatprep.subr.bf16.mxu0 0
      %1044 = vmatpush1.bf16.msra.mxu0 0
      %1045 = vmatprep.subr.bf16.mxu0 0
      %1046 = vmatpush1.bf16.msra.mxu0 0
      %1047 = vmatprep.subr.bf16.mxu0 0
      %1048 = vmatpush1.bf16.msra.mxu0 0
      %1049 = vmatprep.subr.bf16.mxu0 0
      %1050 = vmatpush1.bf16.msra.mxu0 0
      %1051 = vmatprep.subr.bf16.mxu0 0
      %1052 = vmatpush1.bf16.msra.mxu0 0
      %1053 = vmatprep.subr.bf16.mxu0 0
      %1054 = vmatpush1.bf16.msra.mxu0 0
      %1055 = vmatprep.subr.bf16.mxu0 0
      %1056 = vmatpush1.bf16.msra.mxu0 0
      %1057 = vmatprep.subr.bf16.mxu0 0
      %1058 = vmatpush1.bf16.msra.mxu0 0
      %1059 = vmatprep.subr.bf16.mxu0 0
      %1060 = vmatpush1.bf16.msra.mxu0 0
      %1061 = vmatprep.subr.bf16.mxu0 0
      %1062 = vmatpush1.bf16.msra.mxu0 0
      %1063 = vmatprep.subr.bf16.mxu0 0
      %1064 = vmatpush1.bf16.msra.mxu0 0
      %1065 = vmatprep.subr.bf16.mxu0 0
      %1066 = vmatpush1.bf16.msra.mxu0 0
      %1067 = vmatprep.subr.bf16.mxu0 0
      %1068 = vmatpush1.bf16.msra.mxu0 0
      %1069 = vmatprep.subr.bf16.mxu0 0
      %1070 = vmatpush1.bf16.msra.mxu0 0
      %1071 = vmatprep.mubr.bf16.mxu0 0
      %1072 = vmatmul.mubr.bf16.gmra.mrb[0].mxu0 %v992
      %v1073 = vpop.f32.mrb[0].mxu0
      %v1074 = vadd.f32 %v779, %v1073
      %v1075 = vpop.f32.mrb[0].mxu0
      %v1076 = vpop.f32.mrb[0].mxu0
      %v1077 = vadd.f32 %v782, %v1076
      %v1078 = vpop.f32.mrb[0].mxu0
      %1079 = vmatprep.mubr.bf16.mxu0 0
      %1080 = vmatmul.mubr.bf16.gmra.mrb[0].mxu0 %v995
      %v1081 = vpop.f32.mrb[0].mxu0
      %v1082 = vadd.f32 %v787, %v1081
      %v1083 = vpop.f32.mrb[0].mxu0
      %v1084 = vpop.f32.mrb[0].mxu0
      %v1085 = vadd.f32 %v790, %v1084
      %v1086 = vpop.f32.mrb[0].mxu0
      %1087 = vmatprep.mubr.bf16.mxu0 0
      %1088 = vmatmul.mubr.bf16.gmra.mrb[0].mxu0 %v998
      %v1089 = vpop.f32.mrb[0].mxu0
      %v1090 = vadd.f32 %v795, %v1089
      %v1091 = vpop.f32.mrb[0].mxu0
      %v1092 = vpop.f32.mrb[0].mxu0
      %v1093 = vadd.f32 %v798, %v1092
      %v1094 = vpop.f32.mrb[0].mxu0
      %1095 = vmatprep.mubr.bf16.mxu0 0
      %1096 = vmatmul.mubr.bf16.gmra.mrb[0].mxu0 %v1001
      %v1097 = vpop.f32.mrb[0].mxu0
      %v1098 = vadd.f32 %v803, %v1097
      %v1099 = vpop.f32.mrb[0].mxu0
      %v1100 = vpop.f32.mrb[0].mxu0
      %v1101 = vadd.f32 %v806, %v1100
      %v1102 = vpop.f32.mrb[0].mxu0
      %1103 = vmatprep.mubr.bf16.mxu0 0
      %1104 = vmatmul.mubr.bf16.gmra.mrb[0].mxu0 %v1004
      %v1105 = vpop.f32.mrb[0].mxu0
      %v1106 = vadd.f32 %v811, %v1105
      %v1107 = vpop.f32.mrb[0].mxu0
      %v1108 = vpop.f32.mrb[0].mxu0
      %v1109 = vadd.f32 %v814, %v1108
      %v1110 = vpop.f32.mrb[0].mxu0
      %1111 = vmatprep.mubr.bf16.mxu0 0
      %1112 = vmatmul.mubr.bf16.gmra.mrb[0].mxu0 %v1007
      %v1113 = vpop.f32.mrb[0].mxu0
      %v1114 = vadd.f32 %v819, %v1113
      %v1115 = vpop.f32.mrb[0].mxu0
      %v1116 = vpop.f32.mrb[0].mxu0
      %v1117 = vadd.f32 %v822, %v1116
      %v1118 = vpop.f32.mrb[0].mxu0
      %1119 = vmatprep.mubr.bf16.mxu0 0
      %1120 = vmatmul.mubr.bf16.gmra.mrb[0].mxu0 %v1010
      %v1121 = vpop.f32.mrb[0].mxu0
      %v1122 = vadd.f32 %v827, %v1121
      %v1123 = vpop.f32.mrb[0].mxu0
      %v1124 = vpop.f32.mrb[0].mxu0
      %v1125 = vadd.f32 %v830, %v1124
      %v1126 = vpop.f32.mrb[0].mxu0
      %1127 = vmatprep.mubr.bf16.mxu0 0
      %1128 = vmatmul.mubr.bf16.gmra.mrb[0].mxu0 %v1013
      %v1129 = vpop.f32.mrb[0].mxu0
      %v1130 = vadd.f32 %v835, %v1129
      %v1131 = vpop.f32.mrb[0].mxu0
      %v1132 = vpop.f32.mrb[0].mxu0
      %v1133 = vadd.f32 %v838, %v1132
      %v1134 = vpop.f32.mrb[0].mxu0
      %1135 = vmatprep.mubr.bf16.mxu0 0
      %1136 = vmatmul.mubr.bf16.gmra.mrb[0].mxu0 %v1016
      %v1137 = vpop.f32.mrb[0].mxu0
      %v1138 = vadd.f32 %v843, %v1137
      %v1139 = vpop.f32.mrb[0].mxu0
      %v1140 = vpop.f32.mrb[0].mxu0
      %v1141 = vadd.f32 %v846, %v1140
      %v1142 = vpop.f32.mrb[0].mxu0
      %1143 = vmatprep.mubr.bf16.mxu0 0
      %1144 = vmatmul.mubr.bf16.gmra.mrb[0].mxu0 %v1019
      %v1145 = vpop.f32.mrb[0].mxu0
      %v1146 = vadd.f32 %v851, %v1145
      %v1147 = vpop.f32.mrb[0].mxu0
      %v1148 = vpop.f32.mrb[0].mxu0
      %v1149 = vadd.f32 %v854, %v1148
      %v1150 = vpop.f32.mrb[0].mxu0
      %1151 = vmatprep.mubr.bf16.mxu0 0
      %1152 = vmatmul.mubr.bf16.gmra.mrb[0].mxu0 %v1022
      %v1153 = vpop.f32.mrb[0].mxu0
      %v1154 = vadd.f32 %v859, %v1153
      %v1155 = vpop.f32.mrb[0].mxu0
      %v1156 = vpop.f32.mrb[0].mxu0
      %v1157 = vadd.f32 %v862, %v1156
      %v1158 = vpop.f32.mrb[0].mxu0
      %1159 = vmatprep.mubr.bf16.mxu0 0
      %1160 = vmatmul.mubr.bf16.gmra.mrb[0].mxu0 %v1025
      %v1161 = vpop.f32.mrb[0].mxu0
      %v1162 = vadd.f32 %v867, %v1161
      %v1163 = vpop.f32.mrb[0].mxu0
      %v1164 = vpop.f32.mrb[0].mxu0
      %v1165 = vadd.f32 %v870, %v1164
      %v1166 = vpop.f32.mrb[0].mxu0
      %1167 = vmatprep.mubr.bf16.mxu0 0
      %1168 = vmatmul.mubr.bf16.gmra.mrb[0].mxu0 %v1028
      %v1169 = vpop.f32.mrb[0].mxu0
      %v1170 = vadd.f32 %v875, %v1169
      %v1171 = vpop.f32.mrb[0].mxu0
      %v1172 = vpop.f32.mrb[0].mxu0
      %v1173 = vadd.f32 %v878, %v1172
      %v1174 = vpop.f32.mrb[0].mxu0
      %1175 = vmatprep.mubr.bf16.mxu0 0
      %1176 = vmatmul.mubr.bf16.gmra.mrb[0].mxu0 %v1031
      %v1177 = vpop.f32.mrb[0].mxu0
      %v1178 = vadd.f32 %v883, %v1177
      %v1179 = vpop.f32.mrb[0].mxu0
      %v1180 = vpop.f32.mrb[0].mxu0
      %v1181 = vadd.f32 %v886, %v1180
      %v1182 = vpop.f32.mrb[0].mxu0
      %1183 = vmatprep.mubr.bf16.mxu0 0
      %1184 = vmatmul.mubr.bf16.gmra.mrb[0].mxu0 %v1034
      %v1185 = vpop.f32.mrb[0].mxu0
      %v1186 = vadd.f32 %v891, %v1185
      %v1187 = vpop.f32.mrb[0].mxu0
      %v1188 = vpop.f32.mrb[0].mxu0
      %v1189 = vadd.f32 %v894, %v1188
      %v1190 = vpop.f32.mrb[0].mxu0
      %1191 = vmatprep.mubr.bf16.mxu0 0
      %1192 = vmatmul.mubr.bf16.gmra.mrb[0].mxu0 %v1037
      %v1193 = vpop.f32.mrb[0].mxu0
      %v1194 = vadd.f32 %v899, %v1193
      %v1195 = vpop.f32.mrb[0].mxu0
      %v1196 = vpop.f32.mrb[0].mxu0
      %v1197 = vadd.f32 %v902, %v1196
      %v1198 = vpop.f32.mrb[0].mxu0
      %1199 = vdwg.mxu0
      %v1200 = vld [vmem:[%s200] sm:$0xe]
      %v1201 = vld [vmem:[%s200 + $0xc] sm:$0xe]
      %v1202 = vld [vmem:[%s200 + $0x18] sm:$0xe]
      %v1203 = vld [vmem:[%s200 + $0x24] sm:$0xe]
      %v1204 = vld [vmem:[%s200 + $0x30] sm:$0xe]
      %v1205 = vld [vmem:[%s200 + $0x3c] sm:$0xe]
      %v1206 = vld [vmem:[%s200 + $0x48] sm:$0xe]
      %v1207 = vld [vmem:[%s200 + $0x54] sm:$0xe]
      %v1208 = vld [vmem:[%s200 + $0x60] sm:$0xe]
      %v1209 = vld [vmem:[%s200 + $0x6c] sm:$0xe]
      %v1210 = vld [vmem:[%s200 + $0x78] sm:$0xe]
      %v1211 = vld [vmem:[%s200 + $0x84] sm:$0xe]
      %v1212 = vld [vmem:[%s200 + $0x90] sm:$0xe]
      %v1213 = vld [vmem:[%s200 + $0x9c] sm:$0xe]
      %v1214 = vld [vmem:[%s200 + $0xa8] sm:$0xe]
      %v1215 = vld [vmem:[%s200 + $0xb4] sm:$0xe]
      %vm1248 = vcmask 1042432
      %vm1249 = vcmask 1046532
      %vm1250 = vmor %vm1248, %vm1249
      %v1251 = vrot.slane %v1200, 5
      %v1252 = vrot.slane %v1251, 4
      %v1253 = vrot.slane %v202, 5
      %v1254 = vsel %vm1250, %v1252, %v1253
      %v1255 = vrot.slane %v1253, 4
      %v1256 = vrot.slane %v235, 5
      %v1257 = vsel %vm1250, %v1255, %v1256
      %v1258 = vrot.slane %v1201, 5
      %v1259 = vrot.slane %v1258, 4
      %v1260 = vrot.slane %v204, 5
      %v1261 = vsel %vm1250, %v1259, %v1260
      %v1262 = vrot.slane %v1260, 4
      %v1263 = vrot.slane %v236, 5
      %v1264 = vsel %vm1250, %v1262, %v1263
      %v1265 = vrot.slane %v1202, 5
      %v1266 = vrot.slane %v1265, 4
      %v1267 = vrot.slane %v206, 5
      %v1268 = vsel %vm1250, %v1266, %v1267
      %v1269 = vrot.slane %v1267, 4
      %v1270 = vrot.slane %v237, 5
      %v1271 = vsel %vm1250, %v1269, %v1270
      %v1272 = vrot.slane %v1203, 5
      %v1273 = vrot.slane %v1272, 4
      %v1274 = vrot.slane %v208, 5
      %v1275 = vsel %vm1250, %v1273, %v1274
      %v1276 = vrot.slane %v1274, 4
      %v1277 = vrot.slane %v238, 5
      %v1278 = vsel %vm1250, %v1276, %v1277
      %v1279 = vrot.slane %v1204, 5
      %v1280 = vrot.slane %v1279, 4
      %v1281 = vrot.slane %v210, 5
      %v1282 = vsel %vm1250, %v1280, %v1281
      %v1283 = vrot.slane %v1281, 4
      %v1284 = vrot.slane %v239, 5
      %v1285 = vsel %vm1250, %v1283, %v1284
      %v1286 = vrot.slane %v1205, 5
      %v1287 = vrot.slane %v1286, 4
      %v1288 = vrot.slane %v212, 5
      %v1289 = vsel %vm1250, %v1287, %v1288
      %v1290 = vrot.slane %v1288, 4
      %v1291 = vrot.slane %v240, 5
      %v1292 = vsel %vm1250, %v1290, %v1291
      %v1293 = vrot.slane %v1206, 5
      %v1294 = vrot.slane %v1293, 4
      %v1295 = vrot.slane %v214, 5
      %v1296 = vsel %vm1250, %v1294, %v1295
      %v1297 = vrot.slane %v1295, 4
      %v1298 = vrot.slane %v241, 5
      %v1299 = vsel %vm1250, %v1297, %v1298
      %v1300 = vrot.slane %v1207, 5
      %v1301 = vrot.slane %v1300, 4
      %v1302 = vrot.slane %v216, 5
      %v1303 = vsel %vm1250, %v1301, %v1302
      %v1304 = vrot.slane %v1302, 4
      %v1305 = vrot.slane %v242, 5
      %v1306 = vsel %vm1250, %v1304, %v1305
      %v1307 = vrot.slane %v1208, 5
      %v1308 = vrot.slane %v1307, 4
      %v1309 = vrot.slane %v218, 5
      %v1310 = vsel %vm1250, %v1308, %v1309
      %v1311 = vrot.slane %v1309, 4
      %v1312 = vrot.slane %v243, 5
      %v1313 = vsel %vm1250, %v1311, %v1312
      %v1314 = vrot.slane %v1209, 5
      %v1315 = vrot.slane %v1314, 4
      %v1316 = vrot.slane %v220, 5
      %v1317 = vsel %vm1250, %v1315, %v1316
      %v1318 = vrot.slane %v1316, 4
      %v1319 = vrot.slane %v244, 5
      %v1320 = vsel %vm1250, %v1318, %v1319
      %v1321 = vrot.slane %v1210, 5
      %v1322 = vrot.slane %v1321, 4
      %v1323 = vrot.slane %v222, 5
      %v1324 = vsel %vm1250, %v1322, %v1323
      %v1325 = vrot.slane %v1323, 4
      %v1326 = vrot.slane %v245, 5
      %v1327 = vsel %vm1250, %v1325, %v1326
      %v1328 = vrot.slane %v1211, 5
      %v1329 = vrot.slane %v1328, 4
      %v1330 = vrot.slane %v224, 5
      %v1331 = vsel %vm1250, %v1329, %v1330
      %v1332 = vrot.slane %v1330, 4
      %v1333 = vrot.slane %v246, 5
      %v1334 = vsel %vm1250, %v1332, %v1333
      %v1335 = vrot.slane %v1212, 5
      %v1336 = vrot.slane %v1335, 4
      %v1337 = vrot.slane %v226, 5
      %v1338 = vsel %vm1250, %v1336, %v1337
      %v1339 = vrot.slane %v1337, 4
      %v1340 = vrot.slane %v247, 5
      %v1341 = vsel %vm1250, %v1339, %v1340
      %v1342 = vrot.slane %v1213, 5
      %v1343 = vrot.slane %v1342, 4
      %v1344 = vrot.slane %v228, 5
      %v1345 = vsel %vm1250, %v1343, %v1344
      %v1346 = vrot.slane %v1344, 4
      %v1347 = vrot.slane %v248, 5
      %v1348 = vsel %vm1250, %v1346, %v1347
      %v1349 = vrot.slane %v1214, 5
      %v1350 = vrot.slane %v1349, 4
      %v1351 = vrot.slane %v230, 5
      %v1352 = vsel %vm1250, %v1350, %v1351
      %v1353 = vrot.slane %v1351, 4
      %v1354 = vrot.slane %v249, 5
      %v1355 = vsel %vm1250, %v1353, %v1354
      %v1356 = vrot.slane %v1215, 5
      %v1357 = vrot.slane %v1356, 4
      %v1358 = vrot.slane %v232, 5
      %v1359 = vsel %vm1250, %v1357, %v1358
      %v1360 = vrot.slane %v1358, 4
      %v1361 = vrot.slane %v250, 5
      %v1362 = vsel %vm1250, %v1360, %v1361
      %s1363 = scalar_lea.vmem %s1, 16
      %v1364 = vld [vmem:[%s1363] sm:$0xf]
      %v1365 = vld [vmem:[%s1363 + $0x4] sm:$0xf]
      %v1366 = vunpack.c.l.b16 %v1254
      %v1367 = vunpack.c.l.b16 %v1257
      %v1368 = vunpack.c.l.b16 %v1261
      %v1369 = vunpack.c.l.b16 %v1264
      %v1370 = vunpack.c.l.b16 %v1268
      %v1371 = vunpack.c.l.b16 %v1271
      %v1372 = vunpack.c.l.b16 %v1275
      %v1373 = vunpack.c.l.b16 %v1278
      %v1374 = vunpack.c.l.b16 %v1282
      %v1375 = vunpack.c.l.b16 %v1285
      %v1376 = vunpack.c.l.b16 %v1289
      %v1377 = vunpack.c.l.b16 %v1292
      %v1378 = vunpack.c.l.b16 %v1296
      %v1379 = vunpack.c.l.b16 %v1299
      %v1380 = vunpack.c.l.b16 %v1303
      %v1381 = vunpack.c.l.b16 %v1306
      %v1382 = vunpack.c.l.b16 %v1310
      %v1383 = vunpack.c.l.b16 %v1313
      %v1384 = vunpack.c.l.b16 %v1317
      %v1385 = vunpack.c.l.b16 %v1320
      %v1386 = vunpack.c.l.b16 %v1324
      %v1387 = vunpack.c.l.b16 %v1327
      %v1388 = vunpack.c.l.b16 %v1331
      %v1389 = vunpack.c.l.b16 %v1334
      %v1390 = vunpack.c.l.b16 %v1338
      %v1391 = vunpack.c.l.b16 %v1341
      %v1392 = vunpack.c.l.b16 %v1345
      %v1393 = vunpack.c.l.b16 %v1348
      %v1394 = vunpack.c.l.b16 %v1352
      %v1395 = vunpack.c.l.b16 %v1355
      %v1396 = vunpack.c.l.b16 %v1359
      %v1397 = vunpack.c.l.b16 %v1362
      %v1398 = vpack.c.b16 %v1367, %v1366
      %v1399 = vpack.c.b16 %v1369, %v1368
      %v1400 = vpack.c.b16 %v1371, %v1370
      %v1401 = vpack.c.b16 %v1373, %v1372
      %v1402 = vpack.c.b16 %v1375, %v1374
      %v1403 = vpack.c.b16 %v1377, %v1376
      %v1404 = vpack.c.b16 %v1379, %v1378
      %v1405 = vpack.c.b16 %v1381, %v1380
      %v1406 = vpack.c.b16 %v1383, %v1382
      %v1407 = vpack.c.b16 %v1385, %v1384
      %v1408 = vpack.c.b16 %v1387, %v1386
      %v1409 = vpack.c.b16 %v1389, %v1388
      %v1410 = vpack.c.b16 %v1391, %v1390
      %v1411 = vpack.c.b16 %v1393, %v1392
      %v1412 = vpack.c.b16 %v1395, %v1394
      %v1413 = vpack.c.b16 %v1397, %v1396
      %v1416 = vunpack.c.l.b16 %v1364
      %v1417 = vunpack.c.l.b16 %v1365
      %v1418 = vpack.c.b16 %v1417, %v1416
      %v1421 = vsel %vm695, %v1398, 0
      %v1424 = vsel %vm695, %v1399, 0
      %v1427 = vsel %vm695, %v1400, 0
      %v1430 = vsel %vm695, %v1401, 0
      %v1433 = vsel %vm695, %v1402, 0
      %v1436 = vsel %vm695, %v1403, 0
      %v1439 = vsel %vm695, %v1404, 0
      %v1442 = vsel %vm695, %v1405, 0
      %v1445 = vsel %vm695, %v1406, 0
      %v1448 = vsel %vm695, %v1407, 0
      %v1451 = vsel %vm695, %v1408, 0
      %v1454 = vsel %vm695, %v1409, 0
      %v1457 = vsel %vm695, %v1410, 0
      %v1460 = vsel %vm695, %v1411, 0
      %v1463 = vsel %vm695, %v1412, 0
      %v1466 = vsel %vm695, %v1413, 0
      %1468 = vmatprep.subr.bf16.mxu0 0
      %1469 = vmatpush1.bf16.msra.mxu0 %v1418
      %1470 = vmatprep.subr.bf16.mxu0 0
      %1471 = vmatpush1.bf16.msra.mxu0 0
      %1472 = vmatprep.subr.bf16.mxu0 0
      %1473 = vmatpush1.bf16.msra.mxu0 0
      %1474 = vmatprep.subr.bf16.mxu0 0
      %1475 = vmatpush1.bf16.msra.mxu0 0
      %1476 = vmatprep.subr.bf16.mxu0 0
      %1477 = vmatpush1.bf16.msra.mxu0 0
      %1478 = vmatprep.subr.bf16.mxu0 0
      %1479 = vmatpush1.bf16.msra.mxu0 0
      %1480 = vmatprep.subr.bf16.mxu0 0
      %1481 = vmatpush1.bf16.msra.mxu0 0
      %1482 = vmatprep.subr.bf16.mxu0 0
      %1483 = vmatpush1.bf16.msra.mxu0 0
      %1484 = vmatprep.subr.bf16.mxu0 0
      %1485 = vmatpush1.bf16.msra.mxu0 0
      %1486 = vmatprep.subr.bf16.mxu0 0
      %1487 = vmatpush1.bf16.msra.mxu0 0
      %1488 = vmatprep.subr.bf16.mxu0 0
      %1489 = vmatpush1.bf16.msra.mxu0 0
      %1490 = vmatprep.subr.bf16.mxu0 0
      %1491 = vmatpush1.bf16.msra.mxu0 0
      %1492 = vmatprep.subr.bf16.mxu0 0
      %1493 = vmatpush1.bf16.msra.mxu0 0
      %1494 = vmatprep.subr.bf16.mxu0 0
      %1495 = vmatpush1.bf16.msra.mxu0 0
      %1496 = vmatprep.subr.bf16.mxu0 0
      %1497 = vmatpush1.bf16.msra.mxu0 0
      %1498 = vmatprep.subr.bf16.mxu0 0
      %1499 = vmatpush1.bf16.msra.mxu0 0
      %1500 = vmatprep.mubr.bf16.mxu0 0
      %1501 = vmatmul.mubr.bf16.gmra.mrb[0].mxu0 %v1421
      %v1502 = vpop.f32.mrb[0].mxu0
      %v1503 = vadd.f32 0.0, %v1502
      %v1504 = vpop.f32.mrb[0].mxu0
      %v1505 = vpop.f32.mrb[0].mxu0
      %v1506 = vadd.f32 0.0, %v1505
      %v1507 = vpop.f32.mrb[0].mxu0
      %1508 = vmatprep.mubr.bf16.mxu0 0
      %1509 = vmatmul.mubr.bf16.gmra.mrb[0].mxu0 %v1424
      %v1510 = vpop.f32.mrb[0].mxu0
      %v1511 = vadd.f32 0.0, %v1510
      %v1512 = vpop.f32.mrb[0].mxu0
      %v1513 = vpop.f32.mrb[0].mxu0
      %v1514 = vadd.f32 0.0, %v1513
      %v1515 = vpop.f32.mrb[0].mxu0
      %1516 = vmatprep.mubr.bf16.mxu0 0
      %1517 = vmatmul.mubr.bf16.gmra.mrb[0].mxu0 %v1427
      %v1518 = vpop.f32.mrb[0].mxu0
      %v1519 = vadd.f32 0.0, %v1518
      %v1520 = vpop.f32.mrb[0].mxu0
      %v1521 = vpop.f32.mrb[0].mxu0
      %v1522 = vadd.f32 0.0, %v1521
      %v1523 = vpop.f32.mrb[0].mxu0
      %1524 = vmatprep.mubr.bf16.mxu0 0
      %1525 = vmatmul.mubr.bf16.gmra.mrb[0].mxu0 %v1430
      %v1526 = vpop.f32.mrb[0].mxu0
      %v1527 = vadd.f32 0.0, %v1526
      %v1528 = vpop.f32.mrb[0].mxu0
      %v1529 = vpop.f32.mrb[0].mxu0
      %v1530 = vadd.f32 0.0, %v1529
      %v1531 = vpop.f32.mrb[0].mxu0
      %1532 = vmatprep.mubr.bf16.mxu0 0
      %1533 = vmatmul.mubr.bf16.gmra.mrb[0].mxu0 %v1433
      %v1534 = vpop.f32.mrb[0].mxu0
      %v1535 = vadd.f32 0.0, %v1534
      %v1536 = vpop.f32.mrb[0].mxu0
      %v1537 = vpop.f32.mrb[0].mxu0
      %v1538 = vadd.f32 0.0, %v1537
      %v1539 = vpop.f32.mrb[0].mxu0
      %1540 = vmatprep.mubr.bf16.mxu0 0
      %1541 = vmatmul.mubr.bf16.gmra.mrb[0].mxu0 %v1436
      %v1542 = vpop.f32.mrb[0].mxu0
      %v1543 = vadd.f32 0.0, %v1542
      %v1544 = vpop.f32.mrb[0].mxu0
      %v1545 = vpop.f32.mrb[0].mxu0
      %v1546 = vadd.f32 0.0, %v1545
      %v1547 = vpop.f32.mrb[0].mxu0
      %1548 = vmatprep.mubr.bf16.mxu0 0
      %1549 = vmatmul.mubr.bf16.gmra.mrb[0].mxu0 %v1439
      %v1550 = vpop.f32.mrb[0].mxu0
      %v1551 = vadd.f32 0.0, %v1550
      %v1552 = vpop.f32.mrb[0].mxu0
      %v1553 = vpop.f32.mrb[0].mxu0
      %v1554 = vadd.f32 0.0, %v1553
      %v1555 = vpop.f32.mrb[0].mxu0
      %1556 = vmatprep.mubr.bf16.mxu0 0
      %1557 = vmatmul.mubr.bf16.gmra.mrb[0].mxu0 %v1442
      %v1558 = vpop.f32.mrb[0].mxu0
      %v1559 = vadd.f32 0.0, %v1558
      %v1560 = vpop.f32.mrb[0].mxu0
      %v1561 = vpop.f32.mrb[0].mxu0
      %v1562 = vadd.f32 0.0, %v1561
      %v1563 = vpop.f32.mrb[0].mxu0
      %1564 = vmatprep.mubr.bf16.mxu0 0
      %1565 = vmatmul.mubr.bf16.gmra.mrb[0].mxu0 %v1445
      %v1566 = vpop.f32.mrb[0].mxu0
      %v1567 = vadd.f32 0.0, %v1566
      %v1568 = vpop.f32.mrb[0].mxu0
      %v1569 = vpop.f32.mrb[0].mxu0
      %v1570 = vadd.f32 0.0, %v1569
      %v1571 = vpop.f32.mrb[0].mxu0
      %1572 = vmatprep.mubr.bf16.mxu0 0
      %1573 = vmatmul.mubr.bf16.gmra.mrb[0].mxu0 %v1448
      %v1574 = vpop.f32.mrb[0].mxu0
      %v1575 = vadd.f32 0.0, %v1574
      %v1576 = vpop.f32.mrb[0].mxu0
      %v1577 = vpop.f32.mrb[0].mxu0
      %v1578 = vadd.f32 0.0, %v1577
      %v1579 = vpop.f32.mrb[0].mxu0
      %1580 = vmatprep.mubr.bf16.mxu0 0
      %1581 = vmatmul.mubr.bf16.gmra.mrb[0].mxu0 %v1451
      %v1582 = vpop.f32.mrb[0].mxu0
      %v1583 = vadd.f32 0.0, %v1582
      %v1584 = vpop.f32.mrb[0].mxu0
      %v1585 = vpop.f32.mrb[0].mxu0
      %v1586 = vadd.f32 0.0, %v1585
      %v1587 = vpop.f32.mrb[0].mxu0
      %1588 = vmatprep.mubr.bf16.mxu0 0
      %1589 = vmatmul.mubr.bf16.gmra.mrb[0].mxu0 %v1454
      %v1590 = vpop.f32.mrb[0].mxu0
      %v1591 = vadd.f32 0.0, %v1590
      %v1592 = vpop.f32.mrb[0].mxu0
      %v1593 = vpop.f32.mrb[0].mxu0
      %v1594 = vadd.f32 0.0, %v1593
      %v1595 = vpop.f32.mrb[0].mxu0
      %1596 = vmatprep.mubr.bf16.mxu0 0
      %1597 = vmatmul.mubr.bf16.gmra.mrb[0].mxu0 %v1457
      %v1598 = vpop.f32.mrb[0].mxu0
      %v1599 = vadd.f32 0.0, %v1598
      %v1600 = vpop.f32.mrb[0].mxu0
      %v1601 = vpop.f32.mrb[0].mxu0
      %v1602 = vadd.f32 0.0, %v1601
      %v1603 = vpop.f32.mrb[0].mxu0
      %1604 = vmatprep.mubr.bf16.mxu0 0
      %1605 = vmatmul.mubr.bf16.gmra.mrb[0].mxu0 %v1460
      %v1606 = vpop.f32.mrb[0].mxu0
      %v1607 = vadd.f32 0.0, %v1606
      %v1608 = vpop.f32.mrb[0].mxu0
      %v1609 = vpop.f32.mrb[0].mxu0
      %v1610 = vadd.f32 0.0, %v1609
      %v1611 = vpop.f32.mrb[0].mxu0
      %1612 = vmatprep.mubr.bf16.mxu0 0
      %1613 = vmatmul.mubr.bf16.gmra.mrb[0].mxu0 %v1463
      %v1614 = vpop.f32.mrb[0].mxu0
      %v1615 = vadd.f32 0.0, %v1614
      %v1616 = vpop.f32.mrb[0].mxu0
      %v1617 = vpop.f32.mrb[0].mxu0
      %v1618 = vadd.f32 0.0, %v1617
      %v1619 = vpop.f32.mrb[0].mxu0
      %1620 = vmatprep.mubr.bf16.mxu0 0
      %1621 = vmatmul.mubr.bf16.gmra.mrb[0].mxu0 %v1466
      %v1622 = vpop.f32.mrb[0].mxu0
      %v1623 = vadd.f32 0.0, %v1622
      %v1624 = vpop.f32.mrb[0].mxu0
      %v1625 = vpop.f32.mrb[0].mxu0
      %v1626 = vadd.f32 0.0, %v1625
      %v1627 = vpop.f32.mrb[0].mxu0
      %1628 = vdwg.mxu0
      %v1629 = vadd.f32 %v1074, %v1503
      %v1630 = vadd.f32 %v1077, %v1506
      %v1631 = vadd.f32 %v1082, %v1511
      %v1632 = vadd.f32 %v1085, %v1514
      %v1633 = vadd.f32 %v1090, %v1519
      %v1634 = vadd.f32 %v1093, %v1522
      %v1635 = vadd.f32 %v1098, %v1527
      %v1636 = vadd.f32 %v1101, %v1530
      %v1637 = vadd.f32 %v1106, %v1535
      %v1638 = vadd.f32 %v1109, %v1538
      %v1639 = vadd.f32 %v1114, %v1543
      %v1640 = vadd.f32 %v1117, %v1546
      %v1641 = vadd.f32 %v1122, %v1551
      %v1642 = vadd.f32 %v1125, %v1554
      %v1643 = vadd.f32 %v1130, %v1559
      %v1644 = vadd.f32 %v1133, %v1562
      %v1645 = vadd.f32 %v1138, %v1567
      %v1646 = vadd.f32 %v1141, %v1570
      %v1647 = vadd.f32 %v1146, %v1575
      %v1648 = vadd.f32 %v1149, %v1578
      %v1649 = vadd.f32 %v1154, %v1583
      %v1650 = vadd.f32 %v1157, %v1586
      %v1651 = vadd.f32 %v1162, %v1591
      %v1652 = vadd.f32 %v1165, %v1594
      %v1653 = vadd.f32 %v1170, %v1599
      %v1654 = vadd.f32 %v1173, %v1602
      %v1655 = vadd.f32 %v1178, %v1607
      %v1656 = vadd.f32 %v1181, %v1610
      %v1657 = vadd.f32 %v1186, %v1615
      %v1658 = vadd.f32 %v1189, %v1618
      %v1659 = vadd.f32 %v1194, %v1623
      %v1660 = vadd.f32 %v1197, %v1626
      %s1661 = sadd.s32 %s197, 1
      %s1662 = smul.u32 %s1661, 3
      %s1663 = smul.addr %s1662, 4
      %s1664 = scalar_lea.vmem %s184, %s1663
      %v1665 = vld [vmem:[%s1664] sm:$0xf]
      %v1666 = vld [vmem:[%s1664 + $0x4] sm:$0xf]
      %v1667 = vld [vmem:[%s1664 + $0xc] sm:$0xf]
      %v1668 = vld [vmem:[%s1664 + $0x10] sm:$0xf]
      %v1669 = vld [vmem:[%s1664 + $0x18] sm:$0xf]
      %v1670 = vld [vmem:[%s1664 + $0x1c] sm:$0xf]
      %v1671 = vld [vmem:[%s1664 + $0x24] sm:$0xf]
      %v1672 = vld [vmem:[%s1664 + $0x28] sm:$0xf]
      %v1673 = vld [vmem:[%s1664 + $0x30] sm:$0xf]
      %v1674 = vld [vmem:[%s1664 + $0x34] sm:$0xf]
      %v1675 = vld [vmem:[%s1664 + $0x3c] sm:$0xf]
      %v1676 = vld [vmem:[%s1664 + $0x40] sm:$0xf]
      %v1677 = vld [vmem:[%s1664 + $0x48] sm:$0xf]
      %v1678 = vld [vmem:[%s1664 + $0x4c] sm:$0xf]
      %v1679 = vld [vmem:[%s1664 + $0x54] sm:$0xf]
      %v1680 = vld [vmem:[%s1664 + $0x58] sm:$0xf]
      %v1681 = vld [vmem:[%s1664 + $0x60] sm:$0xf]
      %v1682 = vld [vmem:[%s1664 + $0x64] sm:$0xf]
      %v1683 = vld [vmem:[%s1664 + $0x6c] sm:$0xf]
      %v1684 = vld [vmem:[%s1664 + $0x70] sm:$0xf]
      %v1685 = vld [vmem:[%s1664 + $0x78] sm:$0xf]
      %v1686 = vld [vmem:[%s1664 + $0x7c] sm:$0xf]
      %v1687 = vld [vmem:[%s1664 + $0x84] sm:$0xf]
      %v1688 = vld [vmem:[%s1664 + $0x88] sm:$0xf]
      %v1689 = vld [vmem:[%s1664 + $0x90] sm:$0xf]
      %v1690 = vld [vmem:[%s1664 + $0x94] sm:$0xf]
      %v1691 = vld [vmem:[%s1664 + $0x9c] sm:$0xf]
      %v1692 = vld [vmem:[%s1664 + $0xa0] sm:$0xf]
      %v1693 = vld [vmem:[%s1664 + $0xa8] sm:$0xf]
      %v1694 = vld [vmem:[%s1664 + $0xac] sm:$0xf]
      %v1695 = vld [vmem:[%s1664 + $0xb4] sm:$0xf]
      %v1696 = vld [vmem:[%s1664 + $0xb8] sm:$0xf]
      %s1697 = scalar_lea.vmem %s1, 24
      %v1698 = vld [vmem:[%s1697] sm:$0xf]
      %v1699 = vld [vmem:[%s1697 + $0x4] sm:$0xf]
      %v1732 = vunpack.c.l.b16 %v1665
      %v1733 = vunpack.c.l.b16 %v1666
      %v1734 = vunpack.c.l.b16 %v1667
      %v1735 = vunpack.c.l.b16 %v1668
      %v1736 = vunpack.c.l.b16 %v1669
      %v1737 = vunpack.c.l.b16 %v1670
      %v1738 = vunpack.c.l.b16 %v1671
      %v1739 = vunpack.c.l.b16 %v1672
      %v1740 = vunpack.c.l.b16 %v1673
      %v1741 = vunpack.c.l.b16 %v1674
      %v1742 = vunpack.c.l.b16 %v1675
      %v1743 = vunpack.c.l.b16 %v1676
      %v1744 = vunpack.c.l.b16 %v1677
      %v1745 = vunpack.c.l.b16 %v1678
      %v1746 = vunpack.c.l.b16 %v1679
      %v1747 = vunpack.c.l.b16 %v1680
      %v1748 = vunpack.c.l.b16 %v1681
      %v1749 = vunpack.c.l.b16 %v1682
      %v1750 = vunpack.c.l.b16 %v1683
      %v1751 = vunpack.c.l.b16 %v1684
      %v1752 = vunpack.c.l.b16 %v1685
      %v1753 = vunpack.c.l.b16 %v1686
      %v1754 = vunpack.c.l.b16 %v1687
      %v1755 = vunpack.c.l.b16 %v1688
      %v1756 = vunpack.c.l.b16 %v1689
      %v1757 = vunpack.c.l.b16 %v1690
      %v1758 = vunpack.c.l.b16 %v1691
      %v1759 = vunpack.c.l.b16 %v1692
      %v1760 = vunpack.c.l.b16 %v1693
      %v1761 = vunpack.c.l.b16 %v1694
      %v1762 = vunpack.c.l.b16 %v1695
      %v1763 = vunpack.c.l.b16 %v1696
      %v1764 = vpack.c.b16 %v1733, %v1732
      %v1765 = vpack.c.b16 %v1735, %v1734
      %v1766 = vpack.c.b16 %v1737, %v1736
      %v1767 = vpack.c.b16 %v1739, %v1738
      %v1768 = vpack.c.b16 %v1741, %v1740
      %v1769 = vpack.c.b16 %v1743, %v1742
      %v1770 = vpack.c.b16 %v1745, %v1744
      %v1771 = vpack.c.b16 %v1747, %v1746
      %v1772 = vpack.c.b16 %v1749, %v1748
      %v1773 = vpack.c.b16 %v1751, %v1750
      %v1774 = vpack.c.b16 %v1753, %v1752
      %v1775 = vpack.c.b16 %v1755, %v1754
      %v1776 = vpack.c.b16 %v1757, %v1756
      %v1777 = vpack.c.b16 %v1759, %v1758
      %v1778 = vpack.c.b16 %v1761, %v1760
      %v1779 = vpack.c.b16 %v1763, %v1762
      %v1782 = vunpack.c.l.b16 %v1698
      %v1783 = vunpack.c.l.b16 %v1699
      %v1784 = vpack.c.b16 %v1783, %v1782
      %v1787 = vsel %vm695, %v1764, 0
      %v1790 = vsel %vm695, %v1765, 0
      %v1793 = vsel %vm695, %v1766, 0
      %v1796 = vsel %vm695, %v1767, 0
      %v1799 = vsel %vm695, %v1768, 0
      %v1802 = vsel %vm695, %v1769, 0
      %v1805 = vsel %vm695, %v1770, 0
      %v1808 = vsel %vm695, %v1771, 0
      %v1811 = vsel %vm695, %v1772, 0
      %v1814 = vsel %vm695, %v1773, 0
      %v1817 = vsel %vm695, %v1774, 0
      %v1820 = vsel %vm695, %v1775, 0
      %v1823 = vsel %vm695, %v1776, 0
      %v1826 = vsel %vm695, %v1777, 0
      %v1829 = vsel %vm695, %v1778, 0
      %v1832 = vsel %vm695, %v1779, 0
      %1834 = vmatprep.subr.bf16.mxu0 0
      %1835 = vmatpush1.bf16.msra.mxu0 %v1784
      %1836 = vmatprep.subr.bf16.mxu0 0
      %1837 = vmatpush1.bf16.msra.mxu0 0
      %1838 = vmatprep.subr.bf16.mxu0 0
      %1839 = vmatpush1.bf16.msra.mxu0 0
      %1840 = vmatprep.subr.bf16.mxu0 0
      %1841 = vmatpush1.bf16.msra.mxu0 0
      %1842 = vmatprep.subr.bf16.mxu0 0
      %1843 = vmatpush1.bf16.msra.mxu0 0
      %1844 = vmatprep.subr.bf16.mxu0 0
      %1845 = vmatpush1.bf16.msra.mxu0 0
      %1846 = vmatprep.subr.bf16.mxu0 0
      %1847 = vmatpush1.bf16.msra.mxu0 0
      %1848 = vmatprep.subr.bf16.mxu0 0
      %1849 = vmatpush1.bf16.msra.mxu0 0
      %1850 = vmatprep.subr.bf16.mxu0 0
      %1851 = vmatpush1.bf16.msra.mxu0 0
      %1852 = vmatprep.subr.bf16.mxu0 0
      %1853 = vmatpush1.bf16.msra.mxu0 0
      %1854 = vmatprep.subr.bf16.mxu0 0
      %1855 = vmatpush1.bf16.msra.mxu0 0
      %1856 = vmatprep.subr.bf16.mxu0 0
      %1857 = vmatpush1.bf16.msra.mxu0 0
      %1858 = vmatprep.subr.bf16.mxu0 0
      %1859 = vmatpush1.bf16.msra.mxu0 0
      %1860 = vmatprep.subr.bf16.mxu0 0
      %1861 = vmatpush1.bf16.msra.mxu0 0
      %1862 = vmatprep.subr.bf16.mxu0 0
      %1863 = vmatpush1.bf16.msra.mxu0 0
      %1864 = vmatprep.subr.bf16.mxu0 0
      %1865 = vmatpush1.bf16.msra.mxu0 0
      %1866 = vmatprep.mubr.bf16.mxu0 0
      %1867 = vmatmul.mubr.bf16.gmra.mrb[0].mxu0 %v1787
      %v1868 = vpop.f32.mrb[0].mxu0
      %v1869 = vadd.f32 0.0, %v1868
      %v1870 = vpop.f32.mrb[0].mxu0
      %v1871 = vpop.f32.mrb[0].mxu0
      %v1872 = vadd.f32 0.0, %v1871
      %v1873 = vpop.f32.mrb[0].mxu0
      %1874 = vmatprep.mubr.bf16.mxu0 0
      %1875 = vmatmul.mubr.bf16.gmra.mrb[0].mxu0 %v1790
      %v1876 = vpop.f32.mrb[0].mxu0
      %v1877 = vadd.f32 0.0, %v1876
      %v1878 = vpop.f32.mrb[0].mxu0
      %v1879 = vpop.f32.mrb[0].mxu0
      %v1880 = vadd.f32 0.0, %v1879
      %v1881 = vpop.f32.mrb[0].mxu0
      %1882 = vmatprep.mubr.bf16.mxu0 0
      %1883 = vmatmul.mubr.bf16.gmra.mrb[0].mxu0 %v1793
      %v1884 = vpop.f32.mrb[0].mxu0
      %v1885 = vadd.f32 0.0, %v1884
      %v1886 = vpop.f32.mrb[0].mxu0
      %v1887 = vpop.f32.mrb[0].mxu0
      %v1888 = vadd.f32 0.0, %v1887
      %v1889 = vpop.f32.mrb[0].mxu0
      %1890 = vmatprep.mubr.bf16.mxu0 0
      %1891 = vmatmul.mubr.bf16.gmra.mrb[0].mxu0 %v1796
      %v1892 = vpop.f32.mrb[0].mxu0
      %v1893 = vadd.f32 0.0, %v1892
      %v1894 = vpop.f32.mrb[0].mxu0
      %v1895 = vpop.f32.mrb[0].mxu0
      %v1896 = vadd.f32 0.0, %v1895
      %v1897 = vpop.f32.mrb[0].mxu0
      %1898 = vmatprep.mubr.bf16.mxu0 0
      %1899 = vmatmul.mubr.bf16.gmra.mrb[0].mxu0 %v1799
      %v1900 = vpop.f32.mrb[0].mxu0
      %v1901 = vadd.f32 0.0, %v1900
      %v1902 = vpop.f32.mrb[0].mxu0
      %v1903 = vpop.f32.mrb[0].mxu0
      %v1904 = vadd.f32 0.0, %v1903
      %v1905 = vpop.f32.mrb[0].mxu0
      %1906 = vmatprep.mubr.bf16.mxu0 0
      %1907 = vmatmul.mubr.bf16.gmra.mrb[0].mxu0 %v1802
      %v1908 = vpop.f32.mrb[0].mxu0
      %v1909 = vadd.f32 0.0, %v1908
      %v1910 = vpop.f32.mrb[0].mxu0
      %v1911 = vpop.f32.mrb[0].mxu0
      %v1912 = vadd.f32 0.0, %v1911
      %v1913 = vpop.f32.mrb[0].mxu0
      %1914 = vmatprep.mubr.bf16.mxu0 0
      %1915 = vmatmul.mubr.bf16.gmra.mrb[0].mxu0 %v1805
      %v1916 = vpop.f32.mrb[0].mxu0
      %v1917 = vadd.f32 0.0, %v1916
      %v1918 = vpop.f32.mrb[0].mxu0
      %v1919 = vpop.f32.mrb[0].mxu0
      %v1920 = vadd.f32 0.0, %v1919
      %v1921 = vpop.f32.mrb[0].mxu0
      %1922 = vmatprep.mubr.bf16.mxu0 0
      %1923 = vmatmul.mubr.bf16.gmra.mrb[0].mxu0 %v1808
      %v1924 = vpop.f32.mrb[0].mxu0
      %v1925 = vadd.f32 0.0, %v1924
      %v1926 = vpop.f32.mrb[0].mxu0
      %v1927 = vpop.f32.mrb[0].mxu0
      %v1928 = vadd.f32 0.0, %v1927
      %v1929 = vpop.f32.mrb[0].mxu0
      %1930 = vmatprep.mubr.bf16.mxu0 0
      %1931 = vmatmul.mubr.bf16.gmra.mrb[0].mxu0 %v1811
      %v1932 = vpop.f32.mrb[0].mxu0
      %v1933 = vadd.f32 0.0, %v1932
      %v1934 = vpop.f32.mrb[0].mxu0
      %v1935 = vpop.f32.mrb[0].mxu0
      %v1936 = vadd.f32 0.0, %v1935
      %v1937 = vpop.f32.mrb[0].mxu0
      %1938 = vmatprep.mubr.bf16.mxu0 0
      %1939 = vmatmul.mubr.bf16.gmra.mrb[0].mxu0 %v1814
      %v1940 = vpop.f32.mrb[0].mxu0
      %v1941 = vadd.f32 0.0, %v1940
      %v1942 = vpop.f32.mrb[0].mxu0
      %v1943 = vpop.f32.mrb[0].mxu0
      %v1944 = vadd.f32 0.0, %v1943
      %v1945 = vpop.f32.mrb[0].mxu0
      %1946 = vmatprep.mubr.bf16.mxu0 0
      %1947 = vmatmul.mubr.bf16.gmra.mrb[0].mxu0 %v1817
      %v1948 = vpop.f32.mrb[0].mxu0
      %v1949 = vadd.f32 0.0, %v1948
      %v1950 = vpop.f32.mrb[0].mxu0
      %v1951 = vpop.f32.mrb[0].mxu0
      %v1952 = vadd.f32 0.0, %v1951
      %v1953 = vpop.f32.mrb[0].mxu0
      %1954 = vmatprep.mubr.bf16.mxu0 0
      %1955 = vmatmul.mubr.bf16.gmra.mrb[0].mxu0 %v1820
      %v1956 = vpop.f32.mrb[0].mxu0
      %v1957 = vadd.f32 0.0, %v1956
      %v1958 = vpop.f32.mrb[0].mxu0
      %v1959 = vpop.f32.mrb[0].mxu0
      %v1960 = vadd.f32 0.0, %v1959
      %v1961 = vpop.f32.mrb[0].mxu0
      %1962 = vmatprep.mubr.bf16.mxu0 0
      %1963 = vmatmul.mubr.bf16.gmra.mrb[0].mxu0 %v1823
      %v1964 = vpop.f32.mrb[0].mxu0
      %v1965 = vadd.f32 0.0, %v1964
      %v1966 = vpop.f32.mrb[0].mxu0
      %v1967 = vpop.f32.mrb[0].mxu0
      %v1968 = vadd.f32 0.0, %v1967
      %v1969 = vpop.f32.mrb[0].mxu0
      %1970 = vmatprep.mubr.bf16.mxu0 0
      %1971 = vmatmul.mubr.bf16.gmra.mrb[0].mxu0 %v1826
      %v1972 = vpop.f32.mrb[0].mxu0
      %v1973 = vadd.f32 0.0, %v1972
      %v1974 = vpop.f32.mrb[0].mxu0
      %v1975 = vpop.f32.mrb[0].mxu0
      %v1976 = vadd.f32 0.0, %v1975
      %v1977 = vpop.f32.mrb[0].mxu0
      %1978 = vmatprep.mubr.bf16.mxu0 0
      %1979 = vmatmul.mubr.bf16.gmra.mrb[0].mxu0 %v1829
      %v1980 = vpop.f32.mrb[0].mxu0
      %v1981 = vadd.f32 0.0, %v1980
      %v1982 = vpop.f32.mrb[0].mxu0
      %v1983 = vpop.f32.mrb[0].mxu0
      %v1984 = vadd.f32 0.0, %v1983
      %v1985 = vpop.f32.mrb[0].mxu0
      %1986 = vmatprep.mubr.bf16.mxu0 0
      %1987 = vmatmul.mubr.bf16.gmra.mrb[0].mxu0 %v1832
      %v1988 = vpop.f32.mrb[0].mxu0
      %v1989 = vadd.f32 0.0, %v1988
      %v1990 = vpop.f32.mrb[0].mxu0
      %v1991 = vpop.f32.mrb[0].mxu0
      %v1992 = vadd.f32 0.0, %v1991
      %v1993 = vpop.f32.mrb[0].mxu0
      %1994 = vdwg.mxu0
      %v1995 = vadd.f32 %v1629, %v1869
      %v1996 = vadd.f32 %v1630, %v1872
      %v1997 = vadd.f32 %v1631, %v1877
      %v1998 = vadd.f32 %v1632, %v1880
      %v1999 = vadd.f32 %v1633, %v1885
      %v2000 = vadd.f32 %v1634, %v1888
      %v2001 = vadd.f32 %v1635, %v1893
      %v2002 = vadd.f32 %v1636, %v1896
      %v2003 = vadd.f32 %v1637, %v1901
      %v2004 = vadd.f32 %v1638, %v1904
      %v2005 = vadd.f32 %v1639, %v1909
      %v2006 = vadd.f32 %v1640, %v1912
      %v2007 = vadd.f32 %v1641, %v1917
      %v2008 = vadd.f32 %v1642, %v1920
      %v2009 = vadd.f32 %v1643, %v1925
      %v2010 = vadd.f32 %v1644, %v1928
      %v2011 = vadd.f32 %v1645, %v1933
      %v2012 = vadd.f32 %v1646, %v1936
      %v2013 = vadd.f32 %v1647, %v1941
      %v2014 = vadd.f32 %v1648, %v1944
      %v2015 = vadd.f32 %v1649, %v1949
      %v2016 = vadd.f32 %v1650, %v1952
      %v2017 = vadd.f32 %v1651, %v1957
      %v2018 = vadd.f32 %v1652, %v1960
      %v2019 = vadd.f32 %v1653, %v1965
      %v2020 = vadd.f32 %v1654, %v1968
      %v2021 = vadd.f32 %v1655, %v1973
      %v2022 = vadd.f32 %v1656, %v1976
      %v2023 = vadd.f32 %v1657, %v1981
      %v2024 = vadd.f32 %v1658, %v1984
      %v2025 = vadd.f32 %v1659, %v1989
      %v2026 = vadd.f32 %v1660, %v1992
      %v2027 = vld [vmem:[%s1664] sm:$0xf]
      %v2028 = vld [vmem:[%s1664 + $0x4] sm:$0xf]
      %v2029 = vld [vmem:[%s1664 + $0x8] sm:$0x1]
      %v2030 = vld [vmem:[%s1664 + $0xc] sm:$0xf]
      %v2031 = vld [vmem:[%s1664 + $0x10] sm:$0xf]
      %v2032 = vld [vmem:[%s1664 + $0x14] sm:$0x1]
      %v2033 = vld [vmem:[%s1664 + $0x18] sm:$0xf]
      %v2034 = vld [vmem:[%s1664 + $0x1c] sm:$0xf]
      %v2035 = vld [vmem:[%s1664 + $0x20] sm:$0x1]
      %v2036 = vld [vmem:[%s1664 + $0x24] sm:$0xf]
      %v2037 = vld [vmem:[%s1664 + $0x28] sm:$0xf]
      %v2038 = vld [vmem:[%s1664 + $0x2c] sm:$0x1]
      %v2039 = vld [vmem:[%s1664 + $0x30] sm:$0xf]
      %v2040 = vld [vmem:[%s1664 + $0x34] sm:$0xf]
      %v2041 = vld [vmem:[%s1664 + $0x38] sm:$0x1]
      %v2042 = vld [vmem:[%s1664 + $0x3c] sm:$0xf]
      %v2043 = vld [vmem:[%s1664 + $0x40] sm:$0xf]
      %v2044 = vld [vmem:[%s1664 + $0x44] sm:$0x1]
      %v2045 = vld [vmem:[%s1664 + $0x48] sm:$0xf]
      %v2046 = vld [vmem:[%s1664 + $0x4c] sm:$0xf]
      %v2047 = vld [vmem:[%s1664 + $0x50] sm:$0x1]
      %v2048 = vld [vmem:[%s1664 + $0x54] sm:$0xf]
      %v2049 = vld [vmem:[%s1664 + $0x58] sm:$0xf]
      %v2050 = vld [vmem:[%s1664 + $0x5c] sm:$0x1]
      %v2051 = vld [vmem:[%s1664 + $0x60] sm:$0xf]
      %v2052 = vld [vmem:[%s1664 + $0x64] sm:$0xf]
      %v2053 = vld [vmem:[%s1664 + $0x68] sm:$0x1]
      %v2054 = vld [vmem:[%s1664 + $0x6c] sm:$0xf]
      %v2055 = vld [vmem:[%s1664 + $0x70] sm:$0xf]
      %v2056 = vld [vmem:[%s1664 + $0x74] sm:$0x1]
      %v2057 = vld [vmem:[%s1664 + $0x78] sm:$0xf]
      %v2058 = vld [vmem:[%s1664 + $0x7c] sm:$0xf]
      %v2059 = vld [vmem:[%s1664 + $0x80] sm:$0x1]
      %v2060 = vld [vmem:[%s1664 + $0x84] sm:$0xf]
      %v2061 = vld [vmem:[%s1664 + $0x88] sm:$0xf]
      %v2062 = vld [vmem:[%s1664 + $0x8c] sm:$0x1]
      %v2063 = vld [vmem:[%s1664 + $0x90] sm:$0xf]
      %v2064 = vld [vmem:[%s1664 + $0x94] sm:$0xf]
      %v2065 = vld [vmem:[%s1664 + $0x98] sm:$0x1]
      %v2066 = vld [vmem:[%s1664 + $0x9c] sm:$0xf]
      %v2067 = vld [vmem:[%s1664 + $0xa0] sm:$0xf]
      %v2068 = vld [vmem:[%s1664 + $0xa4] sm:$0x1]
      %v2069 = vld [vmem:[%s1664 + $0xa8] sm:$0xf]
      %v2070 = vld [vmem:[%s1664 + $0xac] sm:$0xf]
      %v2071 = vld [vmem:[%s1664 + $0xb0] sm:$0x1]
      %v2072 = vld [vmem:[%s1664 + $0xb4] sm:$0xf]
      %v2073 = vld [vmem:[%s1664 + $0xb8] sm:$0xf]
      %v2074 = vld [vmem:[%s1664 + $0xbc] sm:$0x1]
      %v2076 = vshrl.u32 %v2027, 16
      %v2078 = vrot.slane %v2076, 4
      %v2079 = vshll.u32 %v2027, 16
      %v2081 = vrot.slane %v2079, 5
      %v2082 = vor.u32 %v2078, %v2081
      %v2083 = vrot.slane %v2082, 4
      %v2085 = vshll.u32 %v2028, 16
      %v2087 = vrot.slane %v2085, 5
      %v2088 = vsel %vm253, %v2083, %v2087
      %v2089 = vshrl.u32 %v2028, 16
      %v2091 = vrot.slane %v2089, 4
      %v2092 = vor.u32 %v2091, %v2087
      %v2093 = vrot.slane %v2092, 4
      %v2095 = vshll.u32 %v2029, 16
      %v2097 = vrot.slane %v2095, 5
      %v2098 = vsel %vm253, %v2093, %v2097
      %v2100 = vshrl.u32 %v2030, 16
      %v2102 = vrot.slane %v2100, 4
      %v2103 = vshll.u32 %v2030, 16
      %v2105 = vrot.slane %v2103, 5
      %v2106 = vor.u32 %v2102, %v2105
      %v2107 = vrot.slane %v2106, 4
      %v2109 = vshll.u32 %v2031, 16
      %v2111 = vrot.slane %v2109, 5
      %v2112 = vsel %vm253, %v2107, %v2111
      %v2113 = vshrl.u32 %v2031, 16
      %v2115 = vrot.slane %v2113, 4
      %v2116 = vor.u32 %v2115, %v2111
      %v2117 = vrot.slane %v2116, 4
      %v2119 = vshll.u32 %v2032, 16
      %v2121 = vrot.slane %v2119, 5
      %v2122 = vsel %vm253, %v2117, %v2121
      %v2124 = vshrl.u32 %v2033, 16
      %v2126 = vrot.slane %v2124, 4
      %v2127 = vshll.u32 %v2033, 16
      %v2129 = vrot.slane %v2127, 5
      %v2130 = vor.u32 %v2126, %v2129
      %v2131 = vrot.slane %v2130, 4
      %v2133 = vshll.u32 %v2034, 16
      %v2135 = vrot.slane %v2133, 5
      %v2136 = vsel %vm253, %v2131, %v2135
      %v2137 = vshrl.u32 %v2034, 16
      %v2139 = vrot.slane %v2137, 4
      %v2140 = vor.u32 %v2139, %v2135
      %v2141 = vrot.slane %v2140, 4
      %v2143 = vshll.u32 %v2035, 16
      %v2145 = vrot.slane %v2143, 5
      %v2146 = vsel %vm253, %v2141, %v2145
      %v2148 = vshrl.u32 %v2036, 16
      %v2150 = vrot.slane %v2148, 4
      %v2151 = vshll.u32 %v2036, 16
      %v2153 = vrot.slane %v2151, 5
      %v2154 = vor.u32 %v2150, %v2153
      %v2155 = vrot.slane %v2154, 4
      %v2157 = vshll.u32 %v2037, 16
      %v2159 = vrot.slane %v2157, 5
      %v2160 = vsel %vm253, %v2155, %v2159
      %v2161 = vshrl.u32 %v2037, 16
      %v2163 = vrot.slane %v2161, 4
      %v2164 = vor.u32 %v2163, %v2159
      %v2165 = vrot.slane %v2164, 4
      %v2167 = vshll.u32 %v2038, 16
      %v2169 = vrot.slane %v2167, 5
      %v2170 = vsel %vm253, %v2165, %v2169
      %v2172 = vshrl.u32 %v2039, 16
      %v2174 = vrot.slane %v2172, 4
      %v2175 = vshll.u32 %v2039, 16
      %v2177 = vrot.slane %v2175, 5
      %v2178 = vor.u32 %v2174, %v2177
      %v2179 = vrot.slane %v2178, 4
      %v2181 = vshll.u32 %v2040, 16
      %v2183 = vrot.slane %v2181, 5
      %v2184 = vsel %vm253, %v2179, %v2183
      %v2185 = vshrl.u32 %v2040, 16
      %v2187 = vrot.slane %v2185, 4
      %v2188 = vor.u32 %v2187, %v2183
      %v2189 = vrot.slane %v2188, 4
      %v2191 = vshll.u32 %v2041, 16
      %v2193 = vrot.slane %v2191, 5
      %v2194 = vsel %vm253, %v2189, %v2193
      %v2196 = vshrl.u32 %v2042, 16
      %v2198 = vrot.slane %v2196, 4
      %v2199 = vshll.u32 %v2042, 16
      %v2201 = vrot.slane %v2199, 5
      %v2202 = vor.u32 %v2198, %v2201
      %v2203 = vrot.slane %v2202, 4
      %v2205 = vshll.u32 %v2043, 16
      %v2207 = vrot.slane %v2205, 5
      %v2208 = vsel %vm253, %v2203, %v2207
      %v2209 = vshrl.u32 %v2043, 16
      %v2211 = vrot.slane %v2209, 4
      %v2212 = vor.u32 %v2211, %v2207
      %v2213 = vrot.slane %v2212, 4
      %v2215 = vshll.u32 %v2044, 16
      %v2217 = vrot.slane %v2215, 5
      %v2218 = vsel %vm253, %v2213, %v2217
      %v2220 = vshrl.u32 %v2045, 16
      %v2222 = vrot.slane %v2220, 4
      %v2223 = vshll.u32 %v2045, 16
      %v2225 = vrot.slane %v2223, 5
      %v2226 = vor.u32 %v2222, %v2225
      %v2227 = vrot.slane %v2226, 4
      %v2229 = vshll.u32 %v2046, 16
      %v2231 = vrot.slane %v2229, 5
      %v2232 = vsel %vm253, %v2227, %v2231
      %v2233 = vshrl.u32 %v2046, 16
      %v2235 = vrot.slane %v2233, 4
      %v2236 = vor.u32 %v2235, %v2231
      %v2237 = vrot.slane %v2236, 4
      %v2239 = vshll.u32 %v2047, 16
      %v2241 = vrot.slane %v2239, 5
      %v2242 = vsel %vm253, %v2237, %v2241
      %v2244 = vshrl.u32 %v2048, 16
      %v2246 = vrot.slane %v2244, 4
      %v2247 = vshll.u32 %v2048, 16
      %v2249 = vrot.slane %v2247, 5
      %v2250 = vor.u32 %v2246, %v2249
      %v2251 = vrot.slane %v2250, 4
      %v2253 = vshll.u32 %v2049, 16
      %v2255 = vrot.slane %v2253, 5
      %v2256 = vsel %vm253, %v2251, %v2255
      %v2257 = vshrl.u32 %v2049, 16
      %v2259 = vrot.slane %v2257, 4
      %v2260 = vor.u32 %v2259, %v2255
      %v2261 = vrot.slane %v2260, 4
      %v2263 = vshll.u32 %v2050, 16
      %v2265 = vrot.slane %v2263, 5
      %v2266 = vsel %vm253, %v2261, %v2265
      %v2268 = vshrl.u32 %v2051, 16
      %v2270 = vrot.slane %v2268, 4
      %v2271 = vshll.u32 %v2051, 16
      %v2273 = vrot.slane %v2271, 5
      %v2274 = vor.u32 %v2270, %v2273
      %v2275 = vrot.slane %v2274, 4
      %v2277 = vshll.u32 %v2052, 16
      %v2279 = vrot.slane %v2277, 5
      %v2280 = vsel %vm253, %v2275, %v2279
      %v2281 = vshrl.u32 %v2052, 16
      %v2283 = vrot.slane %v2281, 4
      %v2284 = vor.u32 %v2283, %v2279
      %v2285 = vrot.slane %v2284, 4
      %v2287 = vshll.u32 %v2053, 16
      %v2289 = vrot.slane %v2287, 5
      %v2290 = vsel %vm253, %v2285, %v2289
      %v2292 = vshrl.u32 %v2054, 16
      %v2294 = vrot.slane %v2292, 4
      %v2295 = vshll.u32 %v2054, 16
      %v2297 = vrot.slane %v2295, 5
      %v2298 = vor.u32 %v2294, %v2297
      %v2299 = vrot.slane %v2298, 4
      %v2301 = vshll.u32 %v2055, 16
      %v2303 = vrot.slane %v2301, 5
      %v2304 = vsel %vm253, %v2299, %v2303
      %v2305 = vshrl.u32 %v2055, 16
      %v2307 = vrot.slane %v2305, 4
      %v2308 = vor.u32 %v2307, %v2303
      %v2309 = vrot.slane %v2308, 4
      %v2311 = vshll.u32 %v2056, 16
      %v2313 = vrot.slane %v2311, 5
      %v2314 = vsel %vm253, %v2309, %v2313
      %v2316 = vshrl.u32 %v2057, 16
      %v2318 = vrot.slane %v2316, 4
      %v2319 = vshll.u32 %v2057, 16
      %v2321 = vrot.slane %v2319, 5
      %v2322 = vor.u32 %v2318, %v2321
      %v2323 = vrot.slane %v2322, 4
      %v2325 = vshll.u32 %v2058, 16
      %v2327 = vrot.slane %v2325, 5
      %v2328 = vsel %vm253, %v2323, %v2327
      %v2329 = vshrl.u32 %v2058, 16
      %v2331 = vrot.slane %v2329, 4
      %v2332 = vor.u32 %v2331, %v2327
      %v2333 = vrot.slane %v2332, 4
      %v2335 = vshll.u32 %v2059, 16
      %v2337 = vrot.slane %v2335, 5
      %v2338 = vsel %vm253, %v2333, %v2337
      %v2340 = vshrl.u32 %v2060, 16
      %v2342 = vrot.slane %v2340, 4
      %v2343 = vshll.u32 %v2060, 16
      %v2345 = vrot.slane %v2343, 5
      %v2346 = vor.u32 %v2342, %v2345
      %v2347 = vrot.slane %v2346, 4
      %v2349 = vshll.u32 %v2061, 16
      %v2351 = vrot.slane %v2349, 5
      %v2352 = vsel %vm253, %v2347, %v2351
      %v2353 = vshrl.u32 %v2061, 16
      %v2355 = vrot.slane %v2353, 4
      %v2356 = vor.u32 %v2355, %v2351
      %v2357 = vrot.slane %v2356, 4
      %v2359 = vshll.u32 %v2062, 16
      %v2361 = vrot.slane %v2359, 5
      %v2362 = vsel %vm253, %v2357, %v2361
      %v2364 = vshrl.u32 %v2063, 16
      %v2366 = vrot.slane %v2364, 4
      %v2367 = vshll.u32 %v2063, 16
      %v2369 = vrot.slane %v2367, 5
      %v2370 = vor.u32 %v2366, %v2369
      %v2371 = vrot.slane %v2370, 4
      %v2373 = vshll.u32 %v2064, 16
      %v2375 = vrot.slane %v2373, 5
      %v2376 = vsel %vm253, %v2371, %v2375
      %v2377 = vshrl.u32 %v2064, 16
      %v2379 = vrot.slane %v2377, 4
      %v2380 = vor.u32 %v2379, %v2375
      %v2381 = vrot.slane %v2380, 4
      %v2383 = vshll.u32 %v2065, 16
      %v2385 = vrot.slane %v2383, 5
      %v2386 = vsel %vm253, %v2381, %v2385
      %v2388 = vshrl.u32 %v2066, 16
      %v2390 = vrot.slane %v2388, 4
      %v2391 = vshll.u32 %v2066, 16
      %v2393 = vrot.slane %v2391, 5
      %v2394 = vor.u32 %v2390, %v2393
      %v2395 = vrot.slane %v2394, 4
      %v2397 = vshll.u32 %v2067, 16
      %v2399 = vrot.slane %v2397, 5
      %v2400 = vsel %vm253, %v2395, %v2399
      %v2401 = vshrl.u32 %v2067, 16
      %v2403 = vrot.slane %v2401, 4
      %v2404 = vor.u32 %v2403, %v2399
      %v2405 = vrot.slane %v2404, 4
      %v2407 = vshll.u32 %v2068, 16
      %v2409 = vrot.slane %v2407, 5
      %v2410 = vsel %vm253, %v2405, %v2409
      %v2412 = vshrl.u32 %v2069, 16
      %v2414 = vrot.slane %v2412, 4
      %v2415 = vshll.u32 %v2069, 16
      %v2417 = vrot.slane %v2415, 5
      %v2418 = vor.u32 %v2414, %v2417
      %v2419 = vrot.slane %v2418, 4
      %v2421 = vshll.u32 %v2070, 16
      %v2423 = vrot.slane %v2421, 5
      %v2424 = vsel %vm253, %v2419, %v2423
      %v2425 = vshrl.u32 %v2070, 16
      %v2427 = vrot.slane %v2425, 4
      %v2428 = vor.u32 %v2427, %v2423
      %v2429 = vrot.slane %v2428, 4
      %v2431 = vshll.u32 %v2071, 16
      %v2433 = vrot.slane %v2431, 5
      %v2434 = vsel %vm253, %v2429, %v2433
      %v2436 = vshrl.u32 %v2072, 16
      %v2438 = vrot.slane %v2436, 4
      %v2439 = vshll.u32 %v2072, 16
      %v2441 = vrot.slane %v2439, 5
      %v2442 = vor.u32 %v2438, %v2441
      %v2443 = vrot.slane %v2442, 4
      %v2445 = vshll.u32 %v2073, 16
      %v2447 = vrot.slane %v2445, 5
      %v2448 = vsel %vm253, %v2443, %v2447
      %v2449 = vshrl.u32 %v2073, 16
      %v2451 = vrot.slane %v2449, 4
      %v2452 = vor.u32 %v2451, %v2447
      %v2453 = vrot.slane %v2452, 4
      %v2455 = vshll.u32 %v2074, 16
      %v2457 = vrot.slane %v2455, 5
      %v2458 = vsel %vm253, %v2453, %v2457
      %s2459 = scalar_lea.vmem %s1, 32
      %v2460 = vld [vmem:[%s2459] sm:$0xf]
      %v2461 = vld [vmem:[%s2459 + $0x4] sm:$0xf]
      %v2462 = vunpack.c.l.b16 %v2088
      %v2463 = vunpack.c.l.b16 %v2098
      %v2464 = vunpack.c.l.b16 %v2112
      %v2465 = vunpack.c.l.b16 %v2122
      %v2466 = vunpack.c.l.b16 %v2136
      %v2467 = vunpack.c.l.b16 %v2146
      %v2468 = vunpack.c.l.b16 %v2160
      %v2469 = vunpack.c.l.b16 %v2170
      %v2470 = vunpack.c.l.b16 %v2184
      %v2471 = vunpack.c.l.b16 %v2194
      %v2472 = vunpack.c.l.b16 %v2208
      %v2473 = vunpack.c.l.b16 %v2218
      %v2474 = vunpack.c.l.b16 %v2232
      %v2475 = vunpack.c.l.b16 %v2242
      %v2476 = vunpack.c.l.b16 %v2256
      %v2477 = vunpack.c.l.b16 %v2266
      %v2478 = vunpack.c.l.b16 %v2280
      %v2479 = vunpack.c.l.b16 %v2290
      %v2480 = vunpack.c.l.b16 %v2304
      %v2481 = vunpack.c.l.b16 %v2314
      %v2482 = vunpack.c.l.b16 %v2328
      %v2483 = vunpack.c.l.b16 %v2338
      %v2484 = vunpack.c.l.b16 %v2352
      %v2485 = vunpack.c.l.b16 %v2362
      %v2486 = vunpack.c.l.b16 %v2376
      %v2487 = vunpack.c.l.b16 %v2386
      %v2488 = vunpack.c.l.b16 %v2400
      %v2489 = vunpack.c.l.b16 %v2410
      %v2490 = vunpack.c.l.b16 %v2424
      %v2491 = vunpack.c.l.b16 %v2434
      %v2492 = vunpack.c.l.b16 %v2448
      %v2493 = vunpack.c.l.b16 %v2458
      %v2494 = vpack.c.b16 %v2463, %v2462
      %v2495 = vpack.c.b16 %v2465, %v2464
      %v2496 = vpack.c.b16 %v2467, %v2466
      %v2497 = vpack.c.b16 %v2469, %v2468
      %v2498 = vpack.c.b16 %v2471, %v2470
      %v2499 = vpack.c.b16 %v2473, %v2472
      %v2500 = vpack.c.b16 %v2475, %v2474
      %v2501 = vpack.c.b16 %v2477, %v2476
      %v2502 = vpack.c.b16 %v2479, %v2478
      %v2503 = vpack.c.b16 %v2481, %v2480
      %v2504 = vpack.c.b16 %v2483, %v2482
      %v2505 = vpack.c.b16 %v2485, %v2484
      %v2506 = vpack.c.b16 %v2487, %v2486
      %v2507 = vpack.c.b16 %v2489, %v2488
      %v2508 = vpack.c.b16 %v2491, %v2490
      %v2509 = vpack.c.b16 %v2493, %v2492
      %v2512 = vunpack.c.l.b16 %v2460
      %v2513 = vunpack.c.l.b16 %v2461
      %v2514 = vpack.c.b16 %v2513, %v2512
      %v2517 = vsel %vm695, %v2494, 0
      %v2520 = vsel %vm695, %v2495, 0
      %v2523 = vsel %vm695, %v2496, 0
      %v2526 = vsel %vm695, %v2497, 0
      %v2529 = vsel %vm695, %v2498, 0
      %v2532 = vsel %vm695, %v2499, 0
      %v2535 = vsel %vm695, %v2500, 0
      %v2538 = vsel %vm695, %v2501, 0
      %v2541 = vsel %vm695, %v2502, 0
      %v2544 = vsel %vm695, %v2503, 0
      %v2547 = vsel %vm695, %v2504, 0
      %v2550 = vsel %vm695, %v2505, 0
      %v2553 = vsel %vm695, %v2506, 0
      %v2556 = vsel %vm695, %v2507, 0
      %v2559 = vsel %vm695, %v2508, 0
      %v2562 = vsel %vm695, %v2509, 0
      %2564 = vmatprep.subr.bf16.mxu0 0
      %2565 = vmatpush1.bf16.msra.mxu0 %v2514
      %2566 = vmatprep.subr.bf16.mxu0 0
      %2567 = vmatpush1.bf16.msra.mxu0 0
      %2568 = vmatprep.subr.bf16.mxu0 0
      %2569 = vmatpush1.bf16.msra.mxu0 0
      %2570 = vmatprep.subr.bf16.mxu0 0
      %2571 = vmatpush1.bf16.msra.mxu0 0
      %2572 = vmatprep.subr.bf16.mxu0 0
      %2573 = vmatpush1.bf16.msra.mxu0 0
      %2574 = vmatprep.subr.bf16.mxu0 0
      %2575 = vmatpush1.bf16.msra.mxu0 0
      %2576 = vmatprep.subr.bf16.mxu0 0
      %2577 = vmatpush1.bf16.msra.mxu0 0
      %2578 = vmatprep.subr.bf16.mxu0 0
      %2579 = vmatpush1.bf16.msra.mxu0 0
      %2580 = vmatprep.subr.bf16.mxu0 0
      %2581 = vmatpush1.bf16.msra.mxu0 0
      %2582 = vmatprep.subr.bf16.mxu0 0
      %2583 = vmatpush1.bf16.msra.mxu0 0
      %2584 = vmatprep.subr.bf16.mxu0 0
      %2585 = vmatpush1.bf16.msra.mxu0 0
      %2586 = vmatprep.subr.bf16.mxu0 0
      %2587 = vmatpush1.bf16.msra.mxu0 0
      %2588 = vmatprep.subr.bf16.mxu0 0
      %2589 = vmatpush1.bf16.msra.mxu0 0
      %2590 = vmatprep.subr.bf16.mxu0 0
      %2591 = vmatpush1.bf16.msra.mxu0 0
      %2592 = vmatprep.subr.bf16.mxu0 0
      %2593 = vmatpush1.bf16.msra.mxu0 0
      %2594 = vmatprep.subr.bf16.mxu0 0
      %2595 = vmatpush1.bf16.msra.mxu0 0
      %2596 = vmatprep.mubr.bf16.mxu0 0
      %2597 = vmatmul.mubr.bf16.gmra.mrb[0].mxu0 %v2517
      %v2598 = vpop.f32.mrb[0].mxu0
      %v2599 = vadd.f32 0.0, %v2598
      %v2600 = vpop.f32.mrb[0].mxu0
      %v2601 = vpop.f32.mrb[0].mxu0
      %v2602 = vadd.f32 0.0, %v2601
      %v2603 = vpop.f32.mrb[0].mxu0
      %2604 = vmatprep.mubr.bf16.mxu0 0
      %2605 = vmatmul.mubr.bf16.gmra.mrb[0].mxu0 %v2520
      %v2606 = vpop.f32.mrb[0].mxu0
      %v2607 = vadd.f32 0.0, %v2606
      %v2608 = vpop.f32.mrb[0].mxu0
      %v2609 = vpop.f32.mrb[0].mxu0
      %v2610 = vadd.f32 0.0, %v2609
      %v2611 = vpop.f32.mrb[0].mxu0
      %2612 = vmatprep.mubr.bf16.mxu0 0
      %2613 = vmatmul.mubr.bf16.gmra.mrb[0].mxu0 %v2523
      %v2614 = vpop.f32.mrb[0].mxu0
      %v2615 = vadd.f32 0.0, %v2614
      %v2616 = vpop.f32.mrb[0].mxu0
      %v2617 = vpop.f32.mrb[0].mxu0
      %v2618 = vadd.f32 0.0, %v2617
      %v2619 = vpop.f32.mrb[0].mxu0
      %2620 = vmatprep.mubr.bf16.mxu0 0
      %2621 = vmatmul.mubr.bf16.gmra.mrb[0].mxu0 %v2526
      %v2622 = vpop.f32.mrb[0].mxu0
      %v2623 = vadd.f32 0.0, %v2622
      %v2624 = vpop.f32.mrb[0].mxu0
      %v2625 = vpop.f32.mrb[0].mxu0
      %v2626 = vadd.f32 0.0, %v2625
      %v2627 = vpop.f32.mrb[0].mxu0
      %2628 = vmatprep.mubr.bf16.mxu0 0
      %2629 = vmatmul.mubr.bf16.gmra.mrb[0].mxu0 %v2529
      %v2630 = vpop.f32.mrb[0].mxu0
      %v2631 = vadd.f32 0.0, %v2630
      %v2632 = vpop.f32.mrb[0].mxu0
      %v2633 = vpop.f32.mrb[0].mxu0
      %v2634 = vadd.f32 0.0, %v2633
      %v2635 = vpop.f32.mrb[0].mxu0
      %2636 = vmatprep.mubr.bf16.mxu0 0
      %2637 = vmatmul.mubr.bf16.gmra.mrb[0].mxu0 %v2532
      %v2638 = vpop.f32.mrb[0].mxu0
      %v2639 = vadd.f32 0.0, %v2638
      %v2640 = vpop.f32.mrb[0].mxu0
      %v2641 = vpop.f32.mrb[0].mxu0
      %v2642 = vadd.f32 0.0, %v2641
      %v2643 = vpop.f32.mrb[0].mxu0
      %2644 = vmatprep.mubr.bf16.mxu0 0
      %2645 = vmatmul.mubr.bf16.gmra.mrb[0].mxu0 %v2535
      %v2646 = vpop.f32.mrb[0].mxu0
      %v2647 = vadd.f32 0.0, %v2646
      %v2648 = vpop.f32.mrb[0].mxu0
      %v2649 = vpop.f32.mrb[0].mxu0
      %v2650 = vadd.f32 0.0, %v2649
      %v2651 = vpop.f32.mrb[0].mxu0
      %2652 = vmatprep.mubr.bf16.mxu0 0
      %2653 = vmatmul.mubr.bf16.gmra.mrb[0].mxu0 %v2538
      %v2654 = vpop.f32.mrb[0].mxu0
      %v2655 = vadd.f32 0.0, %v2654
      %v2656 = vpop.f32.mrb[0].mxu0
      %v2657 = vpop.f32.mrb[0].mxu0
      %v2658 = vadd.f32 0.0, %v2657
      %v2659 = vpop.f32.mrb[0].mxu0
      %2660 = vmatprep.mubr.bf16.mxu0 0
      %2661 = vmatmul.mubr.bf16.gmra.mrb[0].mxu0 %v2541
      %v2662 = vpop.f32.mrb[0].mxu0
      %v2663 = vadd.f32 0.0, %v2662
      %v2664 = vpop.f32.mrb[0].mxu0
      %v2665 = vpop.f32.mrb[0].mxu0
      %v2666 = vadd.f32 0.0, %v2665
      %v2667 = vpop.f32.mrb[0].mxu0
      %2668 = vmatprep.mubr.bf16.mxu0 0
      %2669 = vmatmul.mubr.bf16.gmra.mrb[0].mxu0 %v2544
      %v2670 = vpop.f32.mrb[0].mxu0
      %v2671 = vadd.f32 0.0, %v2670
      %v2672 = vpop.f32.mrb[0].mxu0
      %v2673 = vpop.f32.mrb[0].mxu0
      %v2674 = vadd.f32 0.0, %v2673
      %v2675 = vpop.f32.mrb[0].mxu0
      %2676 = vmatprep.mubr.bf16.mxu0 0
      %2677 = vmatmul.mubr.bf16.gmra.mrb[0].mxu0 %v2547
      %v2678 = vpop.f32.mrb[0].mxu0
      %v2679 = vadd.f32 0.0, %v2678
      %v2680 = vpop.f32.mrb[0].mxu0
      %v2681 = vpop.f32.mrb[0].mxu0
      %v2682 = vadd.f32 0.0, %v2681
      %v2683 = vpop.f32.mrb[0].mxu0
      %2684 = vmatprep.mubr.bf16.mxu0 0
      %2685 = vmatmul.mubr.bf16.gmra.mrb[0].mxu0 %v2550
      %v2686 = vpop.f32.mrb[0].mxu0
      %v2687 = vadd.f32 0.0, %v2686
      %v2688 = vpop.f32.mrb[0].mxu0
      %v2689 = vpop.f32.mrb[0].mxu0
      %v2690 = vadd.f32 0.0, %v2689
      %v2691 = vpop.f32.mrb[0].mxu0
      %2692 = vmatprep.mubr.bf16.mxu0 0
      %2693 = vmatmul.mubr.bf16.gmra.mrb[0].mxu0 %v2553
      %v2694 = vpop.f32.mrb[0].mxu0
      %v2695 = vadd.f32 0.0, %v2694
      %v2696 = vpop.f32.mrb[0].mxu0
      %v2697 = vpop.f32.mrb[0].mxu0
      %v2698 = vadd.f32 0.0, %v2697
      %v2699 = vpop.f32.mrb[0].mxu0
      %2700 = vmatprep.mubr.bf16.mxu0 0
      %2701 = vmatmul.mubr.bf16.gmra.mrb[0].mxu0 %v2556
      %v2702 = vpop.f32.mrb[0].mxu0
      %v2703 = vadd.f32 0.0, %v2702
      %v2704 = vpop.f32.mrb[0].mxu0
      %v2705 = vpop.f32.mrb[0].mxu0
      %v2706 = vadd.f32 0.0, %v2705
      %v2707 = vpop.f32.mrb[0].mxu0
      %2708 = vmatprep.mubr.bf16.mxu0 0
      %2709 = vmatmul.mubr.bf16.gmra.mrb[0].mxu0 %v2559
      %v2710 = vpop.f32.mrb[0].mxu0
      %v2711 = vadd.f32 0.0, %v2710
      %v2712 = vpop.f32.mrb[0].mxu0
      %v2713 = vpop.f32.mrb[0].mxu0
      %v2714 = vadd.f32 0.0, %v2713
      %v2715 = vpop.f32.mrb[0].mxu0
      %2716 = vmatprep.mubr.bf16.mxu0 0
      %2717 = vmatmul.mubr.bf16.gmra.mrb[0].mxu0 %v2562
      %v2718 = vpop.f32.mrb[0].mxu0
      %v2719 = vadd.f32 0.0, %v2718
      %v2720 = vpop.f32.mrb[0].mxu0
      %v2721 = vpop.f32.mrb[0].mxu0
      %v2722 = vadd.f32 0.0, %v2721
      %v2723 = vpop.f32.mrb[0].mxu0
      %2724 = vdwg.mxu0
      %v2725 = vadd.f32 %v1995, %v2599
      %v2726 = vadd.f32 %v1996, %v2602
      %v2727 = vadd.f32 %v1997, %v2607
      %v2728 = vadd.f32 %v1998, %v2610
      %v2729 = vadd.f32 %v1999, %v2615
      %v2730 = vadd.f32 %v2000, %v2618
      %v2731 = vadd.f32 %v2001, %v2623
      %v2732 = vadd.f32 %v2002, %v2626
      %v2733 = vadd.f32 %v2003, %v2631
      %v2734 = vadd.f32 %v2004, %v2634
      %v2735 = vadd.f32 %v2005, %v2639
      %v2736 = vadd.f32 %v2006, %v2642
      %v2737 = vadd.f32 %v2007, %v2647
      %v2738 = vadd.f32 %v2008, %v2650
      %v2739 = vadd.f32 %v2009, %v2655
      %v2740 = vadd.f32 %v2010, %v2658
      %v2741 = vadd.f32 %v2011, %v2663
      %v2742 = vadd.f32 %v2012, %v2666
      %v2743 = vadd.f32 %v2013, %v2671
      %v2744 = vadd.f32 %v2014, %v2674
      %v2745 = vadd.f32 %v2015, %v2679
      %v2746 = vadd.f32 %v2016, %v2682
      %v2747 = vadd.f32 %v2017, %v2687
      %v2748 = vadd.f32 %v2018, %v2690
      %v2749 = vadd.f32 %v2019, %v2695
      %v2750 = vadd.f32 %v2020, %v2698
      %v2751 = vadd.f32 %v2021, %v2703
      %v2752 = vadd.f32 %v2022, %v2706
      %v2753 = vadd.f32 %v2023, %v2711
      %v2754 = vadd.f32 %v2024, %v2714
      %v2755 = vadd.f32 %v2025, %v2719
      %v2756 = vadd.f32 %v2026, %v2722
      %v2757 = vld [vmem:[%s1664] sm:$0xe]
      %v2758 = vld [vmem:[%s1664 + $0xc] sm:$0xe]
      %v2759 = vld [vmem:[%s1664 + $0x18] sm:$0xe]
      %v2760 = vld [vmem:[%s1664 + $0x24] sm:$0xe]
      %v2761 = vld [vmem:[%s1664 + $0x30] sm:$0xe]
      %v2762 = vld [vmem:[%s1664 + $0x3c] sm:$0xe]
      %v2763 = vld [vmem:[%s1664 + $0x48] sm:$0xe]
      %v2764 = vld [vmem:[%s1664 + $0x54] sm:$0xe]
      %v2765 = vld [vmem:[%s1664 + $0x60] sm:$0xe]
      %v2766 = vld [vmem:[%s1664 + $0x6c] sm:$0xe]
      %v2767 = vld [vmem:[%s1664 + $0x78] sm:$0xe]
      %v2768 = vld [vmem:[%s1664 + $0x84] sm:$0xe]
      %v2769 = vld [vmem:[%s1664 + $0x90] sm:$0xe]
      %v2770 = vld [vmem:[%s1664 + $0x9c] sm:$0xe]
      %v2771 = vld [vmem:[%s1664 + $0xa8] sm:$0xe]
      %v2772 = vld [vmem:[%s1664 + $0xb4] sm:$0xe]
      %v2821 = vrot.slane %v2757, 5
      %v2822 = vrot.slane %v2821, 4
      %v2823 = vrot.slane %v2028, 5
      %v2824 = vsel %vm1250, %v2822, %v2823
      %v2825 = vrot.slane %v2823, 4
      %v2826 = vrot.slane %v2029, 5
      %v2827 = vsel %vm1250, %v2825, %v2826
      %v2828 = vrot.slane %v2758, 5
      %v2829 = vrot.slane %v2828, 4
      %v2830 = vrot.slane %v2031, 5
      %v2831 = vsel %vm1250, %v2829, %v2830
      %v2832 = vrot.slane %v2830, 4
      %v2833 = vrot.slane %v2032, 5
      %v2834 = vsel %vm1250, %v2832, %v2833
      %v2835 = vrot.slane %v2759, 5
      %v2836 = vrot.slane %v2835, 4
      %v2837 = vrot.slane %v2034, 5
      %v2838 = vsel %vm1250, %v2836, %v2837
      %v2839 = vrot.slane %v2837, 4
      %v2840 = vrot.slane %v2035, 5
      %v2841 = vsel %vm1250, %v2839, %v2840
      %v2842 = vrot.slane %v2760, 5
      %v2843 = vrot.slane %v2842, 4
      %v2844 = vrot.slane %v2037, 5
      %v2845 = vsel %vm1250, %v2843, %v2844
      %v2846 = vrot.slane %v2844, 4
      %v2847 = vrot.slane %v2038, 5
      %v2848 = vsel %vm1250, %v2846, %v2847
      %v2849 = vrot.slane %v2761, 5
      %v2850 = vrot.slane %v2849, 4
      %v2851 = vrot.slane %v2040, 5
      %v2852 = vsel %vm1250, %v2850, %v2851
      %v2853 = vrot.slane %v2851, 4
      %v2854 = vrot.slane %v2041, 5
      %v2855 = vsel %vm1250, %v2853, %v2854
      %v2856 = vrot.slane %v2762, 5
      %v2857 = vrot.slane %v2856, 4
      %v2858 = vrot.slane %v2043, 5
      %v2859 = vsel %vm1250, %v2857, %v2858
      %v2860 = vrot.slane %v2858, 4
      %v2861 = vrot.slane %v2044, 5
      %v2862 = vsel %vm1250, %v2860, %v2861
      %v2863 = vrot.slane %v2763, 5
      %v2864 = vrot.slane %v2863, 4
      %v2865 = vrot.slane %v2046, 5
      %v2866 = vsel %vm1250, %v2864, %v2865
      %v2867 = vrot.slane %v2865, 4
      %v2868 = vrot.slane %v2047, 5
      %v2869 = vsel %vm1250, %v2867, %v2868
      %v2870 = vrot.slane %v2764, 5
      %v2871 = vrot.slane %v2870, 4
      %v2872 = vrot.slane %v2049, 5
      %v2873 = vsel %vm1250, %v2871, %v2872
      %v2874 = vrot.slane %v2872, 4
      %v2875 = vrot.slane %v2050, 5
      %v2876 = vsel %vm1250, %v2874, %v2875
      %v2877 = vrot.slane %v2765, 5
      %v2878 = vrot.slane %v2877, 4
      %v2879 = vrot.slane %v2052, 5
      %v2880 = vsel %vm1250, %v2878, %v2879
      %v2881 = vrot.slane %v2879, 4
      %v2882 = vrot.slane %v2053, 5
      %v2883 = vsel %vm1250, %v2881, %v2882
      %v2884 = vrot.slane %v2766, 5
      %v2885 = vrot.slane %v2884, 4
      %v2886 = vrot.slane %v2055, 5
      %v2887 = vsel %vm1250, %v2885, %v2886
      %v2888 = vrot.slane %v2886, 4
      %v2889 = vrot.slane %v2056, 5
      %v2890 = vsel %vm1250, %v2888, %v2889
      %v2891 = vrot.slane %v2767, 5
      %v2892 = vrot.slane %v2891, 4
      %v2893 = vrot.slane %v2058, 5
      %v2894 = vsel %vm1250, %v2892, %v2893
      %v2895 = vrot.slane %v2893, 4
      %v2896 = vrot.slane %v2059, 5
      %v2897 = vsel %vm1250, %v2895, %v2896
      %v2898 = vrot.slane %v2768, 5
      %v2899 = vrot.slane %v2898, 4
      %v2900 = vrot.slane %v2061, 5
      %v2901 = vsel %vm1250, %v2899, %v2900
      %v2902 = vrot.slane %v2900, 4
      %v2903 = vrot.slane %v2062, 5
      %v2904 = vsel %vm1250, %v2902, %v2903
      %v2905 = vrot.slane %v2769, 5
      %v2906 = vrot.slane %v2905, 4
      %v2907 = vrot.slane %v2064, 5
      %v2908 = vsel %vm1250, %v2906, %v2907
      %v2909 = vrot.slane %v2907, 4
      %v2910 = vrot.slane %v2065, 5
      %v2911 = vsel %vm1250, %v2909, %v2910
      %v2912 = vrot.slane %v2770, 5
      %v2913 = vrot.slane %v2912, 4
      %v2914 = vrot.slane %v2067, 5
      %v2915 = vsel %vm1250, %v2913, %v2914
      %v2916 = vrot.slane %v2914, 4
      %v2917 = vrot.slane %v2068, 5
      %v2918 = vsel %vm1250, %v2916, %v2917
      %v2919 = vrot.slane %v2771, 5
      %v2920 = vrot.slane %v2919, 4
      %v2921 = vrot.slane %v2070, 5
      %v2922 = vsel %vm1250, %v2920, %v2921
      %v2923 = vrot.slane %v2921, 4
      %v2924 = vrot.slane %v2071, 5
      %v2925 = vsel %vm1250, %v2923, %v2924
      %v2926 = vrot.slane %v2772, 5
      %v2927 = vrot.slane %v2926, 4
      %v2928 = vrot.slane %v2073, 5
      %v2929 = vsel %vm1250, %v2927, %v2928
      %v2930 = vrot.slane %v2928, 4
      %v2931 = vrot.slane %v2074, 5
      %v2932 = vsel %vm1250, %v2930, %v2931
      %s2933 = scalar_lea.vmem %s1, 40
      %v2934 = vld [vmem:[%s2933] sm:$0xf]
      %v2935 = vld [vmem:[%s2933 + $0x4] sm:$0xf]
      %v2936 = vunpack.c.l.b16 %v2824
      %v2937 = vunpack.c.l.b16 %v2827
      %v2938 = vunpack.c.l.b16 %v2831
      %v2939 = vunpack.c.l.b16 %v2834
      %v2940 = vunpack.c.l.b16 %v2838
      %v2941 = vunpack.c.l.b16 %v2841
      %v2942 = vunpack.c.l.b16 %v2845
      %v2943 = vunpack.c.l.b16 %v2848
      %v2944 = vunpack.c.l.b16 %v2852
      %v2945 = vunpack.c.l.b16 %v2855
      %v2946 = vunpack.c.l.b16 %v2859
      %v2947 = vunpack.c.l.b16 %v2862
      %v2948 = vunpack.c.l.b16 %v2866
      %v2949 = vunpack.c.l.b16 %v2869
      %v2950 = vunpack.c.l.b16 %v2873
      %v2951 = vunpack.c.l.b16 %v2876
      %v2952 = vunpack.c.l.b16 %v2880
      %v2953 = vunpack.c.l.b16 %v2883
      %v2954 = vunpack.c.l.b16 %v2887
      %v2955 = vunpack.c.l.b16 %v2890
      %v2956 = vunpack.c.l.b16 %v2894
      %v2957 = vunpack.c.l.b16 %v2897
      %v2958 = vunpack.c.l.b16 %v2901
      %v2959 = vunpack.c.l.b16 %v2904
      %v2960 = vunpack.c.l.b16 %v2908
      %v2961 = vunpack.c.l.b16 %v2911
      %v2962 = vunpack.c.l.b16 %v2915
      %v2963 = vunpack.c.l.b16 %v2918
      %v2964 = vunpack.c.l.b16 %v2922
      %v2965 = vunpack.c.l.b16 %v2925
      %v2966 = vunpack.c.l.b16 %v2929
      %v2967 = vunpack.c.l.b16 %v2932
      %v2968 = vpack.c.b16 %v2937, %v2936
      %v2969 = vpack.c.b16 %v2939, %v2938
      %v2970 = vpack.c.b16 %v2941, %v2940
      %v2971 = vpack.c.b16 %v2943, %v2942
      %v2972 = vpack.c.b16 %v2945, %v2944
      %v2973 = vpack.c.b16 %v2947, %v2946
      %v2974 = vpack.c.b16 %v2949, %v2948
      %v2975 = vpack.c.b16 %v2951, %v2950
      %v2976 = vpack.c.b16 %v2953, %v2952
      %v2977 = vpack.c.b16 %v2955, %v2954
      %v2978 = vpack.c.b16 %v2957, %v2956
      %v2979 = vpack.c.b16 %v2959, %v2958
      %v2980 = vpack.c.b16 %v2961, %v2960
      %v2981 = vpack.c.b16 %v2963, %v2962
      %v2982 = vpack.c.b16 %v2965, %v2964
      %v2983 = vpack.c.b16 %v2967, %v2966
      %v2986 = vunpack.c.l.b16 %v2934
      %v2987 = vunpack.c.l.b16 %v2935
      %v2988 = vpack.c.b16 %v2987, %v2986
      %v2991 = vsel %vm695, %v2968, 0
      %v2994 = vsel %vm695, %v2969, 0
      %v2997 = vsel %vm695, %v2970, 0
      %v3000 = vsel %vm695, %v2971, 0
      %v3003 = vsel %vm695, %v2972, 0
      %v3006 = vsel %vm695, %v2973, 0
      %v3009 = vsel %vm695, %v2974, 0
      %v3012 = vsel %vm695, %v2975, 0
      %v3015 = vsel %vm695, %v2976, 0
      %v3018 = vsel %vm695, %v2977, 0
      %v3021 = vsel %vm695, %v2978, 0
      %v3024 = vsel %vm695, %v2979, 0
      %v3027 = vsel %vm695, %v2980, 0
      %v3030 = vsel %vm695, %v2981, 0
      %v3033 = vsel %vm695, %v2982, 0
      %v3036 = vsel %vm695, %v2983, 0
      %3038 = vmatprep.subr.bf16.mxu0 0
      %3039 = vmatpush1.bf16.msra.mxu0 %v2988
      %3040 = vmatprep.subr.bf16.mxu0 0
      %3041 = vmatpush1.bf16.msra.mxu0 0
      %3042 = vmatprep.subr.bf16.mxu0 0
      %3043 = vmatpush1.bf16.msra.mxu0 0
      %3044 = vmatprep.subr.bf16.mxu0 0
      %3045 = vmatpush1.bf16.msra.mxu0 0
      %3046 = vmatprep.subr.bf16.mxu0 0
      %3047 = vmatpush1.bf16.msra.mxu0 0
      %3048 = vmatprep.subr.bf16.mxu0 0
      %3049 = vmatpush1.bf16.msra.mxu0 0
      %3050 = vmatprep.subr.bf16.mxu0 0
      %3051 = vmatpush1.bf16.msra.mxu0 0
      %3052 = vmatprep.subr.bf16.mxu0 0
      %3053 = vmatpush1.bf16.msra.mxu0 0
      %3054 = vmatprep.subr.bf16.mxu0 0
      %3055 = vmatpush1.bf16.msra.mxu0 0
      %3056 = vmatprep.subr.bf16.mxu0 0
      %3057 = vmatpush1.bf16.msra.mxu0 0
      %3058 = vmatprep.subr.bf16.mxu0 0
      %3059 = vmatpush1.bf16.msra.mxu0 0
      %3060 = vmatprep.subr.bf16.mxu0 0
      %3061 = vmatpush1.bf16.msra.mxu0 0
      %3062 = vmatprep.subr.bf16.mxu0 0
      %3063 = vmatpush1.bf16.msra.mxu0 0
      %3064 = vmatprep.subr.bf16.mxu0 0
      %3065 = vmatpush1.bf16.msra.mxu0 0
      %3066 = vmatprep.subr.bf16.mxu0 0
      %3067 = vmatpush1.bf16.msra.mxu0 0
      %3068 = vmatprep.subr.bf16.mxu0 0
      %3069 = vmatpush1.bf16.msra.mxu0 0
      %3070 = vmatprep.mubr.bf16.mxu0 0
      %3071 = vmatmul.mubr.bf16.gmra.mrb[0].mxu0 %v2991
      %v3072 = vpop.f32.mrb[0].mxu0
      %v3073 = vadd.f32 0.0, %v3072
      %v3074 = vpop.f32.mrb[0].mxu0
      %v3075 = vpop.f32.mrb[0].mxu0
      %v3076 = vadd.f32 0.0, %v3075
      %v3077 = vpop.f32.mrb[0].mxu0
      %3078 = vmatprep.mubr.bf16.mxu0 0
      %3079 = vmatmul.mubr.bf16.gmra.mrb[0].mxu0 %v2994
      %v3080 = vpop.f32.mrb[0].mxu0
      %v3081 = vadd.f32 0.0, %v3080
      %v3082 = vpop.f32.mrb[0].mxu0
      %v3083 = vpop.f32.mrb[0].mxu0
      %v3084 = vadd.f32 0.0, %v3083
      %v3085 = vpop.f32.mrb[0].mxu0
      %3086 = vmatprep.mubr.bf16.mxu0 0
      %3087 = vmatmul.mubr.bf16.gmra.mrb[0].mxu0 %v2997
      %v3088 = vpop.f32.mrb[0].mxu0
      %v3089 = vadd.f32 0.0, %v3088
      %v3090 = vpop.f32.mrb[0].mxu0
      %v3091 = vpop.f32.mrb[0].mxu0
      %v3092 = vadd.f32 0.0, %v3091
      %v3093 = vpop.f32.mrb[0].mxu0
      %3094 = vmatprep.mubr.bf16.mxu0 0
      %3095 = vmatmul.mubr.bf16.gmra.mrb[0].mxu0 %v3000
      %v3096 = vpop.f32.mrb[0].mxu0
      %v3097 = vadd.f32 0.0, %v3096
      %v3098 = vpop.f32.mrb[0].mxu0
      %v3099 = vpop.f32.mrb[0].mxu0
      %v3100 = vadd.f32 0.0, %v3099
      %v3101 = vpop.f32.mrb[0].mxu0
      %3102 = vmatprep.mubr.bf16.mxu0 0
      %3103 = vmatmul.mubr.bf16.gmra.mrb[0].mxu0 %v3003
      %v3104 = vpop.f32.mrb[0].mxu0
      %v3105 = vadd.f32 0.0, %v3104
      %v3106 = vpop.f32.mrb[0].mxu0
      %v3107 = vpop.f32.mrb[0].mxu0
      %v3108 = vadd.f32 0.0, %v3107
      %v3109 = vpop.f32.mrb[0].mxu0
      %3110 = vmatprep.mubr.bf16.mxu0 0
      %3111 = vmatmul.mubr.bf16.gmra.mrb[0].mxu0 %v3006
      %v3112 = vpop.f32.mrb[0].mxu0
      %v3113 = vadd.f32 0.0, %v3112
      %v3114 = vpop.f32.mrb[0].mxu0
      %v3115 = vpop.f32.mrb[0].mxu0
      %v3116 = vadd.f32 0.0, %v3115
      %v3117 = vpop.f32.mrb[0].mxu0
      %3118 = vmatprep.mubr.bf16.mxu0 0
      %3119 = vmatmul.mubr.bf16.gmra.mrb[0].mxu0 %v3009
      %v3120 = vpop.f32.mrb[0].mxu0
      %v3121 = vadd.f32 0.0, %v3120
      %v3122 = vpop.f32.mrb[0].mxu0
      %v3123 = vpop.f32.mrb[0].mxu0
      %v3124 = vadd.f32 0.0, %v3123
      %v3125 = vpop.f32.mrb[0].mxu0
      %3126 = vmatprep.mubr.bf16.mxu0 0
      %3127 = vmatmul.mubr.bf16.gmra.mrb[0].mxu0 %v3012
      %v3128 = vpop.f32.mrb[0].mxu0
      %v3129 = vadd.f32 0.0, %v3128
      %v3130 = vpop.f32.mrb[0].mxu0
      %v3131 = vpop.f32.mrb[0].mxu0
      %v3132 = vadd.f32 0.0, %v3131
      %v3133 = vpop.f32.mrb[0].mxu0
      %3134 = vmatprep.mubr.bf16.mxu0 0
      %3135 = vmatmul.mubr.bf16.gmra.mrb[0].mxu0 %v3015
      %v3136 = vpop.f32.mrb[0].mxu0
      %v3137 = vadd.f32 0.0, %v3136
      %v3138 = vpop.f32.mrb[0].mxu0
      %v3139 = vpop.f32.mrb[0].mxu0
      %v3140 = vadd.f32 0.0, %v3139
      %v3141 = vpop.f32.mrb[0].mxu0
      %3142 = vmatprep.mubr.bf16.mxu0 0
      %3143 = vmatmul.mubr.bf16.gmra.mrb[0].mxu0 %v3018
      %v3144 = vpop.f32.mrb[0].mxu0
      %v3145 = vadd.f32 0.0, %v3144
      %v3146 = vpop.f32.mrb[0].mxu0
      %v3147 = vpop.f32.mrb[0].mxu0
      %v3148 = vadd.f32 0.0, %v3147
      %v3149 = vpop.f32.mrb[0].mxu0
      %3150 = vmatprep.mubr.bf16.mxu0 0
      %3151 = vmatmul.mubr.bf16.gmra.mrb[0].mxu0 %v3021
      %v3152 = vpop.f32.mrb[0].mxu0
      %v3153 = vadd.f32 0.0, %v3152
      %v3154 = vpop.f32.mrb[0].mxu0
      %v3155 = vpop.f32.mrb[0].mxu0
      %v3156 = vadd.f32 0.0, %v3155
      %v3157 = vpop.f32.mrb[0].mxu0
      %3158 = vmatprep.mubr.bf16.mxu0 0
      %3159 = vmatmul.mubr.bf16.gmra.mrb[0].mxu0 %v3024
      %v3160 = vpop.f32.mrb[0].mxu0
      %v3161 = vadd.f32 0.0, %v3160
      %v3162 = vpop.f32.mrb[0].mxu0
      %v3163 = vpop.f32.mrb[0].mxu0
      %v3164 = vadd.f32 0.0, %v3163
      %v3165 = vpop.f32.mrb[0].mxu0
      %3166 = vmatprep.mubr.bf16.mxu0 0
      %3167 = vmatmul.mubr.bf16.gmra.mrb[0].mxu0 %v3027
      %v3168 = vpop.f32.mrb[0].mxu0
      %v3169 = vadd.f32 0.0, %v3168
      %v3170 = vpop.f32.mrb[0].mxu0
      %v3171 = vpop.f32.mrb[0].mxu0
      %v3172 = vadd.f32 0.0, %v3171
      %v3173 = vpop.f32.mrb[0].mxu0
      %3174 = vmatprep.mubr.bf16.mxu0 0
      %3175 = vmatmul.mubr.bf16.gmra.mrb[0].mxu0 %v3030
      %v3176 = vpop.f32.mrb[0].mxu0
      %v3177 = vadd.f32 0.0, %v3176
      %v3178 = vpop.f32.mrb[0].mxu0
      %v3179 = vpop.f32.mrb[0].mxu0
      %v3180 = vadd.f32 0.0, %v3179
      %v3181 = vpop.f32.mrb[0].mxu0
      %3182 = vmatprep.mubr.bf16.mxu0 0
      %3183 = vmatmul.mubr.bf16.gmra.mrb[0].mxu0 %v3033
      %v3184 = vpop.f32.mrb[0].mxu0
      %v3185 = vadd.f32 0.0, %v3184
      %v3186 = vpop.f32.mrb[0].mxu0
      %v3187 = vpop.f32.mrb[0].mxu0
      %v3188 = vadd.f32 0.0, %v3187
      %v3189 = vpop.f32.mrb[0].mxu0
      %3190 = vmatprep.mubr.bf16.mxu0 0
      %3191 = vmatmul.mubr.bf16.gmra.mrb[0].mxu0 %v3036
      %v3192 = vpop.f32.mrb[0].mxu0
      %v3193 = vadd.f32 0.0, %v3192
      %v3194 = vpop.f32.mrb[0].mxu0
      %v3195 = vpop.f32.mrb[0].mxu0
      %v3196 = vadd.f32 0.0, %v3195
      %v3197 = vpop.f32.mrb[0].mxu0
      %3198 = vdwg.mxu0
      %v3199 = vadd.f32 %v2725, %v3073
      %v3200 = vadd.f32 %v2726, %v3076
      %v3201 = vadd.f32 %v2727, %v3081
      %v3202 = vadd.f32 %v2728, %v3084
      %v3203 = vadd.f32 %v2729, %v3089
      %v3204 = vadd.f32 %v2730, %v3092
      %v3205 = vadd.f32 %v2731, %v3097
      %v3206 = vadd.f32 %v2732, %v3100
      %v3207 = vadd.f32 %v2733, %v3105
      %v3208 = vadd.f32 %v2734, %v3108
      %v3209 = vadd.f32 %v2735, %v3113
      %v3210 = vadd.f32 %v2736, %v3116
      %v3211 = vadd.f32 %v2737, %v3121
      %v3212 = vadd.f32 %v2738, %v3124
      %v3213 = vadd.f32 %v2739, %v3129
      %v3214 = vadd.f32 %v2740, %v3132
      %v3215 = vadd.f32 %v2741, %v3137
      %v3216 = vadd.f32 %v2742, %v3140
      %v3217 = vadd.f32 %v2743, %v3145
      %v3218 = vadd.f32 %v2744, %v3148
      %v3219 = vadd.f32 %v2745, %v3153
      %v3220 = vadd.f32 %v2746, %v3156
      %v3221 = vadd.f32 %v2747, %v3161
      %v3222 = vadd.f32 %v2748, %v3164
      %v3223 = vadd.f32 %v2749, %v3169
      %v3224 = vadd.f32 %v2750, %v3172
      %v3225 = vadd.f32 %v2751, %v3177
      %v3226 = vadd.f32 %v2752, %v3180
      %v3227 = vadd.f32 %v2753, %v3185
      %v3228 = vadd.f32 %v2754, %v3188
      %v3229 = vadd.f32 %v2755, %v3193
      %v3230 = vadd.f32 %v2756, %v3196
      %s3231 = sadd.s32 %s197, 2
      %s3232 = smul.u32 %s3231, 3
      %s3233 = smul.addr %s3232, 4
      %s3234 = scalar_lea.vmem %s184, %s3233
      %v3235 = vld [vmem:[%s3234] sm:$0xf]
      %v3236 = vld [vmem:[%s3234 + $0x4] sm:$0xf]
      %v3237 = vld [vmem:[%s3234 + $0xc] sm:$0xf]
      %v3238 = vld [vmem:[%s3234 + $0x10] sm:$0xf]
      %v3239 = vld [vmem:[%s3234 + $0x18] sm:$0xf]
      %v3240 = vld [vmem:[%s3234 + $0x1c] sm:$0xf]
      %v3241 = vld [vmem:[%s3234 + $0x24] sm:$0xf]
      %v3242 = vld [vmem:[%s3234 + $0x28] sm:$0xf]
      %v3243 = vld [vmem:[%s3234 + $0x30] sm:$0xf]
      %v3244 = vld [vmem:[%s3234 + $0x34] sm:$0xf]
      %v3245 = vld [vmem:[%s3234 + $0x3c] sm:$0xf]
      %v3246 = vld [vmem:[%s3234 + $0x40] sm:$0xf]
      %v3247 = vld [vmem:[%s3234 + $0x48] sm:$0xf]
      %v3248 = vld [vmem:[%s3234 + $0x4c] sm:$0xf]
      %v3249 = vld [vmem:[%s3234 + $0x54] sm:$0xf]
      %v3250 = vld [vmem:[%s3234 + $0x58] sm:$0xf]
      %v3251 = vld [vmem:[%s3234 + $0x60] sm:$0xf]
      %v3252 = vld [vmem:[%s3234 + $0x64] sm:$0xf]
      %v3253 = vld [vmem:[%s3234 + $0x6c] sm:$0xf]
      %v3254 = vld [vmem:[%s3234 + $0x70] sm:$0xf]
      %v3255 = vld [vmem:[%s3234 + $0x78] sm:$0xf]
      %v3256 = vld [vmem:[%s3234 + $0x7c] sm:$0xf]
      %v3257 = vld [vmem:[%s3234 + $0x84] sm:$0xf]
      %v3258 = vld [vmem:[%s3234 + $0x88] sm:$0xf]
      %v3259 = vld [vmem:[%s3234 + $0x90] sm:$0xf]
      %v3260 = vld [vmem:[%s3234 + $0x94] sm:$0xf]
      %v3261 = vld [vmem:[%s3234 + $0x9c] sm:$0xf]
      %v3262 = vld [vmem:[%s3234 + $0xa0] sm:$0xf]
      %v3263 = vld [vmem:[%s3234 + $0xa8] sm:$0xf]
      %v3264 = vld [vmem:[%s3234 + $0xac] sm:$0xf]
      %v3265 = vld [vmem:[%s3234 + $0xb4] sm:$0xf]
      %v3266 = vld [vmem:[%s3234 + $0xb8] sm:$0xf]
      %s3267 = scalar_lea.vmem %s1, 48
      %v3268 = vld [vmem:[%s3267] sm:$0xf]
      %v3269 = vld [vmem:[%s3267 + $0x4] sm:$0xf]
      %v3302 = vunpack.c.l.b16 %v3235
      %v3303 = vunpack.c.l.b16 %v3236
      %v3304 = vunpack.c.l.b16 %v3237
      %v3305 = vunpack.c.l.b16 %v3238
      %v3306 = vunpack.c.l.b16 %v3239
      %v3307 = vunpack.c.l.b16 %v3240
      %v3308 = vunpack.c.l.b16 %v3241
      %v3309 = vunpack.c.l.b16 %v3242
      %v3310 = vunpack.c.l.b16 %v3243
      %v3311 = vunpack.c.l.b16 %v3244
      %v3312 = vunpack.c.l.b16 %v3245
      %v3313 = vunpack.c.l.b16 %v3246
      %v3314 = vunpack.c.l.b16 %v3247
      %v3315 = vunpack.c.l.b16 %v3248
      %v3316 = vunpack.c.l.b16 %v3249
      %v3317 = vunpack.c.l.b16 %v3250
      %v3318 = vunpack.c.l.b16 %v3251
      %v3319 = vunpack.c.l.b16 %v3252
      %v3320 = vunpack.c.l.b16 %v3253
      %v3321 = vunpack.c.l.b16 %v3254
      %v3322 = vunpack.c.l.b16 %v3255
      %v3323 = vunpack.c.l.b16 %v3256
      %v3324 = vunpack.c.l.b16 %v3257
      %v3325 = vunpack.c.l.b16 %v3258
      %v3326 = vunpack.c.l.b16 %v3259
      %v3327 = vunpack.c.l.b16 %v3260
      %v3328 = vunpack.c.l.b16 %v3261
      %v3329 = vunpack.c.l.b16 %v3262
      %v3330 = vunpack.c.l.b16 %v3263
      %v3331 = vunpack.c.l.b16 %v3264
      %v3332 = vunpack.c.l.b16 %v3265
      %v3333 = vunpack.c.l.b16 %v3266
      %v3334 = vpack.c.b16 %v3303, %v3302
      %v3335 = vpack.c.b16 %v3305, %v3304
      %v3336 = vpack.c.b16 %v3307, %v3306
      %v3337 = vpack.c.b16 %v3309, %v3308
      %v3338 = vpack.c.b16 %v3311, %v3310
      %v3339 = vpack.c.b16 %v3313, %v3312
      %v3340 = vpack.c.b16 %v3315, %v3314
      %v3341 = vpack.c.b16 %v3317, %v3316
      %v3342 = vpack.c.b16 %v3319, %v3318
      %v3343 = vpack.c.b16 %v3321, %v3320
      %v3344 = vpack.c.b16 %v3323, %v3322
      %v3345 = vpack.c.b16 %v3325, %v3324
      %v3346 = vpack.c.b16 %v3327, %v3326
      %v3347 = vpack.c.b16 %v3329, %v3328
      %v3348 = vpack.c.b16 %v3331, %v3330
      %v3349 = vpack.c.b16 %v3333, %v3332
      %v3352 = vunpack.c.l.b16 %v3268
      %v3353 = vunpack.c.l.b16 %v3269
      %v3354 = vpack.c.b16 %v3353, %v3352
      %v3357 = vsel %vm695, %v3334, 0
      %v3360 = vsel %vm695, %v3335, 0
      %v3363 = vsel %vm695, %v3336, 0
      %v3366 = vsel %vm695, %v3337, 0
      %v3369 = vsel %vm695, %v3338, 0
      %v3372 = vsel %vm695, %v3339, 0
      %v3375 = vsel %vm695, %v3340, 0
      %v3378 = vsel %vm695, %v3341, 0
      %v3381 = vsel %vm695, %v3342, 0
      %v3384 = vsel %vm695, %v3343, 0
      %v3387 = vsel %vm695, %v3344, 0
      %v3390 = vsel %vm695, %v3345, 0
      %v3393 = vsel %vm695, %v3346, 0
      %v3396 = vsel %vm695, %v3347, 0
      %v3399 = vsel %vm695, %v3348, 0
      %v3402 = vsel %vm695, %v3349, 0
      %3404 = vmatprep.subr.bf16.mxu0 0
      %3405 = vmatpush1.bf16.msra.mxu0 %v3354
      %3406 = vmatprep.subr.bf16.mxu0 0
      %3407 = vmatpush1.bf16.msra.mxu0 0
      %3408 = vmatprep.subr.bf16.mxu0 0
      %3409 = vmatpush1.bf16.msra.mxu0 0
      %3410 = vmatprep.subr.bf16.mxu0 0
      %3411 = vmatpush1.bf16.msra.mxu0 0
      %3412 = vmatprep.subr.bf16.mxu0 0
      %3413 = vmatpush1.bf16.msra.mxu0 0
      %3414 = vmatprep.subr.bf16.mxu0 0
      %3415 = vmatpush1.bf16.msra.mxu0 0
      %3416 = vmatprep.subr.bf16.mxu0 0
      %3417 = vmatpush1.bf16.msra.mxu0 0
      %3418 = vmatprep.subr.bf16.mxu0 0
      %3419 = vmatpush1.bf16.msra.mxu0 0
      %3420 = vmatprep.subr.bf16.mxu0 0
      %3421 = vmatpush1.bf16.msra.mxu0 0
      %3422 = vmatprep.subr.bf16.mxu0 0
      %3423 = vmatpush1.bf16.msra.mxu0 0
      %3424 = vmatprep.subr.bf16.mxu0 0
      %3425 = vmatpush1.bf16.msra.mxu0 0
      %3426 = vmatprep.subr.bf16.mxu0 0
      %3427 = vmatpush1.bf16.msra.mxu0 0
      %3428 = vmatprep.subr.bf16.mxu0 0
      %3429 = vmatpush1.bf16.msra.mxu0 0
      %3430 = vmatprep.subr.bf16.mxu0 0
      %3431 = vmatpush1.bf16.msra.mxu0 0
      %3432 = vmatprep.subr.bf16.mxu0 0
      %3433 = vmatpush1.bf16.msra.mxu0 0
      %3434 = vmatprep.subr.bf16.mxu0 0
      %3435 = vmatpush1.bf16.msra.mxu0 0
      %3436 = vmatprep.mubr.bf16.mxu0 0
      %3437 = vmatmul.mubr.bf16.gmra.mrb[0].mxu0 %v3357
      %v3438 = vpop.f32.mrb[0].mxu0
      %v3439 = vadd.f32 0.0, %v3438
      %v3440 = vpop.f32.mrb[0].mxu0
      %v3441 = vpop.f32.mrb[0].mxu0
      %v3442 = vadd.f32 0.0, %v3441
      %v3443 = vpop.f32.mrb[0].mxu0
      %3444 = vmatprep.mubr.bf16.mxu0 0
      %3445 = vmatmul.mubr.bf16.gmra.mrb[0].mxu0 %v3360
      %v3446 = vpop.f32.mrb[0].mxu0
      %v3447 = vadd.f32 0.0, %v3446
      %v3448 = vpop.f32.mrb[0].mxu0
      %v3449 = vpop.f32.mrb[0].mxu0
      %v3450 = vadd.f32 0.0, %v3449
      %v3451 = vpop.f32.mrb[0].mxu0
      %3452 = vmatprep.mubr.bf16.mxu0 0
      %3453 = vmatmul.mubr.bf16.gmra.mrb[0].mxu0 %v3363
      %v3454 = vpop.f32.mrb[0].mxu0
      %v3455 = vadd.f32 0.0, %v3454
      %v3456 = vpop.f32.mrb[0].mxu0
      %v3457 = vpop.f32.mrb[0].mxu0
      %v3458 = vadd.f32 0.0, %v3457
      %v3459 = vpop.f32.mrb[0].mxu0
      %3460 = vmatprep.mubr.bf16.mxu0 0
      %3461 = vmatmul.mubr.bf16.gmra.mrb[0].mxu0 %v3366
      %v3462 = vpop.f32.mrb[0].mxu0
      %v3463 = vadd.f32 0.0, %v3462
      %v3464 = vpop.f32.mrb[0].mxu0
      %v3465 = vpop.f32.mrb[0].mxu0
      %v3466 = vadd.f32 0.0, %v3465
      %v3467 = vpop.f32.mrb[0].mxu0
      %3468 = vmatprep.mubr.bf16.mxu0 0
      %3469 = vmatmul.mubr.bf16.gmra.mrb[0].mxu0 %v3369
      %v3470 = vpop.f32.mrb[0].mxu0
      %v3471 = vadd.f32 0.0, %v3470
      %v3472 = vpop.f32.mrb[0].mxu0
      %v3473 = vpop.f32.mrb[0].mxu0
      %v3474 = vadd.f32 0.0, %v3473
      %v3475 = vpop.f32.mrb[0].mxu0
      %3476 = vmatprep.mubr.bf16.mxu0 0
      %3477 = vmatmul.mubr.bf16.gmra.mrb[0].mxu0 %v3372
      %v3478 = vpop.f32.mrb[0].mxu0
      %v3479 = vadd.f32 0.0, %v3478
      %v3480 = vpop.f32.mrb[0].mxu0
      %v3481 = vpop.f32.mrb[0].mxu0
      %v3482 = vadd.f32 0.0, %v3481
      %v3483 = vpop.f32.mrb[0].mxu0
      %3484 = vmatprep.mubr.bf16.mxu0 0
      %3485 = vmatmul.mubr.bf16.gmra.mrb[0].mxu0 %v3375
      %v3486 = vpop.f32.mrb[0].mxu0
      %v3487 = vadd.f32 0.0, %v3486
      %v3488 = vpop.f32.mrb[0].mxu0
      %v3489 = vpop.f32.mrb[0].mxu0
      %v3490 = vadd.f32 0.0, %v3489
      %v3491 = vpop.f32.mrb[0].mxu0
      %3492 = vmatprep.mubr.bf16.mxu0 0
      %3493 = vmatmul.mubr.bf16.gmra.mrb[0].mxu0 %v3378
      %v3494 = vpop.f32.mrb[0].mxu0
      %v3495 = vadd.f32 0.0, %v3494
      %v3496 = vpop.f32.mrb[0].mxu0
      %v3497 = vpop.f32.mrb[0].mxu0
      %v3498 = vadd.f32 0.0, %v3497
      %v3499 = vpop.f32.mrb[0].mxu0
      %3500 = vmatprep.mubr.bf16.mxu0 0
      %3501 = vmatmul.mubr.bf16.gmra.mrb[0].mxu0 %v3381
      %v3502 = vpop.f32.mrb[0].mxu0
      %v3503 = vadd.f32 0.0, %v3502
      %v3504 = vpop.f32.mrb[0].mxu0
      %v3505 = vpop.f32.mrb[0].mxu0
      %v3506 = vadd.f32 0.0, %v3505
      %v3507 = vpop.f32.mrb[0].mxu0
      %3508 = vmatprep.mubr.bf16.mxu0 0
      %3509 = vmatmul.mubr.bf16.gmra.mrb[0].mxu0 %v3384
      %v3510 = vpop.f32.mrb[0].mxu0
      %v3511 = vadd.f32 0.0, %v3510
      %v3512 = vpop.f32.mrb[0].mxu0
      %v3513 = vpop.f32.mrb[0].mxu0
      %v3514 = vadd.f32 0.0, %v3513
      %v3515 = vpop.f32.mrb[0].mxu0
      %3516 = vmatprep.mubr.bf16.mxu0 0
      %3517 = vmatmul.mubr.bf16.gmra.mrb[0].mxu0 %v3387
      %v3518 = vpop.f32.mrb[0].mxu0
      %v3519 = vadd.f32 0.0, %v3518
      %v3520 = vpop.f32.mrb[0].mxu0
      %v3521 = vpop.f32.mrb[0].mxu0
      %v3522 = vadd.f32 0.0, %v3521
      %v3523 = vpop.f32.mrb[0].mxu0
      %3524 = vmatprep.mubr.bf16.mxu0 0
      %3525 = vmatmul.mubr.bf16.gmra.mrb[0].mxu0 %v3390
      %v3526 = vpop.f32.mrb[0].mxu0
      %v3527 = vadd.f32 0.0, %v3526
      %v3528 = vpop.f32.mrb[0].mxu0
      %v3529 = vpop.f32.mrb[0].mxu0
      %v3530 = vadd.f32 0.0, %v3529
      %v3531 = vpop.f32.mrb[0].mxu0
      %3532 = vmatprep.mubr.bf16.mxu0 0
      %3533 = vmatmul.mubr.bf16.gmra.mrb[0].mxu0 %v3393
      %v3534 = vpop.f32.mrb[0].mxu0
      %v3535 = vadd.f32 0.0, %v3534
      %v3536 = vpop.f32.mrb[0].mxu0
      %v3537 = vpop.f32.mrb[0].mxu0
      %v3538 = vadd.f32 0.0, %v3537
      %v3539 = vpop.f32.mrb[0].mxu0
      %3540 = vmatprep.mubr.bf16.mxu0 0
      %3541 = vmatmul.mubr.bf16.gmra.mrb[0].mxu0 %v3396
      %v3542 = vpop.f32.mrb[0].mxu0
      %v3543 = vadd.f32 0.0, %v3542
      %v3544 = vpop.f32.mrb[0].mxu0
      %v3545 = vpop.f32.mrb[0].mxu0
      %v3546 = vadd.f32 0.0, %v3545
      %v3547 = vpop.f32.mrb[0].mxu0
      %3548 = vmatprep.mubr.bf16.mxu0 0
      %3549 = vmatmul.mubr.bf16.gmra.mrb[0].mxu0 %v3399
      %v3550 = vpop.f32.mrb[0].mxu0
      %v3551 = vadd.f32 0.0, %v3550
      %v3552 = vpop.f32.mrb[0].mxu0
      %v3553 = vpop.f32.mrb[0].mxu0
      %v3554 = vadd.f32 0.0, %v3553
      %v3555 = vpop.f32.mrb[0].mxu0
      %3556 = vmatprep.mubr.bf16.mxu0 0
      %3557 = vmatmul.mubr.bf16.gmra.mrb[0].mxu0 %v3402
      %v3558 = vpop.f32.mrb[0].mxu0
      %v3559 = vadd.f32 0.0, %v3558
      %v3560 = vpop.f32.mrb[0].mxu0
      %v3561 = vpop.f32.mrb[0].mxu0
      %v3562 = vadd.f32 0.0, %v3561
      %v3563 = vpop.f32.mrb[0].mxu0
      %3564 = vdwg.mxu0
      %v3565 = vadd.f32 %v3199, %v3439
      %v3566 = vadd.f32 %v3200, %v3442
      %v3567 = vadd.f32 %v3201, %v3447
      %v3568 = vadd.f32 %v3202, %v3450
      %v3569 = vadd.f32 %v3203, %v3455
      %v3570 = vadd.f32 %v3204, %v3458
      %v3571 = vadd.f32 %v3205, %v3463
      %v3572 = vadd.f32 %v3206, %v3466
      %v3573 = vadd.f32 %v3207, %v3471
      %v3574 = vadd.f32 %v3208, %v3474
      %v3575 = vadd.f32 %v3209, %v3479
      %v3576 = vadd.f32 %v3210, %v3482
      %v3577 = vadd.f32 %v3211, %v3487
      %v3578 = vadd.f32 %v3212, %v3490
      %v3579 = vadd.f32 %v3213, %v3495
      %v3580 = vadd.f32 %v3214, %v3498
      %v3581 = vadd.f32 %v3215, %v3503
      %v3582 = vadd.f32 %v3216, %v3506
      %v3583 = vadd.f32 %v3217, %v3511
      %v3584 = vadd.f32 %v3218, %v3514
      %v3585 = vadd.f32 %v3219, %v3519
      %v3586 = vadd.f32 %v3220, %v3522
      %v3587 = vadd.f32 %v3221, %v3527
      %v3588 = vadd.f32 %v3222, %v3530
      %v3589 = vadd.f32 %v3223, %v3535
      %v3590 = vadd.f32 %v3224, %v3538
      %v3591 = vadd.f32 %v3225, %v3543
      %v3592 = vadd.f32 %v3226, %v3546
      %v3593 = vadd.f32 %v3227, %v3551
      %v3594 = vadd.f32 %v3228, %v3554
      %v3595 = vadd.f32 %v3229, %v3559
      %v3596 = vadd.f32 %v3230, %v3562
      %v3597 = vld [vmem:[%s3234] sm:$0xf]
      %v3598 = vld [vmem:[%s3234 + $0x4] sm:$0xf]
      %v3599 = vld [vmem:[%s3234 + $0x8] sm:$0x1]
      %v3600 = vld [vmem:[%s3234 + $0xc] sm:$0xf]
      %v3601 = vld [vmem:[%s3234 + $0x10] sm:$0xf]
      %v3602 = vld [vmem:[%s3234 + $0x14] sm:$0x1]
      %v3603 = vld [vmem:[%s3234 + $0x18] sm:$0xf]
      %v3604 = vld [vmem:[%s3234 + $0x1c] sm:$0xf]
      %v3605 = vld [vmem:[%s3234 + $0x20] sm:$0x1]
      %v3606 = vld [vmem:[%s3234 + $0x24] sm:$0xf]
      %v3607 = vld [vmem:[%s3234 + $0x28] sm:$0xf]
      %v3608 = vld [vmem:[%s3234 + $0x2c] sm:$0x1]
      %v3609 = vld [vmem:[%s3234 + $0x30] sm:$0xf]
      %v3610 = vld [vmem:[%s3234 + $0x34] sm:$0xf]
      %v3611 = vld [vmem:[%s3234 + $0x38] sm:$0x1]
      %v3612 = vld [vmem:[%s3234 + $0x3c] sm:$0xf]
      %v3613 = vld [vmem:[%s3234 + $0x40] sm:$0xf]
      %v3614 = vld [vmem:[%s3234 + $0x44] sm:$0x1]
      %v3615 = vld [vmem:[%s3234 + $0x48] sm:$0xf]
      %v3616 = vld [vmem:[%s3234 + $0x4c] sm:$0xf]
      %v3617 = vld [vmem:[%s3234 + $0x50] sm:$0x1]
      %v3618 = vld [vmem:[%s3234 + $0x54] sm:$0xf]
      %v3619 = vld [vmem:[%s3234 + $0x58] sm:$0xf]
      %v3620 = vld [vmem:[%s3234 + $0x5c] sm:$0x1]
      %v3621 = vld [vmem:[%s3234 + $0x60] sm:$0xf]
      %v3622 = vld [vmem:[%s3234 + $0x64] sm:$0xf]
      %v3623 = vld [vmem:[%s3234 + $0x68] sm:$0x1]
      %v3624 = vld [vmem:[%s3234 + $0x6c] sm:$0xf]
      %v3625 = vld [vmem:[%s3234 + $0x70] sm:$0xf]
      %v3626 = vld [vmem:[%s3234 + $0x74] sm:$0x1]
      %v3627 = vld [vmem:[%s3234 + $0x78] sm:$0xf]
      %v3628 = vld [vmem:[%s3234 + $0x7c] sm:$0xf]
      %v3629 = vld [vmem:[%s3234 + $0x80] sm:$0x1]
      %v3630 = vld [vmem:[%s3234 + $0x84] sm:$0xf]
      %v3631 = vld [vmem:[%s3234 + $0x88] sm:$0xf]
      %v3632 = vld [vmem:[%s3234 + $0x8c] sm:$0x1]
      %v3633 = vld [vmem:[%s3234 + $0x90] sm:$0xf]
      %v3634 = vld [vmem:[%s3234 + $0x94] sm:$0xf]
      %v3635 = vld [vmem:[%s3234 + $0x98] sm:$0x1]
      %v3636 = vld [vmem:[%s3234 + $0x9c] sm:$0xf]
      %v3637 = vld [vmem:[%s3234 + $0xa0] sm:$0xf]
      %v3638 = vld [vmem:[%s3234 + $0xa4] sm:$0x1]
      %v3639 = vld [vmem:[%s3234 + $0xa8] sm:$0xf]
      %v3640 = vld [vmem:[%s3234 + $0xac] sm:$0xf]
      %v3641 = vld [vmem:[%s3234 + $0xb0] sm:$0x1]
      %v3642 = vld [vmem:[%s3234 + $0xb4] sm:$0xf]
      %v3643 = vld [vmem:[%s3234 + $0xb8] sm:$0xf]
      %v3644 = vld [vmem:[%s3234 + $0xbc] sm:$0x1]
      %v3646 = vshrl.u32 %v3597, 16
      %v3648 = vrot.slane %v3646, 4
      %v3649 = vshll.u32 %v3597, 16
      %v3651 = vrot.slane %v3649, 5
      %v3652 = vor.u32 %v3648, %v3651
      %v3653 = vrot.slane %v3652, 4
      %v3655 = vshll.u32 %v3598, 16
      %v3657 = vrot.slane %v3655, 5
      %v3658 = vsel %vm253, %v3653, %v3657
      %v3659 = vshrl.u32 %v3598, 16
      %v3661 = vrot.slane %v3659, 4
      %v3662 = vor.u32 %v3661, %v3657
      %v3663 = vrot.slane %v3662, 4
      %v3665 = vshll.u32 %v3599, 16
      %v3667 = vrot.slane %v3665, 5
      %v3668 = vsel %vm253, %v3663, %v3667
      %v3670 = vshrl.u32 %v3600, 16
      %v3672 = vrot.slane %v3670, 4
      %v3673 = vshll.u32 %v3600, 16
      %v3675 = vrot.slane %v3673, 5
      %v3676 = vor.u32 %v3672, %v3675
      %v3677 = vrot.slane %v3676, 4
      %v3679 = vshll.u32 %v3601, 16
      %v3681 = vrot.slane %v3679, 5
      %v3682 = vsel %vm253, %v3677, %v3681
      %v3683 = vshrl.u32 %v3601, 16
      %v3685 = vrot.slane %v3683, 4
      %v3686 = vor.u32 %v3685, %v3681
      %v3687 = vrot.slane %v3686, 4
      %v3689 = vshll.u32 %v3602, 16
      %v3691 = vrot.slane %v3689, 5
      %v3692 = vsel %vm253, %v3687, %v3691
      %v3694 = vshrl.u32 %v3603, 16
      %v3696 = vrot.slane %v3694, 4
      %v3697 = vshll.u32 %v3603, 16
      %v3699 = vrot.slane %v3697, 5
      %v3700 = vor.u32 %v3696, %v3699
      %v3701 = vrot.slane %v3700, 4
      %v3703 = vshll.u32 %v3604, 16
      %v3705 = vrot.slane %v3703, 5
      %v3706 = vsel %vm253, %v3701, %v3705
      %v3707 = vshrl.u32 %v3604, 16
      %v3709 = vrot.slane %v3707, 4
      %v3710 = vor.u32 %v3709, %v3705
      %v3711 = vrot.slane %v3710, 4
      %v3713 = vshll.u32 %v3605, 16
      %v3715 = vrot.slane %v3713, 5
      %v3716 = vsel %vm253, %v3711, %v3715
      %v3718 = vshrl.u32 %v3606, 16
      %v3720 = vrot.slane %v3718, 4
      %v3721 = vshll.u32 %v3606, 16
      %v3723 = vrot.slane %v3721, 5
      %v3724 = vor.u32 %v3720, %v3723
      %v3725 = vrot.slane %v3724, 4
      %v3727 = vshll.u32 %v3607, 16
      %v3729 = vrot.slane %v3727, 5
      %v3730 = vsel %vm253, %v3725, %v3729
      %v3731 = vshrl.u32 %v3607, 16
      %v3733 = vrot.slane %v3731, 4
      %v3734 = vor.u32 %v3733, %v3729
      %v3735 = vrot.slane %v3734, 4
      %v3737 = vshll.u32 %v3608, 16
      %v3739 = vrot.slane %v3737, 5
      %v3740 = vsel %vm253, %v3735, %v3739
      %v3742 = vshrl.u32 %v3609, 16
      %v3744 = vrot.slane %v3742, 4
      %v3745 = vshll.u32 %v3609, 16
      %v3747 = vrot.slane %v3745, 5
      %v3748 = vor.u32 %v3744, %v3747
      %v3749 = vrot.slane %v3748, 4
      %v3751 = vshll.u32 %v3610, 16
      %v3753 = vrot.slane %v3751, 5
      %v3754 = vsel %vm253, %v3749, %v3753
      %v3755 = vshrl.u32 %v3610, 16
      %v3757 = vrot.slane %v3755, 4
      %v3758 = vor.u32 %v3757, %v3753
      %v3759 = vrot.slane %v3758, 4
      %v3761 = vshll.u32 %v3611, 16
      %v3763 = vrot.slane %v3761, 5
      %v3764 = vsel %vm253, %v3759, %v3763
      %v3766 = vshrl.u32 %v3612, 16
      %v3768 = vrot.slane %v3766, 4
      %v3769 = vshll.u32 %v3612, 16
      %v3771 = vrot.slane %v3769, 5
      %v3772 = vor.u32 %v3768, %v3771
      %v3773 = vrot.slane %v3772, 4
      %v3775 = vshll.u32 %v3613, 16
      %v3777 = vrot.slane %v3775, 5
      %v3778 = vsel %vm253, %v3773, %v3777
      %v3779 = vshrl.u32 %v3613, 16
      %v3781 = vrot.slane %v3779, 4
      %v3782 = vor.u32 %v3781, %v3777
      %v3783 = vrot.slane %v3782, 4
      %v3785 = vshll.u32 %v3614, 16
      %v3787 = vrot.slane %v3785, 5
      %v3788 = vsel %vm253, %v3783, %v3787
      %v3790 = vshrl.u32 %v3615, 16
      %v3792 = vrot.slane %v3790, 4
      %v3793 = vshll.u32 %v3615, 16
      %v3795 = vrot.slane %v3793, 5
      %v3796 = vor.u32 %v3792, %v3795
      %v3797 = vrot.slane %v3796, 4
      %v3799 = vshll.u32 %v3616, 16
      %v3801 = vrot.slane %v3799, 5
      %v3802 = vsel %vm253, %v3797, %v3801
      %v3803 = vshrl.u32 %v3616, 16
      %v3805 = vrot.slane %v3803, 4
      %v3806 = vor.u32 %v3805, %v3801
      %v3807 = vrot.slane %v3806, 4
      %v3809 = vshll.u32 %v3617, 16
      %v3811 = vrot.slane %v3809, 5
      %v3812 = vsel %vm253, %v3807, %v3811
      %v3814 = vshrl.u32 %v3618, 16
      %v3816 = vrot.slane %v3814, 4
      %v3817 = vshll.u32 %v3618, 16
      %v3819 = vrot.slane %v3817, 5
      %v3820 = vor.u32 %v3816, %v3819
      %v3821 = vrot.slane %v3820, 4
      %v3823 = vshll.u32 %v3619, 16
      %v3825 = vrot.slane %v3823, 5
      %v3826 = vsel %vm253, %v3821, %v3825
      %v3827 = vshrl.u32 %v3619, 16
      %v3829 = vrot.slane %v3827, 4
      %v3830 = vor.u32 %v3829, %v3825
      %v3831 = vrot.slane %v3830, 4
      %v3833 = vshll.u32 %v3620, 16
      %v3835 = vrot.slane %v3833, 5
      %v3836 = vsel %vm253, %v3831, %v3835
      %v3838 = vshrl.u32 %v3621, 16
      %v3840 = vrot.slane %v3838, 4
      %v3841 = vshll.u32 %v3621, 16
      %v3843 = vrot.slane %v3841, 5
      %v3844 = vor.u32 %v3840, %v3843
      %v3845 = vrot.slane %v3844, 4
      %v3847 = vshll.u32 %v3622, 16
      %v3849 = vrot.slane %v3847, 5
      %v3850 = vsel %vm253, %v3845, %v3849
      %v3851 = vshrl.u32 %v3622, 16
      %v3853 = vrot.slane %v3851, 4
      %v3854 = vor.u32 %v3853, %v3849
      %v3855 = vrot.slane %v3854, 4
      %v3857 = vshll.u32 %v3623, 16
      %v3859 = vrot.slane %v3857, 5
      %v3860 = vsel %vm253, %v3855, %v3859
      %v3862 = vshrl.u32 %v3624, 16
      %v3864 = vrot.slane %v3862, 4
      %v3865 = vshll.u32 %v3624, 16
      %v3867 = vrot.slane %v3865, 5
      %v3868 = vor.u32 %v3864, %v3867
      %v3869 = vrot.slane %v3868, 4
      %v3871 = vshll.u32 %v3625, 16
      %v3873 = vrot.slane %v3871, 5
      %v3874 = vsel %vm253, %v3869, %v3873
      %v3875 = vshrl.u32 %v3625, 16
      %v3877 = vrot.slane %v3875, 4
      %v3878 = vor.u32 %v3877, %v3873
      %v3879 = vrot.slane %v3878, 4
      %v3881 = vshll.u32 %v3626, 16
      %v3883 = vrot.slane %v3881, 5
      %v3884 = vsel %vm253, %v3879, %v3883
      %v3886 = vshrl.u32 %v3627, 16
      %v3888 = vrot.slane %v3886, 4
      %v3889 = vshll.u32 %v3627, 16
      %v3891 = vrot.slane %v3889, 5
      %v3892 = vor.u32 %v3888, %v3891
      %v3893 = vrot.slane %v3892, 4
      %v3895 = vshll.u32 %v3628, 16
      %v3897 = vrot.slane %v3895, 5
      %v3898 = vsel %vm253, %v3893, %v3897
      %v3899 = vshrl.u32 %v3628, 16
      %v3901 = vrot.slane %v3899, 4
      %v3902 = vor.u32 %v3901, %v3897
      %v3903 = vrot.slane %v3902, 4
      %v3905 = vshll.u32 %v3629, 16
      %v3907 = vrot.slane %v3905, 5
      %v3908 = vsel %vm253, %v3903, %v3907
      %v3910 = vshrl.u32 %v3630, 16
      %v3912 = vrot.slane %v3910, 4
      %v3913 = vshll.u32 %v3630, 16
      %v3915 = vrot.slane %v3913, 5
      %v3916 = vor.u32 %v3912, %v3915
      %v3917 = vrot.slane %v3916, 4
      %v3919 = vshll.u32 %v3631, 16
      %v3921 = vrot.slane %v3919, 5
      %v3922 = vsel %vm253, %v3917, %v3921
      %v3923 = vshrl.u32 %v3631, 16
      %v3925 = vrot.slane %v3923, 4
      %v3926 = vor.u32 %v3925, %v3921
      %v3927 = vrot.slane %v3926, 4
      %v3929 = vshll.u32 %v3632, 16
      %v3931 = vrot.slane %v3929, 5
      %v3932 = vsel %vm253, %v3927, %v3931
      %v3934 = vshrl.u32 %v3633, 16
      %v3936 = vrot.slane %v3934, 4
      %v3937 = vshll.u32 %v3633, 16
      %v3939 = vrot.slane %v3937, 5
      %v3940 = vor.u32 %v3936, %v3939
      %v3941 = vrot.slane %v3940, 4
      %v3943 = vshll.u32 %v3634, 16
      %v3945 = vrot.slane %v3943, 5
      %v3946 = vsel %vm253, %v3941, %v3945
      %v3947 = vshrl.u32 %v3634, 16
      %v3949 = vrot.slane %v3947, 4
      %v3950 = vor.u32 %v3949, %v3945
      %v3951 = vrot.slane %v3950, 4
      %v3953 = vshll.u32 %v3635, 16
      %v3955 = vrot.slane %v3953, 5
      %v3956 = vsel %vm253, %v3951, %v3955
      %v3958 = vshrl.u32 %v3636, 16
      %v3960 = vrot.slane %v3958, 4
      %v3961 = vshll.u32 %v3636, 16
      %v3963 = vrot.slane %v3961, 5
      %v3964 = vor.u32 %v3960, %v3963
      %v3965 = vrot.slane %v3964, 4
      %v3967 = vshll.u32 %v3637, 16
      %v3969 = vrot.slane %v3967, 5
      %v3970 = vsel %vm253, %v3965, %v3969
      %v3971 = vshrl.u32 %v3637, 16
      %v3973 = vrot.slane %v3971, 4
      %v3974 = vor.u32 %v3973, %v3969
      %v3975 = vrot.slane %v3974, 4
      %v3977 = vshll.u32 %v3638, 16
      %v3979 = vrot.slane %v3977, 5
      %v3980 = vsel %vm253, %v3975, %v3979
      %v3982 = vshrl.u32 %v3639, 16
      %v3984 = vrot.slane %v3982, 4
      %v3985 = vshll.u32 %v3639, 16
      %v3987 = vrot.slane %v3985, 5
      %v3988 = vor.u32 %v3984, %v3987
      %v3989 = vrot.slane %v3988, 4
      %v3991 = vshll.u32 %v3640, 16
      %v3993 = vrot.slane %v3991, 5
      %v3994 = vsel %vm253, %v3989, %v3993
      %v3995 = vshrl.u32 %v3640, 16
      %v3997 = vrot.slane %v3995, 4
      %v3998 = vor.u32 %v3997, %v3993
      %v3999 = vrot.slane %v3998, 4
      %v4001 = vshll.u32 %v3641, 16
      %v4003 = vrot.slane %v4001, 5
      %v4004 = vsel %vm253, %v3999, %v4003
      %v4006 = vshrl.u32 %v3642, 16
      %v4008 = vrot.slane %v4006, 4
      %v4009 = vshll.u32 %v3642, 16
      %v4011 = vrot.slane %v4009, 5
      %v4012 = vor.u32 %v4008, %v4011
      %v4013 = vrot.slane %v4012, 4
      %v4015 = vshll.u32 %v3643, 16
      %v4017 = vrot.slane %v4015, 5
      %v4018 = vsel %vm253, %v4013, %v4017
      %v4019 = vshrl.u32 %v3643, 16
      %v4021 = vrot.slane %v4019, 4
      %v4022 = vor.u32 %v4021, %v4017
      %v4023 = vrot.slane %v4022, 4
      %v4025 = vshll.u32 %v3644, 16
      %v4027 = vrot.slane %v4025, 5
      %v4028 = vsel %vm253, %v4023, %v4027
      %s4029 = scalar_lea.vmem %s1, 56
      %v4030 = vld [vmem:[%s4029] sm:$0xf]
      %v4031 = vld [vmem:[%s4029 + $0x4] sm:$0xf]
      %v4032 = vunpack.c.l.b16 %v3658
      %v4033 = vunpack.c.l.b16 %v3668
      %v4034 = vunpack.c.l.b16 %v3682
      %v4035 = vunpack.c.l.b16 %v3692
      %v4036 = vunpack.c.l.b16 %v3706
      %v4037 = vunpack.c.l.b16 %v3716
      %v4038 = vunpack.c.l.b16 %v3730
      %v4039 = vunpack.c.l.b16 %v3740
      %v4040 = vunpack.c.l.b16 %v3754
      %v4041 = vunpack.c.l.b16 %v3764
      %v4042 = vunpack.c.l.b16 %v3778
      %v4043 = vunpack.c.l.b16 %v3788
      %v4044 = vunpack.c.l.b16 %v3802
      %v4045 = vunpack.c.l.b16 %v3812
      %v4046 = vunpack.c.l.b16 %v3826
      %v4047 = vunpack.c.l.b16 %v3836
      %v4048 = vunpack.c.l.b16 %v3850
      %v4049 = vunpack.c.l.b16 %v3860
      %v4050 = vunpack.c.l.b16 %v3874
      %v4051 = vunpack.c.l.b16 %v3884
      %v4052 = vunpack.c.l.b16 %v3898
      %v4053 = vunpack.c.l.b16 %v3908
      %v4054 = vunpack.c.l.b16 %v3922
      %v4055 = vunpack.c.l.b16 %v3932
      %v4056 = vunpack.c.l.b16 %v3946
      %v4057 = vunpack.c.l.b16 %v3956
      %v4058 = vunpack.c.l.b16 %v3970
      %v4059 = vunpack.c.l.b16 %v3980
      %v4060 = vunpack.c.l.b16 %v3994
      %v4061 = vunpack.c.l.b16 %v4004
      %v4062 = vunpack.c.l.b16 %v4018
      %v4063 = vunpack.c.l.b16 %v4028
      %v4064 = vpack.c.b16 %v4033, %v4032
      %v4065 = vpack.c.b16 %v4035, %v4034
      %v4066 = vpack.c.b16 %v4037, %v4036
      %v4067 = vpack.c.b16 %v4039, %v4038
      %v4068 = vpack.c.b16 %v4041, %v4040
      %v4069 = vpack.c.b16 %v4043, %v4042
      %v4070 = vpack.c.b16 %v4045, %v4044
      %v4071 = vpack.c.b16 %v4047, %v4046
      %v4072 = vpack.c.b16 %v4049, %v4048
      %v4073 = vpack.c.b16 %v4051, %v4050
      %v4074 = vpack.c.b16 %v4053, %v4052
      %v4075 = vpack.c.b16 %v4055, %v4054
      %v4076 = vpack.c.b16 %v4057, %v4056
      %v4077 = vpack.c.b16 %v4059, %v4058
      %v4078 = vpack.c.b16 %v4061, %v4060
      %v4079 = vpack.c.b16 %v4063, %v4062
      %v4082 = vunpack.c.l.b16 %v4030
      %v4083 = vunpack.c.l.b16 %v4031
      %v4084 = vpack.c.b16 %v4083, %v4082
      %v4087 = vsel %vm695, %v4064, 0
      %v4090 = vsel %vm695, %v4065, 0
      %v4093 = vsel %vm695, %v4066, 0
      %v4096 = vsel %vm695, %v4067, 0
      %v4099 = vsel %vm695, %v4068, 0
      %v4102 = vsel %vm695, %v4069, 0
      %v4105 = vsel %vm695, %v4070, 0
      %v4108 = vsel %vm695, %v4071, 0
      %v4111 = vsel %vm695, %v4072, 0
      %v4114 = vsel %vm695, %v4073, 0
      %v4117 = vsel %vm695, %v4074, 0
      %v4120 = vsel %vm695, %v4075, 0
      %v4123 = vsel %vm695, %v4076, 0
      %v4126 = vsel %vm695, %v4077, 0
      %v4129 = vsel %vm695, %v4078, 0
      %v4132 = vsel %vm695, %v4079, 0
      %4134 = vmatprep.subr.bf16.mxu0 0
      %4135 = vmatpush1.bf16.msra.mxu0 %v4084
      %4136 = vmatprep.subr.bf16.mxu0 0
      %4137 = vmatpush1.bf16.msra.mxu0 0
      %4138 = vmatprep.subr.bf16.mxu0 0
      %4139 = vmatpush1.bf16.msra.mxu0 0
      %4140 = vmatprep.subr.bf16.mxu0 0
      %4141 = vmatpush1.bf16.msra.mxu0 0
      %4142 = vmatprep.subr.bf16.mxu0 0
      %4143 = vmatpush1.bf16.msra.mxu0 0
      %4144 = vmatprep.subr.bf16.mxu0 0
      %4145 = vmatpush1.bf16.msra.mxu0 0
      %4146 = vmatprep.subr.bf16.mxu0 0
      %4147 = vmatpush1.bf16.msra.mxu0 0
      %4148 = vmatprep.subr.bf16.mxu0 0
      %4149 = vmatpush1.bf16.msra.mxu0 0
      %4150 = vmatprep.subr.bf16.mxu0 0
      %4151 = vmatpush1.bf16.msra.mxu0 0
      %4152 = vmatprep.subr.bf16.mxu0 0
      %4153 = vmatpush1.bf16.msra.mxu0 0
      %4154 = vmatprep.subr.bf16.mxu0 0
      %4155 = vmatpush1.bf16.msra.mxu0 0
      %4156 = vmatprep.subr.bf16.mxu0 0
      %4157 = vmatpush1.bf16.msra.mxu0 0
      %4158 = vmatprep.subr.bf16.mxu0 0
      %4159 = vmatpush1.bf16.msra.mxu0 0
      %4160 = vmatprep.subr.bf16.mxu0 0
      %4161 = vmatpush1.bf16.msra.mxu0 0
      %4162 = vmatprep.subr.bf16.mxu0 0
      %4163 = vmatpush1.bf16.msra.mxu0 0
      %4164 = vmatprep.subr.bf16.mxu0 0
      %4165 = vmatpush1.bf16.msra.mxu0 0
      %4166 = vmatprep.mubr.bf16.mxu0 0
      %4167 = vmatmul.mubr.bf16.gmra.mrb[0].mxu0 %v4087
      %v4168 = vpop.f32.mrb[0].mxu0
      %v4169 = vadd.f32 0.0, %v4168
      %v4170 = vpop.f32.mrb[0].mxu0
      %v4171 = vpop.f32.mrb[0].mxu0
      %v4172 = vadd.f32 0.0, %v4171
      %v4173 = vpop.f32.mrb[0].mxu0
      %4174 = vmatprep.mubr.bf16.mxu0 0
      %4175 = vmatmul.mubr.bf16.gmra.mrb[0].mxu0 %v4090
      %v4176 = vpop.f32.mrb[0].mxu0
      %v4177 = vadd.f32 0.0, %v4176
      %v4178 = vpop.f32.mrb[0].mxu0
      %v4179 = vpop.f32.mrb[0].mxu0
      %v4180 = vadd.f32 0.0, %v4179
      %v4181 = vpop.f32.mrb[0].mxu0
      %4182 = vmatprep.mubr.bf16.mxu0 0
      %4183 = vmatmul.mubr.bf16.gmra.mrb[0].mxu0 %v4093
      %v4184 = vpop.f32.mrb[0].mxu0
      %v4185 = vadd.f32 0.0, %v4184
      %v4186 = vpop.f32.mrb[0].mxu0
      %v4187 = vpop.f32.mrb[0].mxu0
      %v4188 = vadd.f32 0.0, %v4187
      %v4189 = vpop.f32.mrb[0].mxu0
      %4190 = vmatprep.mubr.bf16.mxu0 0
      %4191 = vmatmul.mubr.bf16.gmra.mrb[0].mxu0 %v4096
      %v4192 = vpop.f32.mrb[0].mxu0
      %v4193 = vadd.f32 0.0, %v4192
      %v4194 = vpop.f32.mrb[0].mxu0
      %v4195 = vpop.f32.mrb[0].mxu0
      %v4196 = vadd.f32 0.0, %v4195
      %v4197 = vpop.f32.mrb[0].mxu0
      %4198 = vmatprep.mubr.bf16.mxu0 0
      %4199 = vmatmul.mubr.bf16.gmra.mrb[0].mxu0 %v4099
      %v4200 = vpop.f32.mrb[0].mxu0
      %v4201 = vadd.f32 0.0, %v4200
      %v4202 = vpop.f32.mrb[0].mxu0
      %v4203 = vpop.f32.mrb[0].mxu0
      %v4204 = vadd.f32 0.0, %v4203
      %v4205 = vpop.f32.mrb[0].mxu0
      %4206 = vmatprep.mubr.bf16.mxu0 0
      %4207 = vmatmul.mubr.bf16.gmra.mrb[0].mxu0 %v4102
      %v4208 = vpop.f32.mrb[0].mxu0
      %v4209 = vadd.f32 0.0, %v4208
      %v4210 = vpop.f32.mrb[0].mxu0
      %v4211 = vpop.f32.mrb[0].mxu0
      %v4212 = vadd.f32 0.0, %v4211
      %v4213 = vpop.f32.mrb[0].mxu0
      %4214 = vmatprep.mubr.bf16.mxu0 0
      %4215 = vmatmul.mubr.bf16.gmra.mrb[0].mxu0 %v4105
      %v4216 = vpop.f32.mrb[0].mxu0
      %v4217 = vadd.f32 0.0, %v4216
      %v4218 = vpop.f32.mrb[0].mxu0
      %v4219 = vpop.f32.mrb[0].mxu0
      %v4220 = vadd.f32 0.0, %v4219
      %v4221 = vpop.f32.mrb[0].mxu0
      %4222 = vmatprep.mubr.bf16.mxu0 0
      %4223 = vmatmul.mubr.bf16.gmra.mrb[0].mxu0 %v4108
      %v4224 = vpop.f32.mrb[0].mxu0
      %v4225 = vadd.f32 0.0, %v4224
      %v4226 = vpop.f32.mrb[0].mxu0
      %v4227 = vpop.f32.mrb[0].mxu0
      %v4228 = vadd.f32 0.0, %v4227
      %v4229 = vpop.f32.mrb[0].mxu0
      %4230 = vmatprep.mubr.bf16.mxu0 0
      %4231 = vmatmul.mubr.bf16.gmra.mrb[0].mxu0 %v4111
      %v4232 = vpop.f32.mrb[0].mxu0
      %v4233 = vadd.f32 0.0, %v4232
      %v4234 = vpop.f32.mrb[0].mxu0
      %v4235 = vpop.f32.mrb[0].mxu0
      %v4236 = vadd.f32 0.0, %v4235
      %v4237 = vpop.f32.mrb[0].mxu0
      %4238 = vmatprep.mubr.bf16.mxu0 0
      %4239 = vmatmul.mubr.bf16.gmra.mrb[0].mxu0 %v4114
      %v4240 = vpop.f32.mrb[0].mxu0
      %v4241 = vadd.f32 0.0, %v4240
      %v4242 = vpop.f32.mrb[0].mxu0
      %v4243 = vpop.f32.mrb[0].mxu0
      %v4244 = vadd.f32 0.0, %v4243
      %v4245 = vpop.f32.mrb[0].mxu0
      %4246 = vmatprep.mubr.bf16.mxu0 0
      %4247 = vmatmul.mubr.bf16.gmra.mrb[0].mxu0 %v4117
      %v4248 = vpop.f32.mrb[0].mxu0
      %v4249 = vadd.f32 0.0, %v4248
      %v4250 = vpop.f32.mrb[0].mxu0
      %v4251 = vpop.f32.mrb[0].mxu0
      %v4252 = vadd.f32 0.0, %v4251
      %v4253 = vpop.f32.mrb[0].mxu0
      %4254 = vmatprep.mubr.bf16.mxu0 0
      %4255 = vmatmul.mubr.bf16.gmra.mrb[0].mxu0 %v4120
      %v4256 = vpop.f32.mrb[0].mxu0
      %v4257 = vadd.f32 0.0, %v4256
      %v4258 = vpop.f32.mrb[0].mxu0
      %v4259 = vpop.f32.mrb[0].mxu0
      %v4260 = vadd.f32 0.0, %v4259
      %v4261 = vpop.f32.mrb[0].mxu0
      %4262 = vmatprep.mubr.bf16.mxu0 0
      %4263 = vmatmul.mubr.bf16.gmra.mrb[0].mxu0 %v4123
      %v4264 = vpop.f32.mrb[0].mxu0
      %v4265 = vadd.f32 0.0, %v4264
      %v4266 = vpop.f32.mrb[0].mxu0
      %v4267 = vpop.f32.mrb[0].mxu0
      %v4268 = vadd.f32 0.0, %v4267
      %v4269 = vpop.f32.mrb[0].mxu0
      %4270 = vmatprep.mubr.bf16.mxu0 0
      %4271 = vmatmul.mubr.bf16.gmra.mrb[0].mxu0 %v4126
      %v4272 = vpop.f32.mrb[0].mxu0
      %v4273 = vadd.f32 0.0, %v4272
      %v4274 = vpop.f32.mrb[0].mxu0
      %v4275 = vpop.f32.mrb[0].mxu0
      %v4276 = vadd.f32 0.0, %v4275
      %v4277 = vpop.f32.mrb[0].mxu0
      %4278 = vmatprep.mubr.bf16.mxu0 0
      %4279 = vmatmul.mubr.bf16.gmra.mrb[0].mxu0 %v4129
      %v4280 = vpop.f32.mrb[0].mxu0
      %v4281 = vadd.f32 0.0, %v4280
      %v4282 = vpop.f32.mrb[0].mxu0
      %v4283 = vpop.f32.mrb[0].mxu0
      %v4284 = vadd.f32 0.0, %v4283
      %v4285 = vpop.f32.mrb[0].mxu0
      %4286 = vmatprep.mubr.bf16.mxu0 0
      %4287 = vmatmul.mubr.bf16.gmra.mrb[0].mxu0 %v4132
      %v4288 = vpop.f32.mrb[0].mxu0
      %v4289 = vadd.f32 0.0, %v4288
      %v4290 = vpop.f32.mrb[0].mxu0
      %v4291 = vpop.f32.mrb[0].mxu0
      %v4292 = vadd.f32 0.0, %v4291
      %v4293 = vpop.f32.mrb[0].mxu0
      %4294 = vdwg.mxu0
      %v4295 = vadd.f32 %v3565, %v4169
      %v4296 = vadd.f32 %v3566, %v4172
      %v4297 = vadd.f32 %v3567, %v4177
      %v4298 = vadd.f32 %v3568, %v4180
      %v4299 = vadd.f32 %v3569, %v4185
      %v4300 = vadd.f32 %v3570, %v4188
      %v4301 = vadd.f32 %v3571, %v4193
      %v4302 = vadd.f32 %v3572, %v4196
      %v4303 = vadd.f32 %v3573, %v4201
      %v4304 = vadd.f32 %v3574, %v4204
      %v4305 = vadd.f32 %v3575, %v4209
      %v4306 = vadd.f32 %v3576, %v4212
      %v4307 = vadd.f32 %v3577, %v4217
      %v4308 = vadd.f32 %v3578, %v4220
      %v4309 = vadd.f32 %v3579, %v4225
      %v4310 = vadd.f32 %v3580, %v4228
      %v4311 = vadd.f32 %v3581, %v4233
      %v4312 = vadd.f32 %v3582, %v4236
      %v4313 = vadd.f32 %v3583, %v4241
      %v4314 = vadd.f32 %v3584, %v4244
      %v4315 = vadd.f32 %v3585, %v4249
      %v4316 = vadd.f32 %v3586, %v4252
      %v4317 = vadd.f32 %v3587, %v4257
      %v4318 = vadd.f32 %v3588, %v4260
      %v4319 = vadd.f32 %v3589, %v4265
      %v4320 = vadd.f32 %v3590, %v4268
      %v4321 = vadd.f32 %v3591, %v4273
      %v4322 = vadd.f32 %v3592, %v4276
      %v4323 = vadd.f32 %v3593, %v4281
      %v4324 = vadd.f32 %v3594, %v4284
      %v4325 = vadd.f32 %v3595, %v4289
      %v4326 = vadd.f32 %v3596, %v4292
      %v4327 = vld [vmem:[%s3234] sm:$0xe]
      %v4328 = vld [vmem:[%s3234 + $0xc] sm:$0xe]
      %v4329 = vld [vmem:[%s3234 + $0x18] sm:$0xe]
      %v4330 = vld [vmem:[%s3234 + $0x24] sm:$0xe]
      %v4331 = vld [vmem:[%s3234 + $0x30] sm:$0xe]
      %v4332 = vld [vmem:[%s3234 + $0x3c] sm:$0xe]
      %v4333 = vld [vmem:[%s3234 + $0x48] sm:$0xe]
      %v4334 = vld [vmem:[%s3234 + $0x54] sm:$0xe]
      %v4335 = vld [vmem:[%s3234 + $0x60] sm:$0xe]
      %v4336 = vld [vmem:[%s3234 + $0x6c] sm:$0xe]
      %v4337 = vld [vmem:[%s3234 + $0x78] sm:$0xe]
      %v4338 = vld [vmem:[%s3234 + $0x84] sm:$0xe]
      %v4339 = vld [vmem:[%s3234 + $0x90] sm:$0xe]
      %v4340 = vld [vmem:[%s3234 + $0x9c] sm:$0xe]
      %v4341 = vld [vmem:[%s3234 + $0xa8] sm:$0xe]
      %v4342 = vld [vmem:[%s3234 + $0xb4] sm:$0xe]
      %v4391 = vrot.slane %v4327, 5
      %v4392 = vrot.slane %v4391, 4
      %v4393 = vrot.slane %v3598, 5
      %v4394 = vsel %vm1250, %v4392, %v4393
      %v4395 = vrot.slane %v4393, 4
      %v4396 = vrot.slane %v3599, 5
      %v4397 = vsel %vm1250, %v4395, %v4396
      %v4398 = vrot.slane %v4328, 5
      %v4399 = vrot.slane %v4398, 4
      %v4400 = vrot.slane %v3601, 5
      %v4401 = vsel %vm1250, %v4399, %v4400
      %v4402 = vrot.slane %v4400, 4
      %v4403 = vrot.slane %v3602, 5
      %v4404 = vsel %vm1250, %v4402, %v4403
      %v4405 = vrot.slane %v4329, 5
      %v4406 = vrot.slane %v4405, 4
      %v4407 = vrot.slane %v3604, 5
      %v4408 = vsel %vm1250, %v4406, %v4407
      %v4409 = vrot.slane %v4407, 4
      %v4410 = vrot.slane %v3605, 5
      %v4411 = vsel %vm1250, %v4409, %v4410
      %v4412 = vrot.slane %v4330, 5
      %v4413 = vrot.slane %v4412, 4
      %v4414 = vrot.slane %v3607, 5
      %v4415 = vsel %vm1250, %v4413, %v4414
      %v4416 = vrot.slane %v4414, 4
      %v4417 = vrot.slane %v3608, 5
      %v4418 = vsel %vm1250, %v4416, %v4417
      %v4419 = vrot.slane %v4331, 5
      %v4420 = vrot.slane %v4419, 4
      %v4421 = vrot.slane %v3610, 5
      %v4422 = vsel %vm1250, %v4420, %v4421
      %v4423 = vrot.slane %v4421, 4
      %v4424 = vrot.slane %v3611, 5
      %v4425 = vsel %vm1250, %v4423, %v4424
      %v4426 = vrot.slane %v4332, 5
      %v4427 = vrot.slane %v4426, 4
      %v4428 = vrot.slane %v3613, 5
      %v4429 = vsel %vm1250, %v4427, %v4428
      %v4430 = vrot.slane %v4428, 4
      %v4431 = vrot.slane %v3614, 5
      %v4432 = vsel %vm1250, %v4430, %v4431
      %v4433 = vrot.slane %v4333, 5
      %v4434 = vrot.slane %v4433, 4
      %v4435 = vrot.slane %v3616, 5
      %v4436 = vsel %vm1250, %v4434, %v4435
      %v4437 = vrot.slane %v4435, 4
      %v4438 = vrot.slane %v3617, 5
      %v4439 = vsel %vm1250, %v4437, %v4438
      %v4440 = vrot.slane %v4334, 5
      %v4441 = vrot.slane %v4440, 4
      %v4442 = vrot.slane %v3619, 5
      %v4443 = vsel %vm1250, %v4441, %v4442
      %v4444 = vrot.slane %v4442, 4
      %v4445 = vrot.slane %v3620, 5
      %v4446 = vsel %vm1250, %v4444, %v4445
      %v4447 = vrot.slane %v4335, 5
      %v4448 = vrot.slane %v4447, 4
      %v4449 = vrot.slane %v3622, 5
      %v4450 = vsel %vm1250, %v4448, %v4449
      %v4451 = vrot.slane %v4449, 4
      %v4452 = vrot.slane %v3623, 5
      %v4453 = vsel %vm1250, %v4451, %v4452
      %v4454 = vrot.slane %v4336, 5
      %v4455 = vrot.slane %v4454, 4
      %v4456 = vrot.slane %v3625, 5
      %v4457 = vsel %vm1250, %v4455, %v4456
      %v4458 = vrot.slane %v4456, 4
      %v4459 = vrot.slane %v3626, 5
      %v4460 = vsel %vm1250, %v4458, %v4459
      %v4461 = vrot.slane %v4337, 5
      %v4462 = vrot.slane %v4461, 4
      %v4463 = vrot.slane %v3628, 5
      %v4464 = vsel %vm1250, %v4462, %v4463
      %v4465 = vrot.slane %v4463, 4
      %v4466 = vrot.slane %v3629, 5
      %v4467 = vsel %vm1250, %v4465, %v4466
      %v4468 = vrot.slane %v4338, 5
      %v4469 = vrot.slane %v4468, 4
      %v4470 = vrot.slane %v3631, 5
      %v4471 = vsel %vm1250, %v4469, %v4470
      %v4472 = vrot.slane %v4470, 4
      %v4473 = vrot.slane %v3632, 5
      %v4474 = vsel %vm1250, %v4472, %v4473
      %v4475 = vrot.slane %v4339, 5
      %v4476 = vrot.slane %v4475, 4
      %v4477 = vrot.slane %v3634, 5
      %v4478 = vsel %vm1250, %v4476, %v4477
      %v4479 = vrot.slane %v4477, 4
      %v4480 = vrot.slane %v3635, 5
      %v4481 = vsel %vm1250, %v4479, %v4480
      %v4482 = vrot.slane %v4340, 5
      %v4483 = vrot.slane %v4482, 4
      %v4484 = vrot.slane %v3637, 5
      %v4485 = vsel %vm1250, %v4483, %v4484
      %v4486 = vrot.slane %v4484, 4
      %v4487 = vrot.slane %v3638, 5
      %v4488 = vsel %vm1250, %v4486, %v4487
      %v4489 = vrot.slane %v4341, 5
      %v4490 = vrot.slane %v4489, 4
      %v4491 = vrot.slane %v3640, 5
      %v4492 = vsel %vm1250, %v4490, %v4491
      %v4493 = vrot.slane %v4491, 4
      %v4494 = vrot.slane %v3641, 5
      %v4495 = vsel %vm1250, %v4493, %v4494
      %v4496 = vrot.slane %v4342, 5
      %v4497 = vrot.slane %v4496, 4
      %v4498 = vrot.slane %v3643, 5
      %v4499 = vsel %vm1250, %v4497, %v4498
      %v4500 = vrot.slane %v4498, 4
      %v4501 = vrot.slane %v3644, 5
      %v4502 = vsel %vm1250, %v4500, %v4501
      %s4503 = scalar_lea.vmem %s1, 64
      %v4504 = vld [vmem:[%s4503] sm:$0xf]
      %v4505 = vld [vmem:[%s4503 + $0x4] sm:$0xf]
      %v4506 = vunpack.c.l.b16 %v4394
      %v4507 = vunpack.c.l.b16 %v4397
      %v4508 = vunpack.c.l.b16 %v4401
      %v4509 = vunpack.c.l.b16 %v4404
      %v4510 = vunpack.c.l.b16 %v4408
      %v4511 = vunpack.c.l.b16 %v4411
      %v4512 = vunpack.c.l.b16 %v4415
      %v4513 = vunpack.c.l.b16 %v4418
      %v4514 = vunpack.c.l.b16 %v4422
      %v4515 = vunpack.c.l.b16 %v4425
      %v4516 = vunpack.c.l.b16 %v4429
      %v4517 = vunpack.c.l.b16 %v4432
      %v4518 = vunpack.c.l.b16 %v4436
      %v4519 = vunpack.c.l.b16 %v4439
      %v4520 = vunpack.c.l.b16 %v4443
      %v4521 = vunpack.c.l.b16 %v4446
      %v4522 = vunpack.c.l.b16 %v4450
      %v4523 = vunpack.c.l.b16 %v4453
      %v4524 = vunpack.c.l.b16 %v4457
      %v4525 = vunpack.c.l.b16 %v4460
      %v4526 = vunpack.c.l.b16 %v4464
      %v4527 = vunpack.c.l.b16 %v4467
      %v4528 = vunpack.c.l.b16 %v4471
      %v4529 = vunpack.c.l.b16 %v4474
      %v4530 = vunpack.c.l.b16 %v4478
      %v4531 = vunpack.c.l.b16 %v4481
      %v4532 = vunpack.c.l.b16 %v4485
      %v4533 = vunpack.c.l.b16 %v4488
      %v4534 = vunpack.c.l.b16 %v4492
      %v4535 = vunpack.c.l.b16 %v4495
      %v4536 = vunpack.c.l.b16 %v4499
      %v4537 = vunpack.c.l.b16 %v4502
      %v4538 = vpack.c.b16 %v4507, %v4506
      %v4539 = vpack.c.b16 %v4509, %v4508
      %v4540 = vpack.c.b16 %v4511, %v4510
      %v4541 = vpack.c.b16 %v4513, %v4512
      %v4542 = vpack.c.b16 %v4515, %v4514
      %v4543 = vpack.c.b16 %v4517, %v4516
      %v4544 = vpack.c.b16 %v4519, %v4518
      %v4545 = vpack.c.b16 %v4521, %v4520
      %v4546 = vpack.c.b16 %v4523, %v4522
      %v4547 = vpack.c.b16 %v4525, %v4524
      %v4548 = vpack.c.b16 %v4527, %v4526
      %v4549 = vpack.c.b16 %v4529, %v4528
      %v4550 = vpack.c.b16 %v4531, %v4530
      %v4551 = vpack.c.b16 %v4533, %v4532
      %v4552 = vpack.c.b16 %v4535, %v4534
      %v4553 = vpack.c.b16 %v4537, %v4536
      %v4556 = vunpack.c.l.b16 %v4504
      %v4557 = vunpack.c.l.b16 %v4505
      %v4558 = vpack.c.b16 %v4557, %v4556
      %v4561 = vsel %vm695, %v4538, 0
      %v4564 = vsel %vm695, %v4539, 0
      %v4567 = vsel %vm695, %v4540, 0
      %v4570 = vsel %vm695, %v4541, 0
      %v4573 = vsel %vm695, %v4542, 0
      %v4576 = vsel %vm695, %v4543, 0
      %v4579 = vsel %vm695, %v4544, 0
      %v4582 = vsel %vm695, %v4545, 0
      %v4585 = vsel %vm695, %v4546, 0
      %v4588 = vsel %vm695, %v4547, 0
      %v4591 = vsel %vm695, %v4548, 0
      %v4594 = vsel %vm695, %v4549, 0
      %v4597 = vsel %vm695, %v4550, 0
      %v4600 = vsel %vm695, %v4551, 0
      %v4603 = vsel %vm695, %v4552, 0
      %v4606 = vsel %vm695, %v4553, 0
      %4608 = vmatprep.subr.bf16.mxu0 0
      %4609 = vmatpush1.bf16.msra.mxu0 %v4558
      %4610 = vmatprep.subr.bf16.mxu0 0
      %4611 = vmatpush1.bf16.msra.mxu0 0
      %4612 = vmatprep.subr.bf16.mxu0 0
      %4613 = vmatpush1.bf16.msra.mxu0 0
      %4614 = vmatprep.subr.bf16.mxu0 0
      %4615 = vmatpush1.bf16.msra.mxu0 0
      %4616 = vmatprep.subr.bf16.mxu0 0
      %4617 = vmatpush1.bf16.msra.mxu0 0
      %4618 = vmatprep.subr.bf16.mxu0 0
      %4619 = vmatpush1.bf16.msra.mxu0 0
      %4620 = vmatprep.subr.bf16.mxu0 0
      %4621 = vmatpush1.bf16.msra.mxu0 0
      %4622 = vmatprep.subr.bf16.mxu0 0
      %4623 = vmatpush1.bf16.msra.mxu0 0
      %4624 = vmatprep.subr.bf16.mxu0 0
      %4625 = vmatpush1.bf16.msra.mxu0 0
      %4626 = vmatprep.subr.bf16.mxu0 0
      %4627 = vmatpush1.bf16.msra.mxu0 0
      %4628 = vmatprep.subr.bf16.mxu0 0
      %4629 = vmatpush1.bf16.msra.mxu0 0
      %4630 = vmatprep.subr.bf16.mxu0 0
      %4631 = vmatpush1.bf16.msra.mxu0 0
      %4632 = vmatprep.subr.bf16.mxu0 0
      %4633 = vmatpush1.bf16.msra.mxu0 0
      %4634 = vmatprep.subr.bf16.mxu0 0
      %4635 = vmatpush1.bf16.msra.mxu0 0
      %4636 = vmatprep.subr.bf16.mxu0 0
      %4637 = vmatpush1.bf16.msra.mxu0 0
      %4638 = vmatprep.subr.bf16.mxu0 0
      %4639 = vmatpush1.bf16.msra.mxu0 0
      %4640 = vmatprep.mubr.bf16.mxu0 0
      %4641 = vmatmul.mubr.bf16.gmra.mrb[0].mxu0 %v4561
      %v4642 = vpop.f32.mrb[0].mxu0
      %v4643 = vadd.f32 0.0, %v4642
      %v4644 = vpop.f32.mrb[0].mxu0
      %v4645 = vpop.f32.mrb[0].mxu0
      %v4646 = vadd.f32 0.0, %v4645
      %v4647 = vpop.f32.mrb[0].mxu0
      %4648 = vmatprep.mubr.bf16.mxu0 0
      %4649 = vmatmul.mubr.bf16.gmra.mrb[0].mxu0 %v4564
      %v4650 = vpop.f32.mrb[0].mxu0
      %v4651 = vadd.f32 0.0, %v4650
      %v4652 = vpop.f32.mrb[0].mxu0
      %v4653 = vpop.f32.mrb[0].mxu0
      %v4654 = vadd.f32 0.0, %v4653
      %v4655 = vpop.f32.mrb[0].mxu0
      %4656 = vmatprep.mubr.bf16.mxu0 0
      %4657 = vmatmul.mubr.bf16.gmra.mrb[0].mxu0 %v4567
      %v4658 = vpop.f32.mrb[0].mxu0
      %v4659 = vadd.f32 0.0, %v4658
      %v4660 = vpop.f32.mrb[0].mxu0
      %v4661 = vpop.f32.mrb[0].mxu0
      %v4662 = vadd.f32 0.0, %v4661
      %v4663 = vpop.f32.mrb[0].mxu0
      %4664 = vmatprep.mubr.bf16.mxu0 0
      %4665 = vmatmul.mubr.bf16.gmra.mrb[0].mxu0 %v4570
      %v4666 = vpop.f32.mrb[0].mxu0
      %v4667 = vadd.f32 0.0, %v4666
      %v4668 = vpop.f32.mrb[0].mxu0
      %v4669 = vpop.f32.mrb[0].mxu0
      %v4670 = vadd.f32 0.0, %v4669
      %v4671 = vpop.f32.mrb[0].mxu0
      %4672 = vmatprep.mubr.bf16.mxu0 0
      %4673 = vmatmul.mubr.bf16.gmra.mrb[0].mxu0 %v4573
      %v4674 = vpop.f32.mrb[0].mxu0
      %v4675 = vadd.f32 0.0, %v4674
      %v4676 = vpop.f32.mrb[0].mxu0
      %v4677 = vpop.f32.mrb[0].mxu0
      %v4678 = vadd.f32 0.0, %v4677
      %v4679 = vpop.f32.mrb[0].mxu0
      %4680 = vmatprep.mubr.bf16.mxu0 0
      %4681 = vmatmul.mubr.bf16.gmra.mrb[0].mxu0 %v4576
      %v4682 = vpop.f32.mrb[0].mxu0
      %v4683 = vadd.f32 0.0, %v4682
      %v4684 = vpop.f32.mrb[0].mxu0
      %v4685 = vpop.f32.mrb[0].mxu0
      %v4686 = vadd.f32 0.0, %v4685
      %v4687 = vpop.f32.mrb[0].mxu0
      %4688 = vmatprep.mubr.bf16.mxu0 0
      %4689 = vmatmul.mubr.bf16.gmra.mrb[0].mxu0 %v4579
      %v4690 = vpop.f32.mrb[0].mxu0
      %v4691 = vadd.f32 0.0, %v4690
      %v4692 = vpop.f32.mrb[0].mxu0
      %v4693 = vpop.f32.mrb[0].mxu0
      %v4694 = vadd.f32 0.0, %v4693
      %v4695 = vpop.f32.mrb[0].mxu0
      %4696 = vmatprep.mubr.bf16.mxu0 0
      %4697 = vmatmul.mubr.bf16.gmra.mrb[0].mxu0 %v4582
      %v4698 = vpop.f32.mrb[0].mxu0
      %v4699 = vadd.f32 0.0, %v4698
      %v4700 = vpop.f32.mrb[0].mxu0
      %v4701 = vpop.f32.mrb[0].mxu0
      %v4702 = vadd.f32 0.0, %v4701
      %v4703 = vpop.f32.mrb[0].mxu0
      %4704 = vmatprep.mubr.bf16.mxu0 0
      %4705 = vmatmul.mubr.bf16.gmra.mrb[0].mxu0 %v4585
      %v4706 = vpop.f32.mrb[0].mxu0
      %v4707 = vadd.f32 0.0, %v4706
      %v4708 = vpop.f32.mrb[0].mxu0
      %v4709 = vpop.f32.mrb[0].mxu0
      %v4710 = vadd.f32 0.0, %v4709
      %v4711 = vpop.f32.mrb[0].mxu0
      %4712 = vmatprep.mubr.bf16.mxu0 0
      %4713 = vmatmul.mubr.bf16.gmra.mrb[0].mxu0 %v4588
      %v4714 = vpop.f32.mrb[0].mxu0
      %v4715 = vadd.f32 0.0, %v4714
      %v4716 = vpop.f32.mrb[0].mxu0
      %v4717 = vpop.f32.mrb[0].mxu0
      %v4718 = vadd.f32 0.0, %v4717
      %v4719 = vpop.f32.mrb[0].mxu0
      %4720 = vmatprep.mubr.bf16.mxu0 0
      %4721 = vmatmul.mubr.bf16.gmra.mrb[0].mxu0 %v4591
      %v4722 = vpop.f32.mrb[0].mxu0
      %v4723 = vadd.f32 0.0, %v4722
      %v4724 = vpop.f32.mrb[0].mxu0
      %v4725 = vpop.f32.mrb[0].mxu0
      %v4726 = vadd.f32 0.0, %v4725
      %v4727 = vpop.f32.mrb[0].mxu0
      %4728 = vmatprep.mubr.bf16.mxu0 0
      %4729 = vmatmul.mubr.bf16.gmra.mrb[0].mxu0 %v4594
      %v4730 = vpop.f32.mrb[0].mxu0
      %v4731 = vadd.f32 0.0, %v4730
      %v4732 = vpop.f32.mrb[0].mxu0
      %v4733 = vpop.f32.mrb[0].mxu0
      %v4734 = vadd.f32 0.0, %v4733
      %v4735 = vpop.f32.mrb[0].mxu0
      %4736 = vmatprep.mubr.bf16.mxu0 0
      %4737 = vmatmul.mubr.bf16.gmra.mrb[0].mxu0 %v4597
      %v4738 = vpop.f32.mrb[0].mxu0
      %v4739 = vadd.f32 0.0, %v4738
      %v4740 = vpop.f32.mrb[0].mxu0
      %v4741 = vpop.f32.mrb[0].mxu0
      %v4742 = vadd.f32 0.0, %v4741
      %v4743 = vpop.f32.mrb[0].mxu0
      %4744 = vmatprep.mubr.bf16.mxu0 0
      %4745 = vmatmul.mubr.bf16.gmra.mrb[0].mxu0 %v4600
      %v4746 = vpop.f32.mrb[0].mxu0
      %v4747 = vadd.f32 0.0, %v4746
      %v4748 = vpop.f32.mrb[0].mxu0
      %v4749 = vpop.f32.mrb[0].mxu0
      %v4750 = vadd.f32 0.0, %v4749
      %v4751 = vpop.f32.mrb[0].mxu0
      %4752 = vmatprep.mubr.bf16.mxu0 0
      %4753 = vmatmul.mubr.bf16.gmra.mrb[0].mxu0 %v4603
      %v4754 = vpop.f32.mrb[0].mxu0
      %v4755 = vadd.f32 0.0, %v4754
      %v4756 = vpop.f32.mrb[0].mxu0
      %v4757 = vpop.f32.mrb[0].mxu0
      %v4758 = vadd.f32 0.0, %v4757
      %v4759 = vpop.f32.mrb[0].mxu0
      %4760 = vmatprep.mubr.bf16.mxu0 0
      %4761 = vmatmul.mubr.bf16.gmra.mrb[0].mxu0 %v4606
      %v4762 = vpop.f32.mrb[0].mxu0
      %v4763 = vadd.f32 0.0, %v4762
      %v4764 = vpop.f32.mrb[0].mxu0
      %v4765 = vpop.f32.mrb[0].mxu0
      %v4766 = vadd.f32 0.0, %v4765
      %v4767 = vpop.f32.mrb[0].mxu0
      %4768 = vdwg.mxu0
      %v4769 = vadd.f32 %v4295, %v4643
      %v4770 = vadd.f32 %v4296, %v4646
      %v4771 = vadd.f32 %v4297, %v4651
      %v4772 = vadd.f32 %v4298, %v4654
      %v4773 = vadd.f32 %v4299, %v4659
      %v4774 = vadd.f32 %v4300, %v4662
      %v4775 = vadd.f32 %v4301, %v4667
      %v4776 = vadd.f32 %v4302, %v4670
      %v4777 = vadd.f32 %v4303, %v4675
      %v4778 = vadd.f32 %v4304, %v4678
      %v4779 = vadd.f32 %v4305, %v4683
      %v4780 = vadd.f32 %v4306, %v4686
      %v4781 = vadd.f32 %v4307, %v4691
      %v4782 = vadd.f32 %v4308, %v4694
      %v4783 = vadd.f32 %v4309, %v4699
      %v4784 = vadd.f32 %v4310, %v4702
      %v4785 = vadd.f32 %v4311, %v4707
      %v4786 = vadd.f32 %v4312, %v4710
      %v4787 = vadd.f32 %v4313, %v4715
      %v4788 = vadd.f32 %v4314, %v4718
      %v4789 = vadd.f32 %v4315, %v4723
      %v4790 = vadd.f32 %v4316, %v4726
      %v4791 = vadd.f32 %v4317, %v4731
      %v4792 = vadd.f32 %v4318, %v4734
      %v4793 = vadd.f32 %v4319, %v4739
      %v4794 = vadd.f32 %v4320, %v4742
      %v4795 = vadd.f32 %v4321, %v4747
      %v4796 = vadd.f32 %v4322, %v4750
      %v4797 = vadd.f32 %v4323, %v4755
      %v4798 = vadd.f32 %v4324, %v4758
      %v4799 = vadd.f32 %v4325, %v4763
      %v4800 = vadd.f32 %v4326, %v4766
      %v4801 = vld [vmem:[%s2] sm:$0x1]
      %v4803 = vlaneseq
      %v4804 = vshrl.u32 %v4803, 7
      %v4805 = vsub.s32 0, %v4804
      %v4806 = vrot.slane %v4801, %v4805
      %v4808 = vadd.f32 %v4769, %v4806
      %v4809 = vadd.f32 %v4770, %v4806
      %v4810 = vadd.f32 %v4771, %v4806
      %v4811 = vadd.f32 %v4772, %v4806
      %v4812 = vadd.f32 %v4773, %v4806
      %v4813 = vadd.f32 %v4774, %v4806
      %v4814 = vadd.f32 %v4775, %v4806
      %v4815 = vadd.f32 %v4776, %v4806
      %v4816 = vadd.f32 %v4777, %v4806
      %v4817 = vadd.f32 %v4778, %v4806
      %v4818 = vadd.f32 %v4779, %v4806
      %v4819 = vadd.f32 %v4780, %v4806
      %v4820 = vadd.f32 %v4781, %v4806
      %v4821 = vadd.f32 %v4782, %v4806
      %v4822 = vadd.f32 %v4783, %v4806
      %v4823 = vadd.f32 %v4784, %v4806
      %v4824 = vadd.f32 %v4785, %v4806
      %v4825 = vadd.f32 %v4786, %v4806
      %v4826 = vadd.f32 %v4787, %v4806
      %v4827 = vadd.f32 %v4788, %v4806
      %v4828 = vadd.f32 %v4789, %v4806
      %v4829 = vadd.f32 %v4790, %v4806
      %v4830 = vadd.f32 %v4791, %v4806
      %v4831 = vadd.f32 %v4792, %v4806
      %v4832 = vadd.f32 %v4793, %v4806
      %v4833 = vadd.f32 %v4794, %v4806
      %v4834 = vadd.f32 %v4795, %v4806
      %v4835 = vadd.f32 %v4796, %v4806
      %v4836 = vadd.f32 %v4797, %v4806
      %v4837 = vadd.f32 %v4798, %v4806
      %v4838 = vadd.f32 %v4799, %v4806
      %v4839 = vadd.f32 %v4800, %v4806
      %v4840 = vmax.f32 %v4808, 0.0
      %v4841 = vmax.f32 %v4809, 0.0
      %v4842 = vmax.f32 %v4810, 0.0
      %v4843 = vmax.f32 %v4811, 0.0
      %v4844 = vmax.f32 %v4812, 0.0
      %v4845 = vmax.f32 %v4813, 0.0
      %v4846 = vmax.f32 %v4814, 0.0
      %v4847 = vmax.f32 %v4815, 0.0
      %v4848 = vmax.f32 %v4816, 0.0
      %v4849 = vmax.f32 %v4817, 0.0
      %v4850 = vmax.f32 %v4818, 0.0
      %v4851 = vmax.f32 %v4819, 0.0
      %v4852 = vmax.f32 %v4820, 0.0
      %v4853 = vmax.f32 %v4821, 0.0
      %v4854 = vmax.f32 %v4822, 0.0
      %v4855 = vmax.f32 %v4823, 0.0
      %v4856 = vmax.f32 %v4824, 0.0
      %v4857 = vmax.f32 %v4825, 0.0
      %v4858 = vmax.f32 %v4826, 0.0
      %v4859 = vmax.f32 %v4827, 0.0
      %v4860 = vmax.f32 %v4828, 0.0
      %v4861 = vmax.f32 %v4829, 0.0
      %v4862 = vmax.f32 %v4830, 0.0
      %v4863 = vmax.f32 %v4831, 0.0
      %v4864 = vmax.f32 %v4832, 0.0
      %v4865 = vmax.f32 %v4833, 0.0
      %v4866 = vmax.f32 %v4834, 0.0
      %v4867 = vmax.f32 %v4835, 0.0
      %v4868 = vmax.f32 %v4836, 0.0
      %v4869 = vmax.f32 %v4837, 0.0
      %v4870 = vmax.f32 %v4838, 0.0
      %v4871 = vmax.f32 %v4839, 0.0
      %v4872 = vpack.c.bf16 %v4841, %v4840
      %v4873 = vpack.c.bf16 %v4843, %v4842
      %v4874 = vpack.c.bf16 %v4845, %v4844
      %v4875 = vpack.c.bf16 %v4847, %v4846
      %v4876 = vpack.c.bf16 %v4849, %v4848
      %v4877 = vpack.c.bf16 %v4851, %v4850
      %v4878 = vpack.c.bf16 %v4853, %v4852
      %v4879 = vpack.c.bf16 %v4855, %v4854
      %v4880 = vpack.c.bf16 %v4857, %v4856
      %v4881 = vpack.c.bf16 %v4859, %v4858
      %v4882 = vpack.c.bf16 %v4861, %v4860
      %v4883 = vpack.c.bf16 %v4863, %v4862
      %v4884 = vpack.c.bf16 %v4865, %v4864
      %v4885 = vpack.c.bf16 %v4867, %v4866
      %v4886 = vpack.c.bf16 %v4869, %v4868
      %v4887 = vpack.c.bf16 %v4871, %v4870
      %v4904 = vunpack.c.l.b16 %v4872
      %v4905 = vunpack.c.h.b16 %v4872
      %v4906 = vunpack.c.l.b16 %v4873
      %v4907 = vunpack.c.h.b16 %v4873
      %v4908 = vunpack.c.l.b16 %v4874
      %v4909 = vunpack.c.h.b16 %v4874
      %v4910 = vunpack.c.l.b16 %v4875
      %v4911 = vunpack.c.h.b16 %v4875
      %v4912 = vunpack.c.l.b16 %v4876
      %v4913 = vunpack.c.h.b16 %v4876
      %v4914 = vunpack.c.l.b16 %v4877
      %v4915 = vunpack.c.h.b16 %v4877
      %v4916 = vunpack.c.l.b16 %v4878
      %v4917 = vunpack.c.h.b16 %v4878
      %v4918 = vunpack.c.l.b16 %v4879
      %v4919 = vunpack.c.h.b16 %v4879
      %v4920 = vunpack.c.l.b16 %v4880
      %v4921 = vunpack.c.h.b16 %v4880
      %v4922 = vunpack.c.l.b16 %v4881
      %v4923 = vunpack.c.h.b16 %v4881
      %v4924 = vunpack.c.l.b16 %v4882
      %v4925 = vunpack.c.h.b16 %v4882
      %v4926 = vunpack.c.l.b16 %v4883
      %v4927 = vunpack.c.h.b16 %v4883
      %v4928 = vunpack.c.l.b16 %v4884
      %v4929 = vunpack.c.h.b16 %v4884
      %v4930 = vunpack.c.l.b16 %v4885
      %v4931 = vunpack.c.h.b16 %v4885
      %v4932 = vunpack.c.l.b16 %v4886
      %v4933 = vunpack.c.h.b16 %v4886
      %v4934 = vunpack.c.l.b16 %v4887
      %v4935 = vunpack.c.h.b16 %v4887
      %v4936 = vpack.c.b16 %v4904, %v4904
      %v4937 = vpack.c.b16 %v4905, %v4905
      %v4938 = vpack.c.b16 %v4906, %v4906
      %v4939 = vpack.c.b16 %v4907, %v4907
      %v4940 = vpack.c.b16 %v4908, %v4908
      %v4941 = vpack.c.b16 %v4909, %v4909
      %v4942 = vpack.c.b16 %v4910, %v4910
      %v4943 = vpack.c.b16 %v4911, %v4911
      %v4944 = vpack.c.b16 %v4912, %v4912
      %v4945 = vpack.c.b16 %v4913, %v4913
      %v4946 = vpack.c.b16 %v4914, %v4914
      %v4947 = vpack.c.b16 %v4915, %v4915
      %v4948 = vpack.c.b16 %v4916, %v4916
      %v4949 = vpack.c.b16 %v4917, %v4917
      %v4950 = vpack.c.b16 %v4918, %v4918
      %v4951 = vpack.c.b16 %v4919, %v4919
      %v4952 = vpack.c.b16 %v4920, %v4920
      %v4953 = vpack.c.b16 %v4921, %v4921
      %v4954 = vpack.c.b16 %v4922, %v4922
      %v4955 = vpack.c.b16 %v4923, %v4923
      %v4956 = vpack.c.b16 %v4924, %v4924
      %v4957 = vpack.c.b16 %v4925, %v4925
      %v4958 = vpack.c.b16 %v4926, %v4926
      %v4959 = vpack.c.b16 %v4927, %v4927
      %v4960 = vpack.c.b16 %v4928, %v4928
      %v4961 = vpack.c.b16 %v4929, %v4929
      %v4962 = vpack.c.b16 %v4930, %v4930
      %v4963 = vpack.c.b16 %v4931, %v4931
      %v4964 = vpack.c.b16 %v4932, %v4932
      %v4965 = vpack.c.b16 %v4933, %v4933
      %v4966 = vpack.c.b16 %v4934, %v4934
      %v4967 = vpack.c.b16 %v4935, %v4935
      %vm5000 = vcmask 60416
      %5001 = vst.msk [vmem:[%s194] sm:$0xf] %vm5000, %v4936
      %5002 = vst.msk [vmem:[%s194 + $0x4] sm:$0xf] %vm5000, %v4937
      %5003 = vst.msk [vmem:[%s194 + $0x8] sm:$0xf] %vm5000, %v4938
      %5004 = vst.msk [vmem:[%s194 + $0xc] sm:$0xf] %vm5000, %v4939
      %5005 = vst.msk [vmem:[%s194 + $0x10] sm:$0xf] %vm5000, %v4940
      %5006 = vst.msk [vmem:[%s194 + $0x14] sm:$0xf] %vm5000, %v4941
      %5007 = vst.msk [vmem:[%s194 + $0x18] sm:$0xf] %vm5000, %v4942
      %5008 = vst.msk [vmem:[%s194 + $0x1c] sm:$0xf] %vm5000, %v4943
      %5009 = vst.msk [vmem:[%s194 + $0x20] sm:$0xf] %vm5000, %v4944
      %5010 = vst.msk [vmem:[%s194 + $0x24] sm:$0xf] %vm5000, %v4945
      %5011 = vst.msk [vmem:[%s194 + $0x28] sm:$0xf] %vm5000, %v4946
      %5012 = vst.msk [vmem:[%s194 + $0x2c] sm:$0xf] %vm5000, %v4947
      %5013 = vst.msk [vmem:[%s194 + $0x30] sm:$0xf] %vm5000, %v4948
      %5014 = vst.msk [vmem:[%s194 + $0x34] sm:$0xf] %vm5000, %v4949
      %5015 = vst.msk [vmem:[%s194 + $0x38] sm:$0xf] %vm5000, %v4950
      %5016 = vst.msk [vmem:[%s194 + $0x3c] sm:$0xf] %vm5000, %v4951
      %5017 = vst.msk [vmem:[%s194 + $0x40] sm:$0xf] %vm5000, %v4952
      %5018 = vst.msk [vmem:[%s194 + $0x44] sm:$0xf] %vm5000, %v4953
      %5019 = vst.msk [vmem:[%s194 + $0x48] sm:$0xf] %vm5000, %v4954
      %5020 = vst.msk [vmem:[%s194 + $0x4c] sm:$0xf] %vm5000, %v4955
      %5021 = vst.msk [vmem:[%s194 + $0x50] sm:$0xf] %vm5000, %v4956
      %5022 = vst.msk [vmem:[%s194 + $0x54] sm:$0xf] %vm5000, %v4957
      %5023 = vst.msk [vmem:[%s194 + $0x58] sm:$0xf] %vm5000, %v4958
      %5024 = vst.msk [vmem:[%s194 + $0x5c] sm:$0xf] %vm5000, %v4959
      %5025 = vst.msk [vmem:[%s194 + $0x60] sm:$0xf] %vm5000, %v4960
      %5026 = vst.msk [vmem:[%s194 + $0x64] sm:$0xf] %vm5000, %v4961
      %5027 = vst.msk [vmem:[%s194 + $0x68] sm:$0xf] %vm5000, %v4962
      %5028 = vst.msk [vmem:[%s194 + $0x6c] sm:$0xf] %vm5000, %v4963
      %5029 = vst.msk [vmem:[%s194 + $0x70] sm:$0xf] %vm5000, %v4964
      %5030 = vst.msk [vmem:[%s194 + $0x74] sm:$0xf] %vm5000, %v4965
      %5031 = vst.msk [vmem:[%s194 + $0x78] sm:$0xf] %vm5000, %v4966
      %5032 = vst.msk [vmem:[%s194 + $0x7c] sm:$0xf] %vm5000, %v4967
      %s5033 = smul.u32 16, %s19
      %p5034 = scmp.lt.s32.totalorder %s18, 1
      %s5035 = scalar_select %p5034, %s18, 1
      %p5036 = scmp.lt.s32.totalorder %s5033, 15
      %s5037 = scalar_select %p5036, %s5033, 15
      %s5038 = smul.addr %s5037, 2
      %s5039 = smul.addr %s5035, 32
      %s5040 = sadd.s32 %s5038, %s5039
      %s5041 = smul.addr %s5040, 4
      %s5042 = scalar_lea.vmem %s3, %s5041
      // Predicated region
      $region33: #{tpu_custom_call.1} parent=31 // pred_check
        %p5043 = pneg %p114
      $region34: #{tpu_custom_call.1} parent=31 // pred_check_branch
        %5045 = sbr.rel (%p5043) target = $region36
      $region35: #{tpu_custom_call.1} parent=31 // pred_region
        %s5046 = smul.u32 16, %s19
      $region36: #{tpu_custom_call.1} parent=31 // pred_fallthru
        _
    $region32: #{tpu_custom_call.1} parent=5 // pred_fallthru
      _
    %p5047 = scmp.le.s32.totalorder 2, %s9
    // Predicated region
    $region37: #{tpu_custom_call.1} parent=5 // pred_check
      %p5048 = pneg %p5047
    $region38: #{tpu_custom_call.1} parent=5 // pred_check_branch
      %5050 = sbr.rel (%p5048) target = $region40
    $region39: #{tpu_custom_call.1} parent=5 // pred_region
      %s5051 = ssub.s32 %s9, 2
      // Predicated region
      $region41: #{tpu_custom_call.1} parent=39 // pred_check
        %p5052 = pneg %p120
      $region42: #{tpu_custom_call.1} parent=39 // pred_check_branch
        %5054 = sbr.rel (%p5052) target = $region44
      $region43: #{tpu_custom_call.1} parent=39 // pred_region
        %s5055 = smul.u32 16, %s21
        %p5056 = scmp.lt.s32.totalorder %s20, 1
        %s5057 = scalar_select %p5056, %s20, 1
        %p5058 = scmp.lt.s32.totalorder %s5055, 15
        %s5059 = scalar_select %p5058, %s5055, 15
        %s5060 = smul.addr %s5059, 2
        %s5061 = smul.addr %s5057, 32
        %s5062 = sadd.s32 %s5060, %s5061
        %s5063 = smul.addr %s5062, 4
        %s5064 = scalar_lea.vmem %s3, %s5063
      $region44: #{tpu_custom_call.1} parent=39 // pred_fallthru
        _
    $region40: #{tpu_custom_call.1} parent=5 // pred_fallthru
      _
  $region6: #{tpu_custom_call.1} parent=0 // loop_footer
    %s13 = sadd.s32 1, %s9
  $region7: #{tpu_custom_call.1} parent=0 // loop_footer_branch
    %8 = sbr.rel target = $region3
  $region8: #{tpu_custom_call.1} parent=0 // loop_exit
    _

</llo_original>
